<compile_context>
chip_gen: v7x
topology: tpu7x:2x2x1
jax: 0.10.0
libtpu: 0.0.40
codegen_flags: <defaults>
</compile_context>

<pallas_src>
import functools
import math

import jax
import jax.numpy as jnp
from jax import lax
from jax.experimental import pallas as pl
from jax.experimental.pallas import tpu as pltpu

_VMEM = pltpu.MemorySpace.VMEM

_SEQ = 32       # q/k/v rows
_DH = 96        # head dim
_NPROJ = 1024   # Linear out_features
_KIN = 64       # Linear in_features
_WIN = 256      # 128-aligned covering window used by the in-kernel relayout


# ---------------------------------------------------------------------------
# Fused kernel: projection + token->head relayout + scaled-dot-product attn
# ---------------------------------------------------------------------------
def _fused_kernel(x_ref, w_ref, b_ref, o_ref, proj_s, qkv_s, *, scale):
    # ---- 1) qkv projection: (16,64)bf16 @ (64,1024)bf16 -> f32, + bias -----
    proj_s[...] = (
        jnp.dot(x_ref[...], w_ref[...], preferred_element_type=jnp.float32)
        + b_ref[...]
    )

    # ---- 2) relayout: token-major (row 3h+t, 1024 feats) -> head-major ----
    # q/k/v land in qkv_s rows [0:32), [32:64), [64:96).
    # Row r of head h covers flat indices [96r, 96r+96) of that head's
    # 3*1024 projection slab; extract each row with a 128-aligned window
    # load + static lane roll (all offsets are compile-time constants).
    col = lax.broadcasted_iota(jnp.int32, (1, _DH), 1)

    def extract(src_row, f0, shift_to):
        # Returns (1, 96) value v with v[c] == proj_s[src_row, f0 + c - shift_to]
        # (valid for c >= shift_to; callers mask the rest).
        start = min((f0 // 128) * 128, _NPROJ - _WIN)   # 128-aligned, in-bounds
        off = f0 - start
        win = proj_s[src_row:src_row + 1, start:start + _WIN]      # (1, 256)
        rolled = pltpu.roll(win, (_WIN - off + shift_to) % _WIN, 1)
        return rolled[:, 0:_DH]

    for h in range(3):              # 0: q, 1: k, 2: v
        for r in range(_SEQ):
            g0 = _DH * r
            tok = g0 // _NPROJ      # token-local index within the head (0..2)
            f0 = g0 % _NPROJ
            n_first = min(_DH, _NPROJ - f0)
            piece = extract(3 * h + tok, f0, 0)
            if n_first < _DH:       # row straddles two projection rows
                tail = extract(3 * h + tok + 1, 0, n_first)
                piece = jnp.where(col < n_first, piece, tail)
            dst = _SEQ * h + r
            qkv_s[dst:dst + 1, :] = piece

    # ---- 3) attention: softmax(scale * q @ k^T + diag_mask) @ v ------------
    q = qkv_s[0:_SEQ, :]
    k = qkv_s[_SEQ:2 * _SEQ, :]
    v = qkv_s[2 * _SEQ:3 * _SEQ, :]

    s = pl.dot(q, k, trans_b=True) * scale          # (32, 32) f32 on the MXU

    row_i = lax.broadcasted_iota(jnp.int32, (_SEQ, _SEQ), 0)
    col_i = lax.broadcasted_iota(jnp.int32, (_SEQ, _SEQ), 1)
    s = jnp.where(row_i == col_i, s - 10000.0, s)   # diagonal -1e4 mask

    m = jnp.max(s, axis=-1, keepdims=True)
    p = jnp.exp(s - m)
    denom = jnp.sum(p, axis=-1, keepdims=True)
    p = p * pl.reciprocal(denom, approx=True)       # EUP slot

    o_ref[...] = jnp.dot(p, v, preferred_element_type=jnp.float32)


def fused_sdpa(x16_bf16, w_bf16, b_row):
    scale = 1.0 / math.sqrt(_DH)
    return pl.pallas_call(
        functools.partial(_fused_kernel, scale=scale),
        out_shape=jax.ShapeDtypeStruct((_SEQ, _DH), jnp.float32),
        in_specs=[
            pl.BlockSpec(memory_space=_VMEM),
            pl.BlockSpec(memory_space=_VMEM),
            pl.BlockSpec(memory_space=_VMEM),
        ],
        out_specs=pl.BlockSpec(memory_space=_VMEM),
        scratch_shapes=[
            pltpu.VMEM((16, _NPROJ), jnp.float32),       # projection scratch
            pltpu.VMEM((3 * _SEQ, _DH), jnp.float32),    # q/k/v scratch
        ],
    )(x16_bf16, w_bf16, b_row)


# ---------------------------------------------------------------------------
# Full forward pass (glue in plain JAX, all compute in one Pallas kernel)
# ---------------------------------------------------------------------------
@jax.jit
def model_forward(x, w_bf16, b):
    # Flattened rows 0..8 of (12, 64) feed q/k/v (row-major reshape semantics
    # of the reference); rows 9..11 are dead compute, 4 zero rows pad M to 16.
    x_tok = x.reshape(12, _KIN)
    x16 = jnp.pad(x_tok, ((0, 4), (0, 0))).astype(jnp.bfloat16)   # (16, 64)
    out = fused_sdpa(x16, w_bf16, b.reshape(1, _NPROJ))           # (32, 96)
    return out.reshape(1, 1, _SEQ, _DH)


if __name__ == "__main__":
    key = jax.random.PRNGKey(0)
    kx, kw, kb = jax.random.split(key, 3)

    # Input as implied by the module: x = randn(4, 3, 64)
    x = jax.random.normal(kx, (4, 3, 64), dtype=jnp.float32)

    # Deterministic Linear(64, 1024) params (PyTorch-style uniform init),
    # stored as (in_features, out_features).
    bound = 1.0 / math.sqrt(64)
    w = jax.random.uniform(kw, (64, 1024), jnp.float32, -bound, bound)
    b = jax.random.uniform(kb, (1024,), jnp.float32, -bound, bound)

    # Weights are static: cast to bf16 once, outside the jitted forward.
    w_bf16 = w.astype(jnp.bfloat16)

    out = model_forward(x, w_bf16, b)
    out = jax.block_until_ready(out)
    assert out.shape == (1, 1, 32, 96)

    # Pure-JAX reference (same bf16-cast projection inputs, same 32x32 mask).
    xq = x.reshape(12, 64).astype(jnp.bfloat16).astype(jnp.float32)
    wq = w_bf16.astype(jnp.float32)
    qkv_ref = (xq @ wq + b).reshape(4, 32, 96)
    q_r, k_r, v_r = qkv_ref[0], qkv_ref[1], qkv_ref[2]
    mask_r = jnp.where(jnp.eye(32, dtype=bool), -10000.0, 0.0)
    s_r = (q_r / math.sqrt(96.0)) @ k_r.T + mask_r
    ref = jax.nn.softmax(s_r, axis=-1) @ v_r
    err = float(jnp.max(jnp.abs(out[0, 0] - ref)))
    assert jnp.allclose(out[0, 0], ref, rtol=2e-2, atol=2e-2), err

    print("KERNEL_OK")
</pallas_src>

<mosaic_0001>
module attributes {stable_mosaic.version = 11 : i64} {
  func.func @_fused_kernel(%arg0: memref<16x64xbf16, #tpu.memory_space<vmem>>, %arg1: memref<64x1024xbf16, #tpu.memory_space<vmem>>, %arg2: memref<1x1024xf32, #tpu.memory_space<vmem>>, %arg3: memref<32x96xf32, #tpu.memory_space<vmem>>, %arg4: memref<16x1024xf32, #tpu.memory_space<vmem>>, %arg5: memref<96x96xf32, #tpu.memory_space<vmem>>) attributes {dimension_semantics = [], scalar_prefetch = 0 : i64, scratch_operands = 2 : i64, tpu.core_type = #tpu.core_type<tc>} {
    %c0 = arith.constant 0 : index
    %c0_0 = arith.constant 0 : index
    %0 = vector.load %arg0[%c0, %c0_0] : memref<16x64xbf16, #tpu.memory_space<vmem>>, vector<16x64xbf16>
    %c0_1 = arith.constant 0 : index
    %c0_2 = arith.constant 0 : index
    %1 = vector.load %arg1[%c0_1, %c0_2] : memref<64x1024xbf16, #tpu.memory_space<vmem>>, vector<64x1024xbf16>
    %cst = arith.constant dense<0.000000e+00> : vector<16x1024xf32>
    %2 = tpu.matmul %0, %1, %cst {dimension_numbers = #tpu.dot_dimension_numbers<[1], [0], [0], [1], [0, 0, 1, 1], [], []>} : vector<16x64xbf16>, vector<64x1024xbf16>, vector<16x1024xf32> -> vector<16x1024xf32>
    %c0_3 = arith.constant 0 : index
    %c0_4 = arith.constant 0 : index
    %3 = vector.load %arg2[%c0_3, %c0_4] : memref<1x1024xf32, #tpu.memory_space<vmem>>, vector<1x1024xf32>
    %4 = vector.broadcast %3 : vector<1x1024xf32> to vector<16x1024xf32>
    %5 = arith.addf %2, %4 : vector<16x1024xf32>
    %c0_5 = arith.constant 0 : index
    %c0_6 = arith.constant 0 : index
    %6 = vector.load %arg4[%c0_5, %c0_6] : memref<16x1024xf32, #tpu.memory_space<vmem>>, vector<16x1024xf32>
    tpu.vector_store %arg4[%c0_5, %c0_6], %5 {strides = array<i32>} : memref<16x1024xf32, #tpu.memory_space<vmem>>, vector<16x1024xf32>,
    %7 = tpu.iota {dimensions = array<i32: 1>} : vector<1x96xi32>
    %c0_7 = arith.constant 0 : index
    %c0_8 = arith.constant 0 : index
    %8 = vector.load %arg4[%c0_7, %c0_8] : memref<16x1024xf32, #tpu.memory_space<vmem>>, vector<1x256xf32>
    %c0_i32 = arith.constant 0 : i32
    %9 = tpu.dynamic_rotate %8 by %c0_i32 dim 1 : vector<1x256xf32>, i32 -> vector<1x256xf32>
    %10 = vector.extract_strided_slice %9 {offsets = [0, 0], sizes = [1, 96], strides = [1, 1]} : vector<1x256xf32> to vector<1x96xf32>
    %c0_9 = arith.constant 0 : index
    %c0_10 = arith.constant 0 : index
    %11 = vector.load %arg5[%c0_9, %c0_10] : memref<96x96xf32, #tpu.memory_space<vmem>>, vector<1x96xf32>
    tpu.vector_store %arg5[%c0_9, %c0_10], %10 {strides = array<i32>} : memref<96x96xf32, #tpu.memory_space<vmem>>, vector<1x96xf32>,
    %c0_11 = arith.constant 0 : index
    %c0_12 = arith.constant 0 : index
    %12 = vector.load %arg4[%c0_11, %c0_12] : memref<16x1024xf32, #tpu.memory_space<vmem>>, vector<1x256xf32>
    %c160_i32 = arith.constant 160 : i32
    %13 = tpu.dynamic_rotate %12 by %c160_i32 dim 1 : vector<1x256xf32>, i32 -> vector<1x256xf32>
    %14 = vector.extract_strided_slice %13 {offsets = [0, 0], sizes = [1, 96], strides = [1, 1]} : vector<1x256xf32> to vector<1x96xf32>
    %c1 = arith.constant 1 : index
    %c0_13 = arith.constant 0 : index
    %15 = vector.load %arg5[%c1, %c0_13] : memref<96x96xf32, #tpu.memory_space<vmem>>, vector<1x96xf32>
    tpu.vector_store %arg5[%c1, %c0_13], %14 {strides = array<i32>} : memref<96x96xf32, #tpu.memory_space<vmem>>, vector<1x96xf32>,
    %c0_14 = arith.constant 0 : index
    %c128 = arith.constant 128 : index
    %16 = vector.load %arg4[%c0_14, %c128] : memref<16x1024xf32, #tpu.memory_space<vmem>>, vector<1x256xf32>
    %c192_i32 = arith.constant 192 : i32
    %17 = tpu.dynamic_rotate %16 by %c192_i32 dim 1 : vector<1x256xf32>, i32 -> vector<1x256xf32>
    %18 = vector.extract_strided_slice %17 {offsets = [0, 0], sizes = [1, 96], strides = [1, 1]} : vector<1x256xf32> to vector<1x96xf32>
    %c2 = arith.constant 2 : index
    %c0_15 = arith.constant 0 : index
    %19 = vector.load %arg5[%c2, %c0_15] : memref<96x96xf32, #tpu.memory_space<vmem>>, vector<1x96xf32>
    tpu.vector_store %arg5[%c2, %c0_15], %18 {strides = array<i32>} : memref<96x96xf32, #tpu.memory_space<vmem>>, vector<1x96xf32>,
    %c0_16 = arith.constant 0 : index
    %c256 = arith.constant 256 : index
    %20 = vector.load %arg4[%c0_16, %c256] : memref<16x1024xf32, #tpu.memory_space<vmem>>, vector<1x256xf32>
    %c224_i32 = arith.constant 224 : i32
    %21 = tpu.dynamic_rotate %20 by %c224_i32 dim 1 : vector<1x256xf32>, i32 -> vector<1x256xf32>
    %22 = vector.extract_strided_slice %21 {offsets = [0, 0], sizes = [1, 96], strides = [1, 1]} : vector<1x256xf32> to vector<1x96xf32>
    %c3 = arith.constant 3 : index
    %c0_17 = arith.constant 0 : index
    %23 = vector.load %arg5[%c3, %c0_17] : memref<96x96xf32, #tpu.memory_space<vmem>>, vector<1x96xf32>
    tpu.vector_store %arg5[%c3, %c0_17], %22 {strides = array<i32>} : memref<96x96xf32, #tpu.memory_space<vmem>>, vector<1x96xf32>,
    %c0_18 = arith.constant 0 : index
    %c384 = arith.constant 384 : index
    %24 = vector.load %arg4[%c0_18, %c384] : memref<16x1024xf32, #tpu.memory_space<vmem>>, vector<1x256xf32>
    %c0_i32_19 = arith.constant 0 : i32
    %25 = tpu.dynamic_rotate %24 by %c0_i32_19 dim 1 : vector<1x256xf32>, i32 -> vector<1x256xf32>
    %26 = vector.extract_strided_slice %25 {offsets = [0, 0], sizes = [1, 96], strides = [1, 1]} : vector<1x256xf32> to vector<1x96xf32>
    %c4 = arith.constant 4 : index
    %c0_20 = arith.constant 0 : index
    %27 = vector.load %arg5[%c4, %c0_20] : memref<96x96xf32, #tpu.memory_space<vmem>>, vector<1x96xf32>
    tpu.vector_store %arg5[%c4, %c0_20], %26 {strides = array<i32>} : memref<96x96xf32, #tpu.memory_space<vmem>>, vector<1x96xf32>,
    %c0_21 = arith.constant 0 : index
    %c384_22 = arith.constant 384 : index
    %28 = vector.load %arg4[%c0_21, %c384_22] : memref<16x1024xf32, #tpu.memory_space<vmem>>, vector<1x256xf32>
    %c160_i32_23 = arith.constant 160 : i32
    %29 = tpu.dynamic_rotate %28 by %c160_i32_23 dim 1 : vector<1x256xf32>, i32 -> vector<1x256xf32>
    %30 = vector.extract_strided_slice %29 {offsets = [0, 0], sizes = [1, 96], strides = [1, 1]} : vector<1x256xf32> to vector<1x96xf32>
    %c5 = arith.constant 5 : index
    %c0_24 = arith.constant 0 : index
    %31 = vector.load %arg5[%c5, %c0_24] : memref<96x96xf32, #tpu.memory_space<vmem>>, vector<1x96xf32>
    tpu.vector_store %arg5[%c5, %c0_24], %30 {strides = array<i32>} : memref<96x96xf32, #tpu.memory_space<vmem>>, vector<1x96xf32>,
    %c0_25 = arith.constant 0 : index
    %c512 = arith.constant 512 : index
    %32 = vector.load %arg4[%c0_25, %c512] : memref<16x1024xf32, #tpu.memory_space<vmem>>, vector<1x256xf32>
    %c192_i32_26 = arith.constant 192 : i32
    %33 = tpu.dynamic_rotate %32 by %c192_i32_26 dim 1 : vector<1x256xf32>, i32 -> vector<1x256xf32>
    %34 = vector.extract_strided_slice %33 {offsets = [0, 0], sizes = [1, 96], strides = [1, 1]} : vector<1x256xf32> to vector<1x96xf32>
    %c6 = arith.constant 6 : index
    %c0_27 = arith.constant 0 : index
    %35 = vector.load %arg5[%c6, %c0_27] : memref<96x96xf32, #tpu.memory_space<vmem>>, vector<1x96xf32>
    tpu.vector_store %arg5[%c6, %c0_27], %34 {strides = array<i32>} : memref<96x96xf32, #tpu.memory_space<vmem>>, vector<1x96xf32>,
    %c0_28 = arith.constant 0 : index
    %c640 = arith.constant 640 : index
    %36 = vector.load %arg4[%c0_28, %c640] : memref<16x1024xf32, #tpu.memory_space<vmem>>, vector<1x256xf32>
    %c224_i32_29 = arith.constant 224 : i32
    %37 = tpu.dynamic_rotate %36 by %c224_i32_29 dim 1 : vector<1x256xf32>, i32 -> vector<1x256xf32>
    %38 = vector.extract_strided_slice %37 {offsets = [0, 0], sizes = [1, 96], strides = [1, 1]} : vector<1x256xf32> to vector<1x96xf32>
    %c7 = arith.constant 7 : index
    %c0_30 = arith.constant 0 : index
    %39 = vector.load %arg5[%c7, %c0_30] : memref<96x96xf32, #tpu.memory_space<vmem>>, vector<1x96xf32>
    tpu.vector_store %arg5[%c7, %c0_30], %38 {strides = array<i32>} : memref<96x96xf32, #tpu.memory_space<vmem>>, vector<1x96xf32>,
    %c0_31 = arith.constant 0 : index
    %c768 = arith.constant 768 : index
    %40 = vector.load %arg4[%c0_31, %c768] : memref<16x1024xf32, #tpu.memory_space<vmem>>, vector<1x256xf32>
    %c0_i32_32 = arith.constant 0 : i32
    %41 = tpu.dynamic_rotate %40 by %c0_i32_32 dim 1 : vector<1x256xf32>, i32 -> vector<1x256xf32>
    %42 = vector.extract_strided_slice %41 {offsets = [0, 0], sizes = [1, 96], strides = [1, 1]} : vector<1x256xf32> to vector<1x96xf32>
    %c8 = arith.constant 8 : index
    %c0_33 = arith.constant 0 : index
    %43 = vector.load %arg5[%c8, %c0_33] : memref<96x96xf32, #tpu.memory_space<vmem>>, vector<1x96xf32>
    tpu.vector_store %arg5[%c8, %c0_33], %42 {strides = array<i32>} : memref<96x96xf32, #tpu.memory_space<vmem>>, vector<1x96xf32>,
    %c0_34 = arith.constant 0 : index
    %c768_35 = arith.constant 768 : index
    %44 = vector.load %arg4[%c0_34, %c768_35] : memref<16x1024xf32, #tpu.memory_space<vmem>>, vector<1x256xf32>
    %c160_i32_36 = arith.constant 160 : i32
    %45 = tpu.dynamic_rotate %44 by %c160_i32_36 dim 1 : vector<1x256xf32>, i32 -> vector<1x256xf32>
    %46 = vector.extract_strided_slice %45 {offsets = [0, 0], sizes = [1, 96], strides = [1, 1]} : vector<1x256xf32> to vector<1x96xf32>
    %c9 = arith.constant 9 : index
    %c0_37 = arith.constant 0 : index
    %47 = vector.load %arg5[%c9, %c0_37] : memref<96x96xf32, #tpu.memory_space<vmem>>, vector<1x96xf32>
    tpu.vector_store %arg5[%c9, %c0_37], %46 {strides = array<i32>} : memref<96x96xf32, #tpu.memory_space<vmem>>, vector<1x96xf32>,
    %c0_38 = arith.constant 0 : index
    %c768_39 = arith.constant 768 : index
    %48 = vector.load %arg4[%c0_38, %c768_39] : memref<16x1024xf32, #tpu.memory_space<vmem>>, vector<1x256xf32>
    %c64_i32 = arith.constant 64 : i32
    %49 = tpu.dynamic_rotate %48 by %c64_i32 dim 1 : vector<1x256xf32>, i32 -> vector<1x256xf32>
    %50 = vector.extract_strided_slice %49 {offsets = [0, 0], sizes = [1, 96], strides = [1, 1]} : vector<1x256xf32> to vector<1x96xf32>
    %c1_40 = arith.constant 1 : index
    %c0_41 = arith.constant 0 : index
    %51 = vector.load %arg4[%c1_40, %c0_41] : memref<16x1024xf32, #tpu.memory_space<vmem>>, vector<1x256xf32>
    %c64_i32_42 = arith.constant 64 : i32
    %52 = tpu.dynamic_rotate %51 by %c64_i32_42 dim 1 : vector<1x256xf32>, i32 -> vector<1x256xf32>
    %53 = vector.extract_strided_slice %52 {offsets = [0, 0], sizes = [1, 96], strides = [1, 1]} : vector<1x256xf32> to vector<1x96xf32>
    %c64_i32_43 = arith.constant 64 : i32
    %54 = vector.broadcast %c64_i32_43 : i32 to vector<1x96xi32>
    %55 = arith.cmpi slt, %7, %54 : vector<1x96xi32>
    %56 = arith.select %55, %50, %53 : vector<1x96xi1>, vector<1x96xf32>
    %c10 = arith.constant 10 : index
    %c0_44 = arith.constant 0 : index
    %57 = vector.load %arg5[%c10, %c0_44] : memref<96x96xf32, #tpu.memory_space<vmem>>, vector<1x96xf32>
    tpu.vector_store %arg5[%c10, %c0_44], %56 {strides = array<i32>} : memref<96x96xf32, #tpu.memory_space<vmem>>, vector<1x96xf32>,
    %c1_45 = arith.constant 1 : index
    %c0_46 = arith.constant 0 : index
    %58 = vector.load %arg4[%c1_45, %c0_46] : memref<16x1024xf32, #tpu.memory_space<vmem>>, vector<1x256xf32>
    %c224_i32_47 = arith.constant 224 : i32
    %59 = tpu.dynamic_rotate %58 by %c224_i32_47 dim 1 : vector<1x256xf32>, i32 -> vector<1x256xf32>
    %60 = vector.extract_strided_slice %59 {offsets = [0, 0], sizes = [1, 96], strides = [1, 1]} : vector<1x256xf32> to vector<1x96xf32>
    %c11 = arith.constant 11 : index
    %c0_48 = arith.constant 0 : index
    %61 = vector.load %arg5[%c11, %c0_48] : memref<96x96xf32, #tpu.memory_space<vmem>>, vector<1x96xf32>
    tpu.vector_store %arg5[%c11, %c0_48], %60 {strides = array<i32>} : memref<96x96xf32, #tpu.memory_space<vmem>>, vector<1x96xf32>,
    %c1_49 = arith.constant 1 : index
    %c128_50 = arith.constant 128 : index
    %62 = vector.load %arg4[%c1_49, %c128_50] : memref<16x1024xf32, #tpu.memory_space<vmem>>, vector<1x256xf32>
    %c0_i32_51 = arith.constant 0 : i32
    %63 = tpu.dynamic_rotate %62 by %c0_i32_51 dim 1 : vector<1x256xf32>, i32 -> vector<1x256xf32>
    %64 = vector.extract_strided_slice %63 {offsets = [0, 0], sizes = [1, 96], strides = [1, 1]} : vector<1x256xf32> to vector<1x96xf32>
    %c12 = arith.constant 12 : index
    %c0_52 = arith.constant 0 : index
    %65 = vector.load %arg5[%c12, %c0_52] : memref<96x96xf32, #tpu.memory_space<vmem>>, vector<1x96xf32>
    tpu.vector_store %arg5[%c12, %c0_52], %64 {strides = array<i32>} : memref<96x96xf32, #tpu.memory_space<vmem>>, vector<1x96xf32>,
    %c1_53 = arith.constant 1 : index
    %c128_54 = arith.constant 128 : index
    %66 = vector.load %arg4[%c1_53, %c128_54] : memref<16x1024xf32, #tpu.memory_space<vmem>>, vector<1x256xf32>
    %c160_i32_55 = arith.constant 160 : i32
    %67 = tpu.dynamic_rotate %66 by %c160_i32_55 dim 1 : vector<1x256xf32>, i32 -> vector<1x256xf32>
    %68 = vector.extract_strided_slice %67 {offsets = [0, 0], sizes = [1, 96], strides = [1, 1]} : vector<1x256xf32> to vector<1x96xf32>
    %c13 = arith.constant 13 : index
    %c0_56 = arith.constant 0 : index
    %69 = vector.load %arg5[%c13, %c0_56] : memref<96x96xf32, #tpu.memory_space<vmem>>, vector<1x96xf32>
    tpu.vector_store %arg5[%c13, %c0_56], %68 {strides = array<i32>} : memref<96x96xf32, #tpu.memory_space<vmem>>, vector<1x96xf32>,
    %c1_57 = arith.constant 1 : index
    %c256_58 = arith.constant 256 : index
    %70 = vector.load %arg4[%c1_57, %c256_58] : memref<16x1024xf32, #tpu.memory_space<vmem>>, vector<1x256xf32>
    %c192_i32_59 = arith.constant 192 : i32
    %71 = tpu.dynamic_rotate %70 by %c192_i32_59 dim 1 : vector<1x256xf32>, i32 -> vector<1x256xf32>
    %72 = vector.extract_strided_slice %71 {offsets = [0, 0], sizes = [1, 96], strides = [1, 1]} : vector<1x256xf32> to vector<1x96xf32>
    %c14 = arith.constant 14 : index
    %c0_60 = arith.constant 0 : index
    %73 = vector.load %arg5[%c14, %c0_60] : memref<96x96xf32, #tpu.memory_space<vmem>>, vector<1x96xf32>
    tpu.vector_store %arg5[%c14, %c0_60], %72 {strides = array<i32>} : memref<96x96xf32, #tpu.memory_space<vmem>>, vector<1x96xf32>,
    %c1_61 = arith.constant 1 : index
    %c384_62 = arith.constant 384 : index
    %74 = vector.load %arg4[%c1_61, %c384_62] : memref<16x1024xf32, #tpu.memory_space<vmem>>, vector<1x256xf32>
    %c224_i32_63 = arith.constant 224 : i32
    %75 = tpu.dynamic_rotate %74 by %c224_i32_63 dim 1 : vector<1x256xf32>, i32 -> vector<1x256xf32>
    %76 = vector.extract_strided_slice %75 {offsets = [0, 0], sizes = [1, 96], strides = [1, 1]} : vector<1x256xf32> to vector<1x96xf32>
    %c15 = arith.constant 15 : index
    %c0_64 = arith.constant 0 : index
    %77 = vector.load %arg5[%c15, %c0_64] : memref<96x96xf32, #tpu.memory_space<vmem>>, vector<1x96xf32>
    tpu.vector_store %arg5[%c15, %c0_64], %76 {strides = array<i32>} : memref<96x96xf32, #tpu.memory_space<vmem>>, vector<1x96xf32>,
    %c1_65 = arith.constant 1 : index
    %c512_66 = arith.constant 512 : index
    %78 = vector.load %arg4[%c1_65, %c512_66] : memref<16x1024xf32, #tpu.memory_space<vmem>>, vector<1x256xf32>
    %c0_i32_67 = arith.constant 0 : i32
    %79 = tpu.dynamic_rotate %78 by %c0_i32_67 dim 1 : vector<1x256xf32>, i32 -> vector<1x256xf32>
    %80 = vector.extract_strided_slice %79 {offsets = [0, 0], sizes = [1, 96], strides = [1, 1]} : vector<1x256xf32> to vector<1x96xf32>
    %c16 = arith.constant 16 : index
    %c0_68 = arith.constant 0 : index
    %81 = vector.load %arg5[%c16, %c0_68] : memref<96x96xf32, #tpu.memory_space<vmem>>, vector<1x96xf32>
    tpu.vector_store %arg5[%c16, %c0_68], %80 {strides = array<i32>} : memref<96x96xf32, #tpu.memory_space<vmem>>, vector<1x96xf32>,
    %c1_69 = arith.constant 1 : index
    %c512_70 = arith.constant 512 : index
    %82 = vector.load %arg4[%c1_69, %c512_70] : memref<16x1024xf32, #tpu.memory_space<vmem>>, vector<1x256xf32>
    %c160_i32_71 = arith.constant 160 : i32
    %83 = tpu.dynamic_rotate %82 by %c160_i32_71 dim 1 : vector<1x256xf32>, i32 -> vector<1x256xf32>
    %84 = vector.extract_strided_slice %83 {offsets = [0, 0], sizes = [1, 96], strides = [1, 1]} : vector<1x256xf32> to vector<1x96xf32>
    %c17 = arith.constant 17 : index
    %c0_72 = arith.constant 0 : index
    %85 = vector.load %arg5[%c17, %c0_72] : memref<96x96xf32, #tpu.memory_space<vmem>>, vector<1x96xf32>
    tpu.vector_store %arg5[%c17, %c0_72], %84 {strides = array<i32>} : memref<96x96xf32, #tpu.memory_space<vmem>>, vector<1x96xf32>,
    %c1_73 = arith.constant 1 : index
    %c640_74 = arith.constant 640 : index
    %86 = vector.load %arg4[%c1_73, %c640_74] : memref<16x1024xf32, #tpu.memory_space<vmem>>, vector<1x256xf32>
    %c192_i32_75 = arith.constant 192 : i32
    %87 = tpu.dynamic_rotate %86 by %c192_i32_75 dim 1 : vector<1x256xf32>, i32 -> vector<1x256xf32>
    %88 = vector.extract_strided_slice %87 {offsets = [0, 0], sizes = [1, 96], strides = [1, 1]} : vector<1x256xf32> to vector<1x96xf32>
    %c18 = arith.constant 18 : index
    %c0_76 = arith.constant 0 : index
    %89 = vector.load %arg5[%c18, %c0_76] : memref<96x96xf32, #tpu.memory_space<vmem>>, vector<1x96xf32>
    tpu.vector_store %arg5[%c18, %c0_76], %88 {strides = array<i32>} : memref<96x96xf32, #tpu.memory_space<vmem>>, vector<1x96xf32>,
    %c1_77 = arith.constant 1 : index
    %c768_78 = arith.constant 768 : index
    %90 = vector.load %arg4[%c1_77, %c768_78] : memref<16x1024xf32, #tpu.memory_space<vmem>>, vector<1x256xf32>
    %c224_i32_79 = arith.constant 224 : i32
    %91 = tpu.dynamic_rotate %90 by %c224_i32_79 dim 1 : vector<1x256xf32>, i32 -> vector<1x256xf32>
    %92 = vector.extract_strided_slice %91 {offsets = [0, 0], sizes = [1, 96], strides = [1, 1]} : vector<1x256xf32> to vector<1x96xf32>
    %c19 = arith.constant 19 : index
    %c0_80 = arith.constant 0 : index
    %93 = vector.load %arg5[%c19, %c0_80] : memref<96x96xf32, #tpu.memory_space<vmem>>, vector<1x96xf32>
    tpu.vector_store %arg5[%c19, %c0_80], %92 {strides = array<i32>} : memref<96x96xf32, #tpu.memory_space<vmem>>, vector<1x96xf32>,
    %c1_81 = arith.constant 1 : index
    %c768_82 = arith.constant 768 : index
    %94 = vector.load %arg4[%c1_81, %c768_82] : memref<16x1024xf32, #tpu.memory_space<vmem>>, vector<1x256xf32>
    %c128_i32 = arith.constant 128 : i32
    %95 = tpu.dynamic_rotate %94 by %c128_i32 dim 1 : vector<1x256xf32>, i32 -> vector<1x256xf32>
    %96 = vector.extract_strided_slice %95 {offsets = [0, 0], sizes = [1, 96], strides = [1, 1]} : vector<1x256xf32> to vector<1x96xf32>
    %c20 = arith.constant 20 : index
    %c0_83 = arith.constant 0 : index
    %97 = vector.load %arg5[%c20, %c0_83] : memref<96x96xf32, #tpu.memory_space<vmem>>, vector<1x96xf32>
    tpu.vector_store %arg5[%c20, %c0_83], %96 {strides = array<i32>} : memref<96x96xf32, #tpu.memory_space<vmem>>, vector<1x96xf32>,
    %c1_84 = arith.constant 1 : index
    %c768_85 = arith.constant 768 : index
    %98 = vector.load %arg4[%c1_84, %c768_85] : memref<16x1024xf32, #tpu.memory_space<vmem>>, vector<1x256xf32>
    %c32_i32 = arith.constant 32 : i32
    %99 = tpu.dynamic_rotate %98 by %c32_i32 dim 1 : vector<1x256xf32>, i32 -> vector<1x256xf32>
    %100 = vector.extract_strided_slice %99 {offsets = [0, 0], sizes = [1, 96], strides = [1, 1]} : vector<1x256xf32> to vector<1x96xf32>
    %c2_86 = arith.constant 2 : index
    %c0_87 = arith.constant 0 : index
    %101 = vector.load %arg4[%c2_86, %c0_87] : memref<16x1024xf32, #tpu.memory_space<vmem>>, vector<1x256xf32>
    %c32_i32_88 = arith.constant 32 : i32
    %102 = tpu.dynamic_rotate %101 by %c32_i32_88 dim 1 : vector<1x256xf32>, i32 -> vector<1x256xf32>
    %103 = vector.extract_strided_slice %102 {offsets = [0, 0], sizes = [1, 96], strides = [1, 1]} : vector<1x256xf32> to vector<1x96xf32>
    %c32_i32_89 = arith.constant 32 : i32
    %104 = vector.broadcast %c32_i32_89 : i32 to vector<1x96xi32>
    %105 = arith.cmpi slt, %7, %104 : vector<1x96xi32>
    %106 = arith.select %105, %100, %103 : vector<1x96xi1>, vector<1x96xf32>
    %c21 = arith.constant 21 : index
    %c0_90 = arith.constant 0 : index
    %107 = vector.load %arg5[%c21, %c0_90] : memref<96x96xf32, #tpu.memory_space<vmem>>, vector<1x96xf32>
    tpu.vector_store %arg5[%c21, %c0_90], %106 {strides = array<i32>} : memref<96x96xf32, #tpu.memory_space<vmem>>, vector<1x96xf32>,
    %c2_91 = arith.constant 2 : index
    %c0_92 = arith.constant 0 : index
    %108 = vector.load %arg4[%c2_91, %c0_92] : memref<16x1024xf32, #tpu.memory_space<vmem>>, vector<1x256xf32>
    %c192_i32_93 = arith.constant 192 : i32
    %109 = tpu.dynamic_rotate %108 by %c192_i32_93 dim 1 : vector<1x256xf32>, i32 -> vector<1x256xf32>
    %110 = vector.extract_strided_slice %109 {offsets = [0, 0], sizes = [1, 96], strides = [1, 1]} : vector<1x256xf32> to vector<1x96xf32>
    %c22 = arith.constant 22 : index
    %c0_94 = arith.constant 0 : index
    %111 = vector.load %arg5[%c22, %c0_94] : memref<96x96xf32, #tpu.memory_space<vmem>>, vector<1x96xf32>
    tpu.vector_store %arg5[%c22, %c0_94], %110 {strides = array<i32>} : memref<96x96xf32, #tpu.memory_space<vmem>>, vector<1x96xf32>,
    %c2_95 = arith.constant 2 : index
    %c128_96 = arith.constant 128 : index
    %112 = vector.load %arg4[%c2_95, %c128_96] : memref<16x1024xf32, #tpu.memory_space<vmem>>, vector<1x256xf32>
    %c224_i32_97 = arith.constant 224 : i32
    %113 = tpu.dynamic_rotate %112 by %c224_i32_97 dim 1 : vector<1x256xf32>, i32 -> vector<1x256xf32>
    %114 = vector.extract_strided_slice %113 {offsets = [0, 0], sizes = [1, 96], strides = [1, 1]} : vector<1x256xf32> to vector<1x96xf32>
    %c23 = arith.constant 23 : index
    %c0_98 = arith.constant 0 : index
    %115 = vector.load %arg5[%c23, %c0_98] : memref<96x96xf32, #tpu.memory_space<vmem>>, vector<1x96xf32>
    tpu.vector_store %arg5[%c23, %c0_98], %114 {strides = array<i32>} : memref<96x96xf32, #tpu.memory_space<vmem>>, vector<1x96xf32>,
    %c2_99 = arith.constant 2 : index
    %c256_100 = arith.constant 256 : index
    %116 = vector.load %arg4[%c2_99, %c256_100] : memref<16x1024xf32, #tpu.memory_space<vmem>>, vector<1x256xf32>
    %c0_i32_101 = arith.constant 0 : i32
    %117 = tpu.dynamic_rotate %116 by %c0_i32_101 dim 1 : vector<1x256xf32>, i32 -> vector<1x256xf32>
    %118 = vector.extract_strided_slice %117 {offsets = [0, 0], sizes = [1, 96], strides = [1, 1]} : vector<1x256xf32> to vector<1x96xf32>
    %c24 = arith.constant 24 : index
    %c0_102 = arith.constant 0 : index
    %119 = vector.load %arg5[%c24, %c0_102] : memref<96x96xf32, #tpu.memory_space<vmem>>, vector<1x96xf32>
    tpu.vector_store %arg5[%c24, %c0_102], %118 {strides = array<i32>} : memref<96x96xf32, #tpu.memory_space<vmem>>, vector<1x96xf32>,
    %c2_103 = arith.constant 2 : index
    %c256_104 = arith.constant 256 : index
    %120 = vector.load %arg4[%c2_103, %c256_104] : memref<16x1024xf32, #tpu.memory_space<vmem>>, vector<1x256xf32>
    %c160_i32_105 = arith.constant 160 : i32
    %121 = tpu.dynamic_rotate %120 by %c160_i32_105 dim 1 : vector<1x256xf32>, i32 -> vector<1x256xf32>
    %122 = vector.extract_strided_slice %121 {offsets = [0, 0], sizes = [1, 96], strides = [1, 1]} : vector<1x256xf32> to vector<1x96xf32>
    %c25 = arith.constant 25 : index
    %c0_106 = arith.constant 0 : index
    %123 = vector.load %arg5[%c25, %c0_106] : memref<96x96xf32, #tpu.memory_space<vmem>>, vector<1x96xf32>
    tpu.vector_store %arg5[%c25, %c0_106], %122 {strides = array<i32>} : memref<96x96xf32, #tpu.memory_space<vmem>>, vector<1x96xf32>,
    %c2_107 = arith.constant 2 : index
    %c384_108 = arith.constant 384 : index
    %124 = vector.load %arg4[%c2_107, %c384_108] : memref<16x1024xf32, #tpu.memory_space<vmem>>, vector<1x256xf32>
    %c192_i32_109 = arith.constant 192 : i32
    %125 = tpu.dynamic_rotate %124 by %c192_i32_109 dim 1 : vector<1x256xf32>, i32 -> vector<1x256xf32>
    %126 = vector.extract_strided_slice %125 {offsets = [0, 0], sizes = [1, 96], strides = [1, 1]} : vector<1x256xf32> to vector<1x96xf32>
    %c26 = arith.constant 26 : index
    %c0_110 = arith.constant 0 : index
    %127 = vector.load %arg5[%c26, %c0_110] : memref<96x96xf32, #tpu.memory_space<vmem>>, vector<1x96xf32>
    tpu.vector_store %arg5[%c26, %c0_110], %126 {strides = array<i32>} : memref<96x96xf32, #tpu.memory_space<vmem>>, vector<1x96xf32>,
    %c2_111 = arith.constant 2 : index
    %c512_112 = arith.constant 512 : index
    %128 = vector.load %arg4[%c2_111, %c512_112] : memref<16x1024xf32, #tpu.memory_space<vmem>>, vector<1x256xf32>
    %c224_i32_113 = arith.constant 224 : i32
    %129 = tpu.dynamic_rotate %128 by %c224_i32_113 dim 1 : vector<1x256xf32>, i32 -> vector<1x256xf32>
    %130 = vector.extract_strided_slice %129 {offsets = [0, 0], sizes = [1, 96], strides = [1, 1]} : vector<1x256xf32> to vector<1x96xf32>
    %c27 = arith.constant 27 : index
    %c0_114 = arith.constant 0 : index
    %131 = vector.load %arg5[%c27, %c0_114] : memref<96x96xf32, #tpu.memory_space<vmem>>, vector<1x96xf32>
    tpu.vector_store %arg5[%c27, %c0_114], %130 {strides = array<i32>} : memref<96x96xf32, #tpu.memory_space<vmem>>, vector<1x96xf32>,
    %c2_115 = arith.constant 2 : index
    %c640_116 = arith.constant 640 : index
    %132 = vector.load %arg4[%c2_115, %c640_116] : memref<16x1024xf32, #tpu.memory_space<vmem>>, vector<1x256xf32>
    %c0_i32_117 = arith.constant 0 : i32
    %133 = tpu.dynamic_rotate %132 by %c0_i32_117 dim 1 : vector<1x256xf32>, i32 -> vector<1x256xf32>
    %134 = vector.extract_strided_slice %133 {offsets = [0, 0], sizes = [1, 96], strides = [1, 1]} : vector<1x256xf32> to vector<1x96xf32>
    %c28 = arith.constant 28 : index
    %c0_118 = arith.constant 0 : index
    %135 = vector.load %arg5[%c28, %c0_118] : memref<96x96xf32, #tpu.memory_space<vmem>>, vector<1x96xf32>
    tpu.vector_store %arg5[%c28, %c0_118], %134 {strides = array<i32>} : memref<96x96xf32, #tpu.memory_space<vmem>>, vector<1x96xf32>,
    %c2_119 = arith.constant 2 : index
    %c640_120 = arith.constant 640 : index
    %136 = vector.load %arg4[%c2_119, %c640_120] : memref<16x1024xf32, #tpu.memory_space<vmem>>, vector<1x256xf32>
    %c160_i32_121 = arith.constant 160 : i32
    %137 = tpu.dynamic_rotate %136 by %c160_i32_121 dim 1 : vector<1x256xf32>, i32 -> vector<1x256xf32>
    %138 = vector.extract_strided_slice %137 {offsets = [0, 0], sizes = [1, 96], strides = [1, 1]} : vector<1x256xf32> to vector<1x96xf32>
    %c29 = arith.constant 29 : index
    %c0_122 = arith.constant 0 : index
    %139 = vector.load %arg5[%c29, %c0_122] : memref<96x96xf32, #tpu.memory_space<vmem>>, vector<1x96xf32>
    tpu.vector_store %arg5[%c29, %c0_122], %138 {strides = array<i32>} : memref<96x96xf32, #tpu.memory_space<vmem>>, vector<1x96xf32>,
    %c2_123 = arith.constant 2 : index
    %c768_124 = arith.constant 768 : index
    %140 = vector.load %arg4[%c2_123, %c768_124] : memref<16x1024xf32, #tpu.memory_space<vmem>>, vector<1x256xf32>
    %c192_i32_125 = arith.constant 192 : i32
    %141 = tpu.dynamic_rotate %140 by %c192_i32_125 dim 1 : vector<1x256xf32>, i32 -> vector<1x256xf32>
    %142 = vector.extract_strided_slice %141 {offsets = [0, 0], sizes = [1, 96], strides = [1, 1]} : vector<1x256xf32> to vector<1x96xf32>
    %c30 = arith.constant 30 : index
    %c0_126 = arith.constant 0 : index
    %143 = vector.load %arg5[%c30, %c0_126] : memref<96x96xf32, #tpu.memory_space<vmem>>, vector<1x96xf32>
    tpu.vector_store %arg5[%c30, %c0_126], %142 {strides = array<i32>} : memref<96x96xf32, #tpu.memory_space<vmem>>, vector<1x96xf32>,
    %c2_127 = arith.constant 2 : index
    %c768_128 = arith.constant 768 : index
    %144 = vector.load %arg4[%c2_127, %c768_128] : memref<16x1024xf32, #tpu.memory_space<vmem>>, vector<1x256xf32>
    %c96_i32 = arith.constant 96 : i32
    %145 = tpu.dynamic_rotate %144 by %c96_i32 dim 1 : vector<1x256xf32>, i32 -> vector<1x256xf32>
    %146 = vector.extract_strided_slice %145 {offsets = [0, 0], sizes = [1, 96], strides = [1, 1]} : vector<1x256xf32> to vector<1x96xf32>
    %c31 = arith.constant 31 : index
    %c0_129 = arith.constant 0 : index
    %147 = vector.load %arg5[%c31, %c0_129] : memref<96x96xf32, #tpu.memory_space<vmem>>, vector<1x96xf32>
    tpu.vector_store %arg5[%c31, %c0_129], %146 {strides = array<i32>} : memref<96x96xf32, #tpu.memory_space<vmem>>, vector<1x96xf32>,
    %c3_130 = arith.constant 3 : index
    %c0_131 = arith.constant 0 : index
    %148 = vector.load %arg4[%c3_130, %c0_131] : memref<16x1024xf32, #tpu.memory_space<vmem>>, vector<1x256xf32>
    %c0_i32_132 = arith.constant 0 : i32
    %149 = tpu.dynamic_rotate %148 by %c0_i32_132 dim 1 : vector<1x256xf32>, i32 -> vector<1x256xf32>
    %150 = vector.extract_strided_slice %149 {offsets = [0, 0], sizes = [1, 96], strides = [1, 1]} : vector<1x256xf32> to vector<1x96xf32>
    %c32 = arith.constant 32 : index
    %c0_133 = arith.constant 0 : index
    %151 = vector.load %arg5[%c32, %c0_133] : memref<96x96xf32, #tpu.memory_space<vmem>>, vector<1x96xf32>
    tpu.vector_store %arg5[%c32, %c0_133], %150 {strides = array<i32>} : memref<96x96xf32, #tpu.memory_space<vmem>>, vector<1x96xf32>,
    %c3_134 = arith.constant 3 : index
    %c0_135 = arith.constant 0 : index
    %152 = vector.load %arg4[%c3_134, %c0_135] : memref<16x1024xf32, #tpu.memory_space<vmem>>, vector<1x256xf32>
    %c160_i32_136 = arith.constant 160 : i32
    %153 = tpu.dynamic_rotate %152 by %c160_i32_136 dim 1 : vector<1x256xf32>, i32 -> vector<1x256xf32>
    %154 = vector.extract_strided_slice %153 {offsets = [0, 0], sizes = [1, 96], strides = [1, 1]} : vector<1x256xf32> to vector<1x96xf32>
    %c33 = arith.constant 33 : index
    %c0_137 = arith.constant 0 : index
    %155 = vector.load %arg5[%c33, %c0_137] : memref<96x96xf32, #tpu.memory_space<vmem>>, vector<1x96xf32>
    tpu.vector_store %arg5[%c33, %c0_137], %154 {strides = array<i32>} : memref<96x96xf32, #tpu.memory_space<vmem>>, vector<1x96xf32>,
    %c3_138 = arith.constant 3 : index
    %c128_139 = arith.constant 128 : index
    %156 = vector.load %arg4[%c3_138, %c128_139] : memref<16x1024xf32, #tpu.memory_space<vmem>>, vector<1x256xf32>
    %c192_i32_140 = arith.constant 192 : i32
    %157 = tpu.dynamic_rotate %156 by %c192_i32_140 dim 1 : vector<1x256xf32>, i32 -> vector<1x256xf32>
    %158 = vector.extract_strided_slice %157 {offsets = [0, 0], sizes = [1, 96], strides = [1, 1]} : vector<1x256xf32> to vector<1x96xf32>
    %c34 = arith.constant 34 : index
    %c0_141 = arith.constant 0 : index
    %159 = vector.load %arg5[%c34, %c0_141] : memref<96x96xf32, #tpu.memory_space<vmem>>, vector<1x96xf32>
    tpu.vector_store %arg5[%c34, %c0_141], %158 {strides = array<i32>} : memref<96x96xf32, #tpu.memory_space<vmem>>, vector<1x96xf32>,
    %c3_142 = arith.constant 3 : index
    %c256_143 = arith.constant 256 : index
    %160 = vector.load %arg4[%c3_142, %c256_143] : memref<16x1024xf32, #tpu.memory_space<vmem>>, vector<1x256xf32>
    %c224_i32_144 = arith.constant 224 : i32
    %161 = tpu.dynamic_rotate %160 by %c224_i32_144 dim 1 : vector<1x256xf32>, i32 -> vector<1x256xf32>
    %162 = vector.extract_strided_slice %161 {offsets = [0, 0], sizes = [1, 96], strides = [1, 1]} : vector<1x256xf32> to vector<1x96xf32>
    %c35 = arith.constant 35 : index
    %c0_145 = arith.constant 0 : index
    %163 = vector.load %arg5[%c35, %c0_145] : memref<96x96xf32, #tpu.memory_space<vmem>>, vector<1x96xf32>
    tpu.vector_store %arg5[%c35, %c0_145], %162 {strides = array<i32>} : memref<96x96xf32, #tpu.memory_space<vmem>>, vector<1x96xf32>,
    %c3_146 = arith.constant 3 : index
    %c384_147 = arith.constant 384 : index
    %164 = vector.load %arg4[%c3_146, %c384_147] : memref<16x1024xf32, #tpu.memory_space<vmem>>, vector<1x256xf32>
    %c0_i32_148 = arith.constant 0 : i32
    %165 = tpu.dynamic_rotate %164 by %c0_i32_148 dim 1 : vector<1x256xf32>, i32 -> vector<1x256xf32>
    %166 = vector.extract_strided_slice %165 {offsets = [0, 0], sizes = [1, 96], strides = [1, 1]} : vector<1x256xf32> to vector<1x96xf32>
    %c36 = arith.constant 36 : index
    %c0_149 = arith.constant 0 : index
    %167 = vector.load %arg5[%c36, %c0_149] : memref<96x96xf32, #tpu.memory_space<vmem>>, vector<1x96xf32>
    tpu.vector_store %arg5[%c36, %c0_149], %166 {strides = array<i32>} : memref<96x96xf32, #tpu.memory_space<vmem>>, vector<1x96xf32>,
    %c3_150 = arith.constant 3 : index
    %c384_151 = arith.constant 384 : index
    %168 = vector.load %arg4[%c3_150, %c384_151] : memref<16x1024xf32, #tpu.memory_space<vmem>>, vector<1x256xf32>
    %c160_i32_152 = arith.constant 160 : i32
    %169 = tpu.dynamic_rotate %168 by %c160_i32_152 dim 1 : vector<1x256xf32>, i32 -> vector<1x256xf32>
    %170 = vector.extract_strided_slice %169 {offsets = [0, 0], sizes = [1, 96], strides = [1, 1]} : vector<1x256xf32> to vector<1x96xf32>
    %c37 = arith.constant 37 : index
    %c0_153 = arith.constant 0 : index
    %171 = vector.load %arg5[%c37, %c0_153] : memref<96x96xf32, #tpu.memory_space<vmem>>, vector<1x96xf32>
    tpu.vector_store %arg5[%c37, %c0_153], %170 {strides = array<i32>} : memref<96x96xf32, #tpu.memory_space<vmem>>, vector<1x96xf32>,
    %c3_154 = arith.constant 3 : index
    %c512_155 = arith.constant 512 : index
    %172 = vector.load %arg4[%c3_154, %c512_155] : memref<16x1024xf32, #tpu.memory_space<vmem>>, vector<1x256xf32>
    %c192_i32_156 = arith.constant 192 : i32
    %173 = tpu.dynamic_rotate %172 by %c192_i32_156 dim 1 : vector<1x256xf32>, i32 -> vector<1x256xf32>
    %174 = vector.extract_strided_slice %173 {offsets = [0, 0], sizes = [1, 96], strides = [1, 1]} : vector<1x256xf32> to vector<1x96xf32>
    %c38 = arith.constant 38 : index
    %c0_157 = arith.constant 0 : index
    %175 = vector.load %arg5[%c38, %c0_157] : memref<96x96xf32, #tpu.memory_space<vmem>>, vector<1x96xf32>
    tpu.vector_store %arg5[%c38, %c0_157], %174 {strides = array<i32>} : memref<96x96xf32, #tpu.memory_space<vmem>>, vector<1x96xf32>,
    %c3_158 = arith.constant 3 : index
    %c640_159 = arith.constant 640 : index
    %176 = vector.load %arg4[%c3_158, %c640_159] : memref<16x1024xf32, #tpu.memory_space<vmem>>, vector<1x256xf32>
    %c224_i32_160 = arith.constant 224 : i32
    %177 = tpu.dynamic_rotate %176 by %c224_i32_160 dim 1 : vector<1x256xf32>, i32 -> vector<1x256xf32>
    %178 = vector.extract_strided_slice %177 {offsets = [0, 0], sizes = [1, 96], strides = [1, 1]} : vector<1x256xf32> to vector<1x96xf32>
    %c39 = arith.constant 39 : index
    %c0_161 = arith.constant 0 : index
    %179 = vector.load %arg5[%c39, %c0_161] : memref<96x96xf32, #tpu.memory_space<vmem>>, vector<1x96xf32>
    tpu.vector_store %arg5[%c39, %c0_161], %178 {strides = array<i32>} : memref<96x96xf32, #tpu.memory_space<vmem>>, vector<1x96xf32>,
    %c3_162 = arith.constant 3 : index
    %c768_163 = arith.constant 768 : index
    %180 = vector.load %arg4[%c3_162, %c768_163] : memref<16x1024xf32, #tpu.memory_space<vmem>>, vector<1x256xf32>
    %c0_i32_164 = arith.constant 0 : i32
    %181 = tpu.dynamic_rotate %180 by %c0_i32_164 dim 1 : vector<1x256xf32>, i32 -> vector<1x256xf32>
    %182 = vector.extract_strided_slice %181 {offsets = [0, 0], sizes = [1, 96], strides = [1, 1]} : vector<1x256xf32> to vector<1x96xf32>
    %c40 = arith.constant 40 : index
    %c0_165 = arith.constant 0 : index
    %183 = vector.load %arg5[%c40, %c0_165] : memref<96x96xf32, #tpu.memory_space<vmem>>, vector<1x96xf32>
    tpu.vector_store %arg5[%c40, %c0_165], %182 {strides = array<i32>} : memref<96x96xf32, #tpu.memory_space<vmem>>, vector<1x96xf32>,
    %c3_166 = arith.constant 3 : index
    %c768_167 = arith.constant 768 : index
    %184 = vector.load %arg4[%c3_166, %c768_167] : memref<16x1024xf32, #tpu.memory_space<vmem>>, vector<1x256xf32>
    %c160_i32_168 = arith.constant 160 : i32
    %185 = tpu.dynamic_rotate %184 by %c160_i32_168 dim 1 : vector<1x256xf32>, i32 -> vector<1x256xf32>
    %186 = vector.extract_strided_slice %185 {offsets = [0, 0], sizes = [1, 96], strides = [1, 1]} : vector<1x256xf32> to vector<1x96xf32>
    %c41 = arith.constant 41 : index
    %c0_169 = arith.constant 0 : index
    %187 = vector.load %arg5[%c41, %c0_169] : memref<96x96xf32, #tpu.memory_space<vmem>>, vector<1x96xf32>
    tpu.vector_store %arg5[%c41, %c0_169], %186 {strides = array<i32>} : memref<96x96xf32, #tpu.memory_space<vmem>>, vector<1x96xf32>,
    %c3_170 = arith.constant 3 : index
    %c768_171 = arith.constant 768 : index
    %188 = vector.load %arg4[%c3_170, %c768_171] : memref<16x1024xf32, #tpu.memory_space<vmem>>, vector<1x256xf32>
    %c64_i32_172 = arith.constant 64 : i32
    %189 = tpu.dynamic_rotate %188 by %c64_i32_172 dim 1 : vector<1x256xf32>, i32 -> vector<1x256xf32>
    %190 = vector.extract_strided_slice %189 {offsets = [0, 0], sizes = [1, 96], strides = [1, 1]} : vector<1x256xf32> to vector<1x96xf32>
    %c4_173 = arith.constant 4 : index
    %c0_174 = arith.constant 0 : index
    %191 = vector.load %arg4[%c4_173, %c0_174] : memref<16x1024xf32, #tpu.memory_space<vmem>>, vector<1x256xf32>
    %c64_i32_175 = arith.constant 64 : i32
    %192 = tpu.dynamic_rotate %191 by %c64_i32_175 dim 1 : vector<1x256xf32>, i32 -> vector<1x256xf32>
    %193 = vector.extract_strided_slice %192 {offsets = [0, 0], sizes = [1, 96], strides = [1, 1]} : vector<1x256xf32> to vector<1x96xf32>
    %c64_i32_176 = arith.constant 64 : i32
    %194 = vector.broadcast %c64_i32_176 : i32 to vector<1x96xi32>
    %195 = arith.cmpi slt, %7, %194 : vector<1x96xi32>
    %196 = arith.select %195, %190, %193 : vector<1x96xi1>, vector<1x96xf32>
    %c42 = arith.constant 42 : index
    %c0_177 = arith.constant 0 : index
    %197 = vector.load %arg5[%c42, %c0_177] : memref<96x96xf32, #tpu.memory_space<vmem>>, vector<1x96xf32>
    tpu.vector_store %arg5[%c42, %c0_177], %196 {strides = array<i32>} : memref<96x96xf32, #tpu.memory_space<vmem>>, vector<1x96xf32>,
    %c4_178 = arith.constant 4 : index
    %c0_179 = arith.constant 0 : index
    %198 = vector.load %arg4[%c4_178, %c0_179] : memref<16x1024xf32, #tpu.memory_space<vmem>>, vector<1x256xf32>
    %c224_i32_180 = arith.constant 224 : i32
    %199 = tpu.dynamic_rotate %198 by %c224_i32_180 dim 1 : vector<1x256xf32>, i32 -> vector<1x256xf32>
    %200 = vector.extract_strided_slice %199 {offsets = [0, 0], sizes = [1, 96], strides = [1, 1]} : vector<1x256xf32> to vector<1x96xf32>
    %c43 = arith.constant 43 : index
    %c0_181 = arith.constant 0 : index
    %201 = vector.load %arg5[%c43, %c0_181] : memref<96x96xf32, #tpu.memory_space<vmem>>, vector<1x96xf32>
    tpu.vector_store %arg5[%c43, %c0_181], %200 {strides = array<i32>} : memref<96x96xf32, #tpu.memory_space<vmem>>, vector<1x96xf32>,
    %c4_182 = arith.constant 4 : index
    %c128_183 = arith.constant 128 : index
    %202 = vector.load %arg4[%c4_182, %c128_183] : memref<16x1024xf32, #tpu.memory_space<vmem>>, vector<1x256xf32>
    %c0_i32_184 = arith.constant 0 : i32
    %203 = tpu.dynamic_rotate %202 by %c0_i32_184 dim 1 : vector<1x256xf32>, i32 -> vector<1x256xf32>
    %204 = vector.extract_strided_slice %203 {offsets = [0, 0], sizes = [1, 96], strides = [1, 1]} : vector<1x256xf32> to vector<1x96xf32>
    %c44 = arith.constant 44 : index
    %c0_185 = arith.constant 0 : index
    %205 = vector.load %arg5[%c44, %c0_185] : memref<96x96xf32, #tpu.memory_space<vmem>>, vector<1x96xf32>
    tpu.vector_store %arg5[%c44, %c0_185], %204 {strides = array<i32>} : memref<96x96xf32, #tpu.memory_space<vmem>>, vector<1x96xf32>,
    %c4_186 = arith.constant 4 : index
    %c128_187 = arith.constant 128 : index
    %206 = vector.load %arg4[%c4_186, %c128_187] : memref<16x1024xf32, #tpu.memory_space<vmem>>, vector<1x256xf32>
    %c160_i32_188 = arith.constant 160 : i32
    %207 = tpu.dynamic_rotate %206 by %c160_i32_188 dim 1 : vector<1x256xf32>, i32 -> vector<1x256xf32>
    %208 = vector.extract_strided_slice %207 {offsets = [0, 0], sizes = [1, 96], strides = [1, 1]} : vector<1x256xf32> to vector<1x96xf32>
    %c45 = arith.constant 45 : index
    %c0_189 = arith.constant 0 : index
    %209 = vector.load %arg5[%c45, %c0_189] : memref<96x96xf32, #tpu.memory_space<vmem>>, vector<1x96xf32>
    tpu.vector_store %arg5[%c45, %c0_189], %208 {strides = array<i32>} : memref<96x96xf32, #tpu.memory_space<vmem>>, vector<1x96xf32>,
    %c4_190 = arith.constant 4 : index
    %c256_191 = arith.constant 256 : index
    %210 = vector.load %arg4[%c4_190, %c256_191] : memref<16x1024xf32, #tpu.memory_space<vmem>>, vector<1x256xf32>
    %c192_i32_192 = arith.constant 192 : i32
    %211 = tpu.dynamic_rotate %210 by %c192_i32_192 dim 1 : vector<1x256xf32>, i32 -> vector<1x256xf32>
    %212 = vector.extract_strided_slice %211 {offsets = [0, 0], sizes = [1, 96], strides = [1, 1]} : vector<1x256xf32> to vector<1x96xf32>
    %c46 = arith.constant 46 : index
    %c0_193 = arith.constant 0 : index
    %213 = vector.load %arg5[%c46, %c0_193] : memref<96x96xf32, #tpu.memory_space<vmem>>, vector<1x96xf32>
    tpu.vector_store %arg5[%c46, %c0_193], %212 {strides = array<i32>} : memref<96x96xf32, #tpu.memory_space<vmem>>, vector<1x96xf32>,
    %c4_194 = arith.constant 4 : index
    %c384_195 = arith.constant 384 : index
    %214 = vector.load %arg4[%c4_194, %c384_195] : memref<16x1024xf32, #tpu.memory_space<vmem>>, vector<1x256xf32>
    %c224_i32_196 = arith.constant 224 : i32
    %215 = tpu.dynamic_rotate %214 by %c224_i32_196 dim 1 : vector<1x256xf32>, i32 -> vector<1x256xf32>
    %216 = vector.extract_strided_slice %215 {offsets = [0, 0], sizes = [1, 96], strides = [1, 1]} : vector<1x256xf32> to vector<1x96xf32>
    %c47 = arith.constant 47 : index
    %c0_197 = arith.constant 0 : index
    %217 = vector.load %arg5[%c47, %c0_197] : memref<96x96xf32, #tpu.memory_space<vmem>>, vector<1x96xf32>
    tpu.vector_store %arg5[%c47, %c0_197], %216 {strides = array<i32>} : memref<96x96xf32, #tpu.memory_space<vmem>>, vector<1x96xf32>,
    %c4_198 = arith.constant 4 : index
    %c512_199 = arith.constant 512 : index
    %218 = vector.load %arg4[%c4_198, %c512_199] : memref<16x1024xf32, #tpu.memory_space<vmem>>, vector<1x256xf32>
    %c0_i32_200 = arith.constant 0 : i32
    %219 = tpu.dynamic_rotate %218 by %c0_i32_200 dim 1 : vector<1x256xf32>, i32 -> vector<1x256xf32>
    %220 = vector.extract_strided_slice %219 {offsets = [0, 0], sizes = [1, 96], strides = [1, 1]} : vector<1x256xf32> to vector<1x96xf32>
    %c48 = arith.constant 48 : index
    %c0_201 = arith.constant 0 : index
    %221 = vector.load %arg5[%c48, %c0_201] : memref<96x96xf32, #tpu.memory_space<vmem>>, vector<1x96xf32>
    tpu.vector_store %arg5[%c48, %c0_201], %220 {strides = array<i32>} : memref<96x96xf32, #tpu.memory_space<vmem>>, vector<1x96xf32>,
    %c4_202 = arith.constant 4 : index
    %c512_203 = arith.constant 512 : index
    %222 = vector.load %arg4[%c4_202, %c512_203] : memref<16x1024xf32, #tpu.memory_space<vmem>>, vector<1x256xf32>
    %c160_i32_204 = arith.constant 160 : i32
    %223 = tpu.dynamic_rotate %222 by %c160_i32_204 dim 1 : vector<1x256xf32>, i32 -> vector<1x256xf32>
    %224 = vector.extract_strided_slice %223 {offsets = [0, 0], sizes = [1, 96], strides = [1, 1]} : vector<1x256xf32> to vector<1x96xf32>
    %c49 = arith.constant 49 : index
    %c0_205 = arith.constant 0 : index
    %225 = vector.load %arg5[%c49, %c0_205] : memref<96x96xf32, #tpu.memory_space<vmem>>, vector<1x96xf32>
    tpu.vector_store %arg5[%c49, %c0_205], %224 {strides = array<i32>} : memref<96x96xf32, #tpu.memory_space<vmem>>, vector<1x96xf32>,
    %c4_206 = arith.constant 4 : index
    %c640_207 = arith.constant 640 : index
    %226 = vector.load %arg4[%c4_206, %c640_207] : memref<16x1024xf32, #tpu.memory_space<vmem>>, vector<1x256xf32>
    %c192_i32_208 = arith.constant 192 : i32
    %227 = tpu.dynamic_rotate %226 by %c192_i32_208 dim 1 : vector<1x256xf32>, i32 -> vector<1x256xf32>
    %228 = vector.extract_strided_slice %227 {offsets = [0, 0], sizes = [1, 96], strides = [1, 1]} : vector<1x256xf32> to vector<1x96xf32>
    %c50 = arith.constant 50 : index
    %c0_209 = arith.constant 0 : index
    %229 = vector.load %arg5[%c50, %c0_209] : memref<96x96xf32, #tpu.memory_space<vmem>>, vector<1x96xf32>
    tpu.vector_store %arg5[%c50, %c0_209], %228 {strides = array<i32>} : memref<96x96xf32, #tpu.memory_space<vmem>>, vector<1x96xf32>,
    %c4_210 = arith.constant 4 : index
    %c768_211 = arith.constant 768 : index
    %230 = vector.load %arg4[%c4_210, %c768_211] : memref<16x1024xf32, #tpu.memory_space<vmem>>, vector<1x256xf32>
    %c224_i32_212 = arith.constant 224 : i32
    %231 = tpu.dynamic_rotate %230 by %c224_i32_212 dim 1 : vector<1x256xf32>, i32 -> vector<1x256xf32>
    %232 = vector.extract_strided_slice %231 {offsets = [0, 0], sizes = [1, 96], strides = [1, 1]} : vector<1x256xf32> to vector<1x96xf32>
    %c51 = arith.constant 51 : index
    %c0_213 = arith.constant 0 : index
    %233 = vector.load %arg5[%c51, %c0_213] : memref<96x96xf32, #tpu.memory_space<vmem>>, vector<1x96xf32>
    tpu.vector_store %arg5[%c51, %c0_213], %232 {strides = array<i32>} : memref<96x96xf32, #tpu.memory_space<vmem>>, vector<1x96xf32>,
    %c4_214 = arith.constant 4 : index
    %c768_215 = arith.constant 768 : index
    %234 = vector.load %arg4[%c4_214, %c768_215] : memref<16x1024xf32, #tpu.memory_space<vmem>>, vector<1x256xf32>
    %c128_i32_216 = arith.constant 128 : i32
    %235 = tpu.dynamic_rotate %234 by %c128_i32_216 dim 1 : vector<1x256xf32>, i32 -> vector<1x256xf32>
    %236 = vector.extract_strided_slice %235 {offsets = [0, 0], sizes = [1, 96], strides = [1, 1]} : vector<1x256xf32> to vector<1x96xf32>
    %c52 = arith.constant 52 : index
    %c0_217 = arith.constant 0 : index
    %237 = vector.load %arg5[%c52, %c0_217] : memref<96x96xf32, #tpu.memory_space<vmem>>, vector<1x96xf32>
    tpu.vector_store %arg5[%c52, %c0_217], %236 {strides = array<i32>} : memref<96x96xf32, #tpu.memory_space<vmem>>, vector<1x96xf32>,
    %c4_218 = arith.constant 4 : index
    %c768_219 = arith.constant 768 : index
    %238 = vector.load %arg4[%c4_218, %c768_219] : memref<16x1024xf32, #tpu.memory_space<vmem>>, vector<1x256xf32>
    %c32_i32_220 = arith.constant 32 : i32
    %239 = tpu.dynamic_rotate %238 by %c32_i32_220 dim 1 : vector<1x256xf32>, i32 -> vector<1x256xf32>
    %240 = vector.extract_strided_slice %239 {offsets = [0, 0], sizes = [1, 96], strides = [1, 1]} : vector<1x256xf32> to vector<1x96xf32>
    %c5_221 = arith.constant 5 : index
    %c0_222 = arith.constant 0 : index
    %241 = vector.load %arg4[%c5_221, %c0_222] : memref<16x1024xf32, #tpu.memory_space<vmem>>, vector<1x256xf32>
    %c32_i32_223 = arith.constant 32 : i32
    %242 = tpu.dynamic_rotate %241 by %c32_i32_223 dim 1 : vector<1x256xf32>, i32 -> vector<1x256xf32>
    %243 = vector.extract_strided_slice %242 {offsets = [0, 0], sizes = [1, 96], strides = [1, 1]} : vector<1x256xf32> to vector<1x96xf32>
    %c32_i32_224 = arith.constant 32 : i32
    %244 = vector.broadcast %c32_i32_224 : i32 to vector<1x96xi32>
    %245 = arith.cmpi slt, %7, %244 : vector<1x96xi32>
    %246 = arith.select %245, %240, %243 : vector<1x96xi1>, vector<1x96xf32>
    %c53 = arith.constant 53 : index
    %c0_225 = arith.constant 0 : index
    %247 = vector.load %arg5[%c53, %c0_225] : memref<96x96xf32, #tpu.memory_space<vmem>>, vector<1x96xf32>
    tpu.vector_store %arg5[%c53, %c0_225], %246 {strides = array<i32>} : memref<96x96xf32, #tpu.memory_space<vmem>>, vector<1x96xf32>,
    %c5_226 = arith.constant 5 : index
    %c0_227 = arith.constant 0 : index
    %248 = vector.load %arg4[%c5_226, %c0_227] : memref<16x1024xf32, #tpu.memory_space<vmem>>, vector<1x256xf32>
    %c192_i32_228 = arith.constant 192 : i32
    %249 = tpu.dynamic_rotate %248 by %c192_i32_228 dim 1 : vector<1x256xf32>, i32 -> vector<1x256xf32>
    %250 = vector.extract_strided_slice %249 {offsets = [0, 0], sizes = [1, 96], strides = [1, 1]} : vector<1x256xf32> to vector<1x96xf32>
    %c54 = arith.constant 54 : index
    %c0_229 = arith.constant 0 : index
    %251 = vector.load %arg5[%c54, %c0_229] : memref<96x96xf32, #tpu.memory_space<vmem>>, vector<1x96xf32>
    tpu.vector_store %arg5[%c54, %c0_229], %250 {strides = array<i32>} : memref<96x96xf32, #tpu.memory_space<vmem>>, vector<1x96xf32>,
    %c5_230 = arith.constant 5 : index
    %c128_231 = arith.constant 128 : index
    %252 = vector.load %arg4[%c5_230, %c128_231] : memref<16x1024xf32, #tpu.memory_space<vmem>>, vector<1x256xf32>
    %c224_i32_232 = arith.constant 224 : i32
    %253 = tpu.dynamic_rotate %252 by %c224_i32_232 dim 1 : vector<1x256xf32>, i32 -> vector<1x256xf32>
    %254 = vector.extract_strided_slice %253 {offsets = [0, 0], sizes = [1, 96], strides = [1, 1]} : vector<1x256xf32> to vector<1x96xf32>
    %c55 = arith.constant 55 : index
    %c0_233 = arith.constant 0 : index
    %255 = vector.load %arg5[%c55, %c0_233] : memref<96x96xf32, #tpu.memory_space<vmem>>, vector<1x96xf32>
    tpu.vector_store %arg5[%c55, %c0_233], %254 {strides = array<i32>} : memref<96x96xf32, #tpu.memory_space<vmem>>, vector<1x96xf32>,
    %c5_234 = arith.constant 5 : index
    %c256_235 = arith.constant 256 : index
    %256 = vector.load %arg4[%c5_234, %c256_235] : memref<16x1024xf32, #tpu.memory_space<vmem>>, vector<1x256xf32>
    %c0_i32_236 = arith.constant 0 : i32
    %257 = tpu.dynamic_rotate %256 by %c0_i32_236 dim 1 : vector<1x256xf32>, i32 -> vector<1x256xf32>
    %258 = vector.extract_strided_slice %257 {offsets = [0, 0], sizes = [1, 96], strides = [1, 1]} : vector<1x256xf32> to vector<1x96xf32>
    %c56 = arith.constant 56 : index
    %c0_237 = arith.constant 0 : index
    %259 = vector.load %arg5[%c56, %c0_237] : memref<96x96xf32, #tpu.memory_space<vmem>>, vector<1x96xf32>
    tpu.vector_store %arg5[%c56, %c0_237], %258 {strides = array<i32>} : memref<96x96xf32, #tpu.memory_space<vmem>>, vector<1x96xf32>,
    %c5_238 = arith.constant 5 : index
    %c256_239 = arith.constant 256 : index
    %260 = vector.load %arg4[%c5_238, %c256_239] : memref<16x1024xf32, #tpu.memory_space<vmem>>, vector<1x256xf32>
    %c160_i32_240 = arith.constant 160 : i32
    %261 = tpu.dynamic_rotate %260 by %c160_i32_240 dim 1 : vector<1x256xf32>, i32 -> vector<1x256xf32>
    %262 = vector.extract_strided_slice %261 {offsets = [0, 0], sizes = [1, 96], strides = [1, 1]} : vector<1x256xf32> to vector<1x96xf32>
    %c57 = arith.constant 57 : index
    %c0_241 = arith.constant 0 : index
    %263 = vector.load %arg5[%c57, %c0_241] : memref<96x96xf32, #tpu.memory_space<vmem>>, vector<1x96xf32>
    tpu.vector_store %arg5[%c57, %c0_241], %262 {strides = array<i32>} : memref<96x96xf32, #tpu.memory_space<vmem>>, vector<1x96xf32>,
    %c5_242 = arith.constant 5 : index
    %c384_243 = arith.constant 384 : index
    %264 = vector.load %arg4[%c5_242, %c384_243] : memref<16x1024xf32, #tpu.memory_space<vmem>>, vector<1x256xf32>
    %c192_i32_244 = arith.constant 192 : i32
    %265 = tpu.dynamic_rotate %264 by %c192_i32_244 dim 1 : vector<1x256xf32>, i32 -> vector<1x256xf32>
    %266 = vector.extract_strided_slice %265 {offsets = [0, 0], sizes = [1, 96], strides = [1, 1]} : vector<1x256xf32> to vector<1x96xf32>
    %c58 = arith.constant 58 : index
    %c0_245 = arith.constant 0 : index
    %267 = vector.load %arg5[%c58, %c0_245] : memref<96x96xf32, #tpu.memory_space<vmem>>, vector<1x96xf32>
    tpu.vector_store %arg5[%c58, %c0_245], %266 {strides = array<i32>} : memref<96x96xf32, #tpu.memory_space<vmem>>, vector<1x96xf32>,
    %c5_246 = arith.constant 5 : index
    %c512_247 = arith.constant 512 : index
    %268 = vector.load %arg4[%c5_246, %c512_247] : memref<16x1024xf32, #tpu.memory_space<vmem>>, vector<1x256xf32>
    %c224_i32_248 = arith.constant 224 : i32
    %269 = tpu.dynamic_rotate %268 by %c224_i32_248 dim 1 : vector<1x256xf32>, i32 -> vector<1x256xf32>
    %270 = vector.extract_strided_slice %269 {offsets = [0, 0], sizes = [1, 96], strides = [1, 1]} : vector<1x256xf32> to vector<1x96xf32>
    %c59 = arith.constant 59 : index
    %c0_249 = arith.constant 0 : index
    %271 = vector.load %arg5[%c59, %c0_249] : memref<96x96xf32, #tpu.memory_space<vmem>>, vector<1x96xf32>
    tpu.vector_store %arg5[%c59, %c0_249], %270 {strides = array<i32>} : memref<96x96xf32, #tpu.memory_space<vmem>>, vector<1x96xf32>,
    %c5_250 = arith.constant 5 : index
    %c640_251 = arith.constant 640 : index
    %272 = vector.load %arg4[%c5_250, %c640_251] : memref<16x1024xf32, #tpu.memory_space<vmem>>, vector<1x256xf32>
    %c0_i32_252 = arith.constant 0 : i32
    %273 = tpu.dynamic_rotate %272 by %c0_i32_252 dim 1 : vector<1x256xf32>, i32 -> vector<1x256xf32>
    %274 = vector.extract_strided_slice %273 {offsets = [0, 0], sizes = [1, 96], strides = [1, 1]} : vector<1x256xf32> to vector<1x96xf32>
    %c60 = arith.constant 60 : index
    %c0_253 = arith.constant 0 : index
    %275 = vector.load %arg5[%c60, %c0_253] : memref<96x96xf32, #tpu.memory_space<vmem>>, vector<1x96xf32>
    tpu.vector_store %arg5[%c60, %c0_253], %274 {strides = array<i32>} : memref<96x96xf32, #tpu.memory_space<vmem>>, vector<1x96xf32>,
    %c5_254 = arith.constant 5 : index
    %c640_255 = arith.constant 640 : index
    %276 = vector.load %arg4[%c5_254, %c640_255] : memref<16x1024xf32, #tpu.memory_space<vmem>>, vector<1x256xf32>
    %c160_i32_256 = arith.constant 160 : i32
    %277 = tpu.dynamic_rotate %276 by %c160_i32_256 dim 1 : vector<1x256xf32>, i32 -> vector<1x256xf32>
    %278 = vector.extract_strided_slice %277 {offsets = [0, 0], sizes = [1, 96], strides = [1, 1]} : vector<1x256xf32> to vector<1x96xf32>
    %c61 = arith.constant 61 : index
    %c0_257 = arith.constant 0 : index
    %279 = vector.load %arg5[%c61, %c0_257] : memref<96x96xf32, #tpu.memory_space<vmem>>, vector<1x96xf32>
    tpu.vector_store %arg5[%c61, %c0_257], %278 {strides = array<i32>} : memref<96x96xf32, #tpu.memory_space<vmem>>, vector<1x96xf32>,
    %c5_258 = arith.constant 5 : index
    %c768_259 = arith.constant 768 : index
    %280 = vector.load %arg4[%c5_258, %c768_259] : memref<16x1024xf32, #tpu.memory_space<vmem>>, vector<1x256xf32>
    %c192_i32_260 = arith.constant 192 : i32
    %281 = tpu.dynamic_rotate %280 by %c192_i32_260 dim 1 : vector<1x256xf32>, i32 -> vector<1x256xf32>
    %282 = vector.extract_strided_slice %281 {offsets = [0, 0], sizes = [1, 96], strides = [1, 1]} : vector<1x256xf32> to vector<1x96xf32>
    %c62 = arith.constant 62 : index
    %c0_261 = arith.constant 0 : index
    %283 = vector.load %arg5[%c62, %c0_261] : memref<96x96xf32, #tpu.memory_space<vmem>>, vector<1x96xf32>
    tpu.vector_store %arg5[%c62, %c0_261], %282 {strides = array<i32>} : memref<96x96xf32, #tpu.memory_space<vmem>>, vector<1x96xf32>,
    %c5_262 = arith.constant 5 : index
    %c768_263 = arith.constant 768 : index
    %284 = vector.load %arg4[%c5_262, %c768_263] : memref<16x1024xf32, #tpu.memory_space<vmem>>, vector<1x256xf32>
    %c96_i32_264 = arith.constant 96 : i32
    %285 = tpu.dynamic_rotate %284 by %c96_i32_264 dim 1 : vector<1x256xf32>, i32 -> vector<1x256xf32>
    %286 = vector.extract_strided_slice %285 {offsets = [0, 0], sizes = [1, 96], strides = [1, 1]} : vector<1x256xf32> to vector<1x96xf32>
    %c63 = arith.constant 63 : index
    %c0_265 = arith.constant 0 : index
    %287 = vector.load %arg5[%c63, %c0_265] : memref<96x96xf32, #tpu.memory_space<vmem>>, vector<1x96xf32>
    tpu.vector_store %arg5[%c63, %c0_265], %286 {strides = array<i32>} : memref<96x96xf32, #tpu.memory_space<vmem>>, vector<1x96xf32>,
    %c6_266 = arith.constant 6 : index
    %c0_267 = arith.constant 0 : index
    %288 = vector.load %arg4[%c6_266, %c0_267] : memref<16x1024xf32, #tpu.memory_space<vmem>>, vector<1x256xf32>
    %c0_i32_268 = arith.constant 0 : i32
    %289 = tpu.dynamic_rotate %288 by %c0_i32_268 dim 1 : vector<1x256xf32>, i32 -> vector<1x256xf32>
    %290 = vector.extract_strided_slice %289 {offsets = [0, 0], sizes = [1, 96], strides = [1, 1]} : vector<1x256xf32> to vector<1x96xf32>
    %c64 = arith.constant 64 : index
    %c0_269 = arith.constant 0 : index
    %291 = vector.load %arg5[%c64, %c0_269] : memref<96x96xf32, #tpu.memory_space<vmem>>, vector<1x96xf32>
    tpu.vector_store %arg5[%c64, %c0_269], %290 {strides = array<i32>} : memref<96x96xf32, #tpu.memory_space<vmem>>, vector<1x96xf32>,
    %c6_270 = arith.constant 6 : index
    %c0_271 = arith.constant 0 : index
    %292 = vector.load %arg4[%c6_270, %c0_271] : memref<16x1024xf32, #tpu.memory_space<vmem>>, vector<1x256xf32>
    %c160_i32_272 = arith.constant 160 : i32
    %293 = tpu.dynamic_rotate %292 by %c160_i32_272 dim 1 : vector<1x256xf32>, i32 -> vector<1x256xf32>
    %294 = vector.extract_strided_slice %293 {offsets = [0, 0], sizes = [1, 96], strides = [1, 1]} : vector<1x256xf32> to vector<1x96xf32>
    %c65 = arith.constant 65 : index
    %c0_273 = arith.constant 0 : index
    %295 = vector.load %arg5[%c65, %c0_273] : memref<96x96xf32, #tpu.memory_space<vmem>>, vector<1x96xf32>
    tpu.vector_store %arg5[%c65, %c0_273], %294 {strides = array<i32>} : memref<96x96xf32, #tpu.memory_space<vmem>>, vector<1x96xf32>,
    %c6_274 = arith.constant 6 : index
    %c128_275 = arith.constant 128 : index
    %296 = vector.load %arg4[%c6_274, %c128_275] : memref<16x1024xf32, #tpu.memory_space<vmem>>, vector<1x256xf32>
    %c192_i32_276 = arith.constant 192 : i32
    %297 = tpu.dynamic_rotate %296 by %c192_i32_276 dim 1 : vector<1x256xf32>, i32 -> vector<1x256xf32>
    %298 = vector.extract_strided_slice %297 {offsets = [0, 0], sizes = [1, 96], strides = [1, 1]} : vector<1x256xf32> to vector<1x96xf32>
    %c66 = arith.constant 66 : index
    %c0_277 = arith.constant 0 : index
    %299 = vector.load %arg5[%c66, %c0_277] : memref<96x96xf32, #tpu.memory_space<vmem>>, vector<1x96xf32>
    tpu.vector_store %arg5[%c66, %c0_277], %298 {strides = array<i32>} : memref<96x96xf32, #tpu.memory_space<vmem>>, vector<1x96xf32>,
    %c6_278 = arith.constant 6 : index
    %c256_279 = arith.constant 256 : index
    %300 = vector.load %arg4[%c6_278, %c256_279] : memref<16x1024xf32, #tpu.memory_space<vmem>>, vector<1x256xf32>
    %c224_i32_280 = arith.constant 224 : i32
    %301 = tpu.dynamic_rotate %300 by %c224_i32_280 dim 1 : vector<1x256xf32>, i32 -> vector<1x256xf32>
    %302 = vector.extract_strided_slice %301 {offsets = [0, 0], sizes = [1, 96], strides = [1, 1]} : vector<1x256xf32> to vector<1x96xf32>
    %c67 = arith.constant 67 : index
    %c0_281 = arith.constant 0 : index
    %303 = vector.load %arg5[%c67, %c0_281] : memref<96x96xf32, #tpu.memory_space<vmem>>, vector<1x96xf32>
    tpu.vector_store %arg5[%c67, %c0_281], %302 {strides = array<i32>} : memref<96x96xf32, #tpu.memory_space<vmem>>, vector<1x96xf32>,
    %c6_282 = arith.constant 6 : index
    %c384_283 = arith.constant 384 : index
    %304 = vector.load %arg4[%c6_282, %c384_283] : memref<16x1024xf32, #tpu.memory_space<vmem>>, vector<1x256xf32>
    %c0_i32_284 = arith.constant 0 : i32
    %305 = tpu.dynamic_rotate %304 by %c0_i32_284 dim 1 : vector<1x256xf32>, i32 -> vector<1x256xf32>
    %306 = vector.extract_strided_slice %305 {offsets = [0, 0], sizes = [1, 96], strides = [1, 1]} : vector<1x256xf32> to vector<1x96xf32>
    %c68 = arith.constant 68 : index
    %c0_285 = arith.constant 0 : index
    %307 = vector.load %arg5[%c68, %c0_285] : memref<96x96xf32, #tpu.memory_space<vmem>>, vector<1x96xf32>
    tpu.vector_store %arg5[%c68, %c0_285], %306 {strides = array<i32>} : memref<96x96xf32, #tpu.memory_space<vmem>>, vector<1x96xf32>,
    %c6_286 = arith.constant 6 : index
    %c384_287 = arith.constant 384 : index
    %308 = vector.load %arg4[%c6_286, %c384_287] : memref<16x1024xf32, #tpu.memory_space<vmem>>, vector<1x256xf32>
    %c160_i32_288 = arith.constant 160 : i32
    %309 = tpu.dynamic_rotate %308 by %c160_i32_288 dim 1 : vector<1x256xf32>, i32 -> vector<1x256xf32>
    %310 = vector.extract_strided_slice %309 {offsets = [0, 0], sizes = [1, 96], strides = [1, 1]} : vector<1x256xf32> to vector<1x96xf32>
    %c69 = arith.constant 69 : index
    %c0_289 = arith.constant 0 : index
    %311 = vector.load %arg5[%c69, %c0_289] : memref<96x96xf32, #tpu.memory_space<vmem>>, vector<1x96xf32>
    tpu.vector_store %arg5[%c69, %c0_289], %310 {strides = array<i32>} : memref<96x96xf32, #tpu.memory_space<vmem>>, vector<1x96xf32>,
    %c6_290 = arith.constant 6 : index
    %c512_291 = arith.constant 512 : index
    %312 = vector.load %arg4[%c6_290, %c512_291] : memref<16x1024xf32, #tpu.memory_space<vmem>>, vector<1x256xf32>
    %c192_i32_292 = arith.constant 192 : i32
    %313 = tpu.dynamic_rotate %312 by %c192_i32_292 dim 1 : vector<1x256xf32>, i32 -> vector<1x256xf32>
    %314 = vector.extract_strided_slice %313 {offsets = [0, 0], sizes = [1, 96], strides = [1, 1]} : vector<1x256xf32> to vector<1x96xf32>
    %c70 = arith.constant 70 : index
    %c0_293 = arith.constant 0 : index
    %315 = vector.load %arg5[%c70, %c0_293] : memref<96x96xf32, #tpu.memory_space<vmem>>, vector<1x96xf32>
    tpu.vector_store %arg5[%c70, %c0_293], %314 {strides = array<i32>} : memref<96x96xf32, #tpu.memory_space<vmem>>, vector<1x96xf32>,
    %c6_294 = arith.constant 6 : index
    %c640_295 = arith.constant 640 : index
    %316 = vector.load %arg4[%c6_294, %c640_295] : memref<16x1024xf32, #tpu.memory_space<vmem>>, vector<1x256xf32>
    %c224_i32_296 = arith.constant 224 : i32
    %317 = tpu.dynamic_rotate %316 by %c224_i32_296 dim 1 : vector<1x256xf32>, i32 -> vector<1x256xf32>
    %318 = vector.extract_strided_slice %317 {offsets = [0, 0], sizes = [1, 96], strides = [1, 1]} : vector<1x256xf32> to vector<1x96xf32>
    %c71 = arith.constant 71 : index
    %c0_297 = arith.constant 0 : index
    %319 = vector.load %arg5[%c71, %c0_297] : memref<96x96xf32, #tpu.memory_space<vmem>>, vector<1x96xf32>
    tpu.vector_store %arg5[%c71, %c0_297], %318 {strides = array<i32>} : memref<96x96xf32, #tpu.memory_space<vmem>>, vector<1x96xf32>,
    %c6_298 = arith.constant 6 : index
    %c768_299 = arith.constant 768 : index
    %320 = vector.load %arg4[%c6_298, %c768_299] : memref<16x1024xf32, #tpu.memory_space<vmem>>, vector<1x256xf32>
    %c0_i32_300 = arith.constant 0 : i32
    %321 = tpu.dynamic_rotate %320 by %c0_i32_300 dim 1 : vector<1x256xf32>, i32 -> vector<1x256xf32>
    %322 = vector.extract_strided_slice %321 {offsets = [0, 0], sizes = [1, 96], strides = [1, 1]} : vector<1x256xf32> to vector<1x96xf32>
    %c72 = arith.constant 72 : index
    %c0_301 = arith.constant 0 : index
    %323 = vector.load %arg5[%c72, %c0_301] : memref<96x96xf32, #tpu.memory_space<vmem>>, vector<1x96xf32>
    tpu.vector_store %arg5[%c72, %c0_301], %322 {strides = array<i32>} : memref<96x96xf32, #tpu.memory_space<vmem>>, vector<1x96xf32>,
    %c6_302 = arith.constant 6 : index
    %c768_303 = arith.constant 768 : index
    %324 = vector.load %arg4[%c6_302, %c768_303] : memref<16x1024xf32, #tpu.memory_space<vmem>>, vector<1x256xf32>
    %c160_i32_304 = arith.constant 160 : i32
    %325 = tpu.dynamic_rotate %324 by %c160_i32_304 dim 1 : vector<1x256xf32>, i32 -> vector<1x256xf32>
    %326 = vector.extract_strided_slice %325 {offsets = [0, 0], sizes = [1, 96], strides = [1, 1]} : vector<1x256xf32> to vector<1x96xf32>
    %c73 = arith.constant 73 : index
    %c0_305 = arith.constant 0 : index
    %327 = vector.load %arg5[%c73, %c0_305] : memref<96x96xf32, #tpu.memory_space<vmem>>, vector<1x96xf32>
    tpu.vector_store %arg5[%c73, %c0_305], %326 {strides = array<i32>} : memref<96x96xf32, #tpu.memory_space<vmem>>, vector<1x96xf32>,
    %c6_306 = arith.constant 6 : index
    %c768_307 = arith.constant 768 : index
    %328 = vector.load %arg4[%c6_306, %c768_307] : memref<16x1024xf32, #tpu.memory_space<vmem>>, vector<1x256xf32>
    %c64_i32_308 = arith.constant 64 : i32
    %329 = tpu.dynamic_rotate %328 by %c64_i32_308 dim 1 : vector<1x256xf32>, i32 -> vector<1x256xf32>
    %330 = vector.extract_strided_slice %329 {offsets = [0, 0], sizes = [1, 96], strides = [1, 1]} : vector<1x256xf32> to vector<1x96xf32>
    %c7_309 = arith.constant 7 : index
    %c0_310 = arith.constant 0 : index
    %331 = vector.load %arg4[%c7_309, %c0_310] : memref<16x1024xf32, #tpu.memory_space<vmem>>, vector<1x256xf32>
    %c64_i32_311 = arith.constant 64 : i32
    %332 = tpu.dynamic_rotate %331 by %c64_i32_311 dim 1 : vector<1x256xf32>, i32 -> vector<1x256xf32>
    %333 = vector.extract_strided_slice %332 {offsets = [0, 0], sizes = [1, 96], strides = [1, 1]} : vector<1x256xf32> to vector<1x96xf32>
    %c64_i32_312 = arith.constant 64 : i32
    %334 = vector.broadcast %c64_i32_312 : i32 to vector<1x96xi32>
    %335 = arith.cmpi slt, %7, %334 : vector<1x96xi32>
    %336 = arith.select %335, %330, %333 : vector<1x96xi1>, vector<1x96xf32>
    %c74 = arith.constant 74 : index
    %c0_313 = arith.constant 0 : index
    %337 = vector.load %arg5[%c74, %c0_313] : memref<96x96xf32, #tpu.memory_space<vmem>>, vector<1x96xf32>
    tpu.vector_store %arg5[%c74, %c0_313], %336 {strides = array<i32>} : memref<96x96xf32, #tpu.memory_space<vmem>>, vector<1x96xf32>,
    %c7_314 = arith.constant 7 : index
    %c0_315 = arith.constant 0 : index
    %338 = vector.load %arg4[%c7_314, %c0_315] : memref<16x1024xf32, #tpu.memory_space<vmem>>, vector<1x256xf32>
    %c224_i32_316 = arith.constant 224 : i32
    %339 = tpu.dynamic_rotate %338 by %c224_i32_316 dim 1 : vector<1x256xf32>, i32 -> vector<1x256xf32>
    %340 = vector.extract_strided_slice %339 {offsets = [0, 0], sizes = [1, 96], strides = [1, 1]} : vector<1x256xf32> to vector<1x96xf32>
    %c75 = arith.constant 75 : index
    %c0_317 = arith.constant 0 : index
    %341 = vector.load %arg5[%c75, %c0_317] : memref<96x96xf32, #tpu.memory_space<vmem>>, vector<1x96xf32>
    tpu.vector_store %arg5[%c75, %c0_317], %340 {strides = array<i32>} : memref<96x96xf32, #tpu.memory_space<vmem>>, vector<1x96xf32>,
    %c7_318 = arith.constant 7 : index
    %c128_319 = arith.constant 128 : index
    %342 = vector.load %arg4[%c7_318, %c128_319] : memref<16x1024xf32, #tpu.memory_space<vmem>>, vector<1x256xf32>
    %c0_i32_320 = arith.constant 0 : i32
    %343 = tpu.dynamic_rotate %342 by %c0_i32_320 dim 1 : vector<1x256xf32>, i32 -> vector<1x256xf32>
    %344 = vector.extract_strided_slice %343 {offsets = [0, 0], sizes = [1, 96], strides = [1, 1]} : vector<1x256xf32> to vector<1x96xf32>
    %c76 = arith.constant 76 : index
    %c0_321 = arith.constant 0 : index
    %345 = vector.load %arg5[%c76, %c0_321] : memref<96x96xf32, #tpu.memory_space<vmem>>, vector<1x96xf32>
    tpu.vector_store %arg5[%c76, %c0_321], %344 {strides = array<i32>} : memref<96x96xf32, #tpu.memory_space<vmem>>, vector<1x96xf32>,
    %c7_322 = arith.constant 7 : index
    %c128_323 = arith.constant 128 : index
    %346 = vector.load %arg4[%c7_322, %c128_323] : memref<16x1024xf32, #tpu.memory_space<vmem>>, vector<1x256xf32>
    %c160_i32_324 = arith.constant 160 : i32
    %347 = tpu.dynamic_rotate %346 by %c160_i32_324 dim 1 : vector<1x256xf32>, i32 -> vector<1x256xf32>
    %348 = vector.extract_strided_slice %347 {offsets = [0, 0], sizes = [1, 96], strides = [1, 1]} : vector<1x256xf32> to vector<1x96xf32>
    %c77 = arith.constant 77 : index
    %c0_325 = arith.constant 0 : index
    %349 = vector.load %arg5[%c77, %c0_325] : memref<96x96xf32, #tpu.memory_space<vmem>>, vector<1x96xf32>
    tpu.vector_store %arg5[%c77, %c0_325], %348 {strides = array<i32>} : memref<96x96xf32, #tpu.memory_space<vmem>>, vector<1x96xf32>,
    %c7_326 = arith.constant 7 : index
    %c256_327 = arith.constant 256 : index
    %350 = vector.load %arg4[%c7_326, %c256_327] : memref<16x1024xf32, #tpu.memory_space<vmem>>, vector<1x256xf32>
    %c192_i32_328 = arith.constant 192 : i32
    %351 = tpu.dynamic_rotate %350 by %c192_i32_328 dim 1 : vector<1x256xf32>, i32 -> vector<1x256xf32>
    %352 = vector.extract_strided_slice %351 {offsets = [0, 0], sizes = [1, 96], strides = [1, 1]} : vector<1x256xf32> to vector<1x96xf32>
    %c78 = arith.constant 78 : index
    %c0_329 = arith.constant 0 : index
    %353 = vector.load %arg5[%c78, %c0_329] : memref<96x96xf32, #tpu.memory_space<vmem>>, vector<1x96xf32>
    tpu.vector_store %arg5[%c78, %c0_329], %352 {strides = array<i32>} : memref<96x96xf32, #tpu.memory_space<vmem>>, vector<1x96xf32>,
    %c7_330 = arith.constant 7 : index
    %c384_331 = arith.constant 384 : index
    %354 = vector.load %arg4[%c7_330, %c384_331] : memref<16x1024xf32, #tpu.memory_space<vmem>>, vector<1x256xf32>
    %c224_i32_332 = arith.constant 224 : i32
    %355 = tpu.dynamic_rotate %354 by %c224_i32_332 dim 1 : vector<1x256xf32>, i32 -> vector<1x256xf32>
    %356 = vector.extract_strided_slice %355 {offsets = [0, 0], sizes = [1, 96], strides = [1, 1]} : vector<1x256xf32> to vector<1x96xf32>
    %c79 = arith.constant 79 : index
    %c0_333 = arith.constant 0 : index
    %357 = vector.load %arg5[%c79, %c0_333] : memref<96x96xf32, #tpu.memory_space<vmem>>, vector<1x96xf32>
    tpu.vector_store %arg5[%c79, %c0_333], %356 {strides = array<i32>} : memref<96x96xf32, #tpu.memory_space<vmem>>, vector<1x96xf32>,
    %c7_334 = arith.constant 7 : index
    %c512_335 = arith.constant 512 : index
    %358 = vector.load %arg4[%c7_334, %c512_335] : memref<16x1024xf32, #tpu.memory_space<vmem>>, vector<1x256xf32>
    %c0_i32_336 = arith.constant 0 : i32
    %359 = tpu.dynamic_rotate %358 by %c0_i32_336 dim 1 : vector<1x256xf32>, i32 -> vector<1x256xf32>
    %360 = vector.extract_strided_slice %359 {offsets = [0, 0], sizes = [1, 96], strides = [1, 1]} : vector<1x256xf32> to vector<1x96xf32>
    %c80 = arith.constant 80 : index
    %c0_337 = arith.constant 0 : index
    %361 = vector.load %arg5[%c80, %c0_337] : memref<96x96xf32, #tpu.memory_space<vmem>>, vector<1x96xf32>
    tpu.vector_store %arg5[%c80, %c0_337], %360 {strides = array<i32>} : memref<96x96xf32, #tpu.memory_space<vmem>>, vector<1x96xf32>,
    %c7_338 = arith.constant 7 : index
    %c512_339 = arith.constant 512 : index
    %362 = vector.load %arg4[%c7_338, %c512_339] : memref<16x1024xf32, #tpu.memory_space<vmem>>, vector<1x256xf32>
    %c160_i32_340 = arith.constant 160 : i32
    %363 = tpu.dynamic_rotate %362 by %c160_i32_340 dim 1 : vector<1x256xf32>, i32 -> vector<1x256xf32>
    %364 = vector.extract_strided_slice %363 {offsets = [0, 0], sizes = [1, 96], strides = [1, 1]} : vector<1x256xf32> to vector<1x96xf32>
    %c81 = arith.constant 81 : index
    %c0_341 = arith.constant 0 : index
    %365 = vector.load %arg5[%c81, %c0_341] : memref<96x96xf32, #tpu.memory_space<vmem>>, vector<1x96xf32>
    tpu.vector_store %arg5[%c81, %c0_341], %364 {strides = array<i32>} : memref<96x96xf32, #tpu.memory_space<vmem>>, vector<1x96xf32>,
    %c7_342 = arith.constant 7 : index
    %c640_343 = arith.constant 640 : index
    %366 = vector.load %arg4[%c7_342, %c640_343] : memref<16x1024xf32, #tpu.memory_space<vmem>>, vector<1x256xf32>
    %c192_i32_344 = arith.constant 192 : i32
    %367 = tpu.dynamic_rotate %366 by %c192_i32_344 dim 1 : vector<1x256xf32>, i32 -> vector<1x256xf32>
    %368 = vector.extract_strided_slice %367 {offsets = [0, 0], sizes = [1, 96], strides = [1, 1]} : vector<1x256xf32> to vector<1x96xf32>
    %c82 = arith.constant 82 : index
    %c0_345 = arith.constant 0 : index
    %369 = vector.load %arg5[%c82, %c0_345] : memref<96x96xf32, #tpu.memory_space<vmem>>, vector<1x96xf32>
    tpu.vector_store %arg5[%c82, %c0_345], %368 {strides = array<i32>} : memref<96x96xf32, #tpu.memory_space<vmem>>, vector<1x96xf32>,
    %c7_346 = arith.constant 7 : index
    %c768_347 = arith.constant 768 : index
    %370 = vector.load %arg4[%c7_346, %c768_347] : memref<16x1024xf32, #tpu.memory_space<vmem>>, vector<1x256xf32>
    %c224_i32_348 = arith.constant 224 : i32
    %371 = tpu.dynamic_rotate %370 by %c224_i32_348 dim 1 : vector<1x256xf32>, i32 -> vector<1x256xf32>
    %372 = vector.extract_strided_slice %371 {offsets = [0, 0], sizes = [1, 96], strides = [1, 1]} : vector<1x256xf32> to vector<1x96xf32>
    %c83 = arith.constant 83 : index
    %c0_349 = arith.constant 0 : index
    %373 = vector.load %arg5[%c83, %c0_349] : memref<96x96xf32, #tpu.memory_space<vmem>>, vector<1x96xf32>
    tpu.vector_store %arg5[%c83, %c0_349], %372 {strides = array<i32>} : memref<96x96xf32, #tpu.memory_space<vmem>>, vector<1x96xf32>,
    %c7_350 = arith.constant 7 : index
    %c768_351 = arith.constant 768 : index
    %374 = vector.load %arg4[%c7_350, %c768_351] : memref<16x1024xf32, #tpu.memory_space<vmem>>, vector<1x256xf32>
    %c128_i32_352 = arith.constant 128 : i32
    %375 = tpu.dynamic_rotate %374 by %c128_i32_352 dim 1 : vector<1x256xf32>, i32 -> vector<1x256xf32>
    %376 = vector.extract_strided_slice %375 {offsets = [0, 0], sizes = [1, 96], strides = [1, 1]} : vector<1x256xf32> to vector<1x96xf32>
    %c84 = arith.constant 84 : index
    %c0_353 = arith.constant 0 : index
    %377 = vector.load %arg5[%c84, %c0_353] : memref<96x96xf32, #tpu.memory_space<vmem>>, vector<1x96xf32>
    tpu.vector_store %arg5[%c84, %c0_353], %376 {strides = array<i32>} : memref<96x96xf32, #tpu.memory_space<vmem>>, vector<1x96xf32>,
    %c7_354 = arith.constant 7 : index
    %c768_355 = arith.constant 768 : index
    %378 = vector.load %arg4[%c7_354, %c768_355] : memref<16x1024xf32, #tpu.memory_space<vmem>>, vector<1x256xf32>
    %c32_i32_356 = arith.constant 32 : i32
    %379 = tpu.dynamic_rotate %378 by %c32_i32_356 dim 1 : vector<1x256xf32>, i32 -> vector<1x256xf32>
    %380 = vector.extract_strided_slice %379 {offsets = [0, 0], sizes = [1, 96], strides = [1, 1]} : vector<1x256xf32> to vector<1x96xf32>
    %c8_357 = arith.constant 8 : index
    %c0_358 = arith.constant 0 : index
    %381 = vector.load %arg4[%c8_357, %c0_358] : memref<16x1024xf32, #tpu.memory_space<vmem>>, vector<1x256xf32>
    %c32_i32_359 = arith.constant 32 : i32
    %382 = tpu.dynamic_rotate %381 by %c32_i32_359 dim 1 : vector<1x256xf32>, i32 -> vector<1x256xf32>
    %383 = vector.extract_strided_slice %382 {offsets = [0, 0], sizes = [1, 96], strides = [1, 1]} : vector<1x256xf32> to vector<1x96xf32>
    %c32_i32_360 = arith.constant 32 : i32
    %384 = vector.broadcast %c32_i32_360 : i32 to vector<1x96xi32>
    %385 = arith.cmpi slt, %7, %384 : vector<1x96xi32>
    %386 = arith.select %385, %380, %383 : vector<1x96xi1>, vector<1x96xf32>
    %c85 = arith.constant 85 : index
    %c0_361 = arith.constant 0 : index
    %387 = vector.load %arg5[%c85, %c0_361] : memref<96x96xf32, #tpu.memory_space<vmem>>, vector<1x96xf32>
    tpu.vector_store %arg5[%c85, %c0_361], %386 {strides = array<i32>} : memref<96x96xf32, #tpu.memory_space<vmem>>, vector<1x96xf32>,
    %c8_362 = arith.constant 8 : index
    %c0_363 = arith.constant 0 : index
    %388 = vector.load %arg4[%c8_362, %c0_363] : memref<16x1024xf32, #tpu.memory_space<vmem>>, vector<1x256xf32>
    %c192_i32_364 = arith.constant 192 : i32
    %389 = tpu.dynamic_rotate %388 by %c192_i32_364 dim 1 : vector<1x256xf32>, i32 -> vector<1x256xf32>
    %390 = vector.extract_strided_slice %389 {offsets = [0, 0], sizes = [1, 96], strides = [1, 1]} : vector<1x256xf32> to vector<1x96xf32>
    %c86 = arith.constant 86 : index
    %c0_365 = arith.constant 0 : index
    %391 = vector.load %arg5[%c86, %c0_365] : memref<96x96xf32, #tpu.memory_space<vmem>>, vector<1x96xf32>
    tpu.vector_store %arg5[%c86, %c0_365], %390 {strides = array<i32>} : memref<96x96xf32, #tpu.memory_space<vmem>>, vector<1x96xf32>,
    %c8_366 = arith.constant 8 : index
    %c128_367 = arith.constant 128 : index
    %392 = vector.load %arg4[%c8_366, %c128_367] : memref<16x1024xf32, #tpu.memory_space<vmem>>, vector<1x256xf32>
    %c224_i32_368 = arith.constant 224 : i32
    %393 = tpu.dynamic_rotate %392 by %c224_i32_368 dim 1 : vector<1x256xf32>, i32 -> vector<1x256xf32>
    %394 = vector.extract_strided_slice %393 {offsets = [0, 0], sizes = [1, 96], strides = [1, 1]} : vector<1x256xf32> to vector<1x96xf32>
    %c87 = arith.constant 87 : index
    %c0_369 = arith.constant 0 : index
    %395 = vector.load %arg5[%c87, %c0_369] : memref<96x96xf32, #tpu.memory_space<vmem>>, vector<1x96xf32>
    tpu.vector_store %arg5[%c87, %c0_369], %394 {strides = array<i32>} : memref<96x96xf32, #tpu.memory_space<vmem>>, vector<1x96xf32>,
    %c8_370 = arith.constant 8 : index
    %c256_371 = arith.constant 256 : index
    %396 = vector.load %arg4[%c8_370, %c256_371] : memref<16x1024xf32, #tpu.memory_space<vmem>>, vector<1x256xf32>
    %c0_i32_372 = arith.constant 0 : i32
    %397 = tpu.dynamic_rotate %396 by %c0_i32_372 dim 1 : vector<1x256xf32>, i32 -> vector<1x256xf32>
    %398 = vector.extract_strided_slice %397 {offsets = [0, 0], sizes = [1, 96], strides = [1, 1]} : vector<1x256xf32> to vector<1x96xf32>
    %c88 = arith.constant 88 : index
    %c0_373 = arith.constant 0 : index
    %399 = vector.load %arg5[%c88, %c0_373] : memref<96x96xf32, #tpu.memory_space<vmem>>, vector<1x96xf32>
    tpu.vector_store %arg5[%c88, %c0_373], %398 {strides = array<i32>} : memref<96x96xf32, #tpu.memory_space<vmem>>, vector<1x96xf32>,
    %c8_374 = arith.constant 8 : index
    %c256_375 = arith.constant 256 : index
    %400 = vector.load %arg4[%c8_374, %c256_375] : memref<16x1024xf32, #tpu.memory_space<vmem>>, vector<1x256xf32>
    %c160_i32_376 = arith.constant 160 : i32
    %401 = tpu.dynamic_rotate %400 by %c160_i32_376 dim 1 : vector<1x256xf32>, i32 -> vector<1x256xf32>
    %402 = vector.extract_strided_slice %401 {offsets = [0, 0], sizes = [1, 96], strides = [1, 1]} : vector<1x256xf32> to vector<1x96xf32>
    %c89 = arith.constant 89 : index
    %c0_377 = arith.constant 0 : index
    %403 = vector.load %arg5[%c89, %c0_377] : memref<96x96xf32, #tpu.memory_space<vmem>>, vector<1x96xf32>
    tpu.vector_store %arg5[%c89, %c0_377], %402 {strides = array<i32>} : memref<96x96xf32, #tpu.memory_space<vmem>>, vector<1x96xf32>,
    %c8_378 = arith.constant 8 : index
    %c384_379 = arith.constant 384 : index
    %404 = vector.load %arg4[%c8_378, %c384_379] : memref<16x1024xf32, #tpu.memory_space<vmem>>, vector<1x256xf32>
    %c192_i32_380 = arith.constant 192 : i32
    %405 = tpu.dynamic_rotate %404 by %c192_i32_380 dim 1 : vector<1x256xf32>, i32 -> vector<1x256xf32>
    %406 = vector.extract_strided_slice %405 {offsets = [0, 0], sizes = [1, 96], strides = [1, 1]} : vector<1x256xf32> to vector<1x96xf32>
    %c90 = arith.constant 90 : index
    %c0_381 = arith.constant 0 : index
    %407 = vector.load %arg5[%c90, %c0_381] : memref<96x96xf32, #tpu.memory_space<vmem>>, vector<1x96xf32>
    tpu.vector_store %arg5[%c90, %c0_381], %406 {strides = array<i32>} : memref<96x96xf32, #tpu.memory_space<vmem>>, vector<1x96xf32>,
    %c8_382 = arith.constant 8 : index
    %c512_383 = arith.constant 512 : index
    %408 = vector.load %arg4[%c8_382, %c512_383] : memref<16x1024xf32, #tpu.memory_space<vmem>>, vector<1x256xf32>
    %c224_i32_384 = arith.constant 224 : i32
    %409 = tpu.dynamic_rotate %408 by %c224_i32_384 dim 1 : vector<1x256xf32>, i32 -> vector<1x256xf32>
    %410 = vector.extract_strided_slice %409 {offsets = [0, 0], sizes = [1, 96], strides = [1, 1]} : vector<1x256xf32> to vector<1x96xf32>
    %c91 = arith.constant 91 : index
    %c0_385 = arith.constant 0 : index
    %411 = vector.load %arg5[%c91, %c0_385] : memref<96x96xf32, #tpu.memory_space<vmem>>, vector<1x96xf32>
    tpu.vector_store %arg5[%c91, %c0_385], %410 {strides = array<i32>} : memref<96x96xf32, #tpu.memory_space<vmem>>, vector<1x96xf32>,
    %c8_386 = arith.constant 8 : index
    %c640_387 = arith.constant 640 : index
    %412 = vector.load %arg4[%c8_386, %c640_387] : memref<16x1024xf32, #tpu.memory_space<vmem>>, vector<1x256xf32>
    %c0_i32_388 = arith.constant 0 : i32
    %413 = tpu.dynamic_rotate %412 by %c0_i32_388 dim 1 : vector<1x256xf32>, i32 -> vector<1x256xf32>
    %414 = vector.extract_strided_slice %413 {offsets = [0, 0], sizes = [1, 96], strides = [1, 1]} : vector<1x256xf32> to vector<1x96xf32>
    %c92 = arith.constant 92 : index
    %c0_389 = arith.constant 0 : index
    %415 = vector.load %arg5[%c92, %c0_389] : memref<96x96xf32, #tpu.memory_space<vmem>>, vector<1x96xf32>
    tpu.vector_store %arg5[%c92, %c0_389], %414 {strides = array<i32>} : memref<96x96xf32, #tpu.memory_space<vmem>>, vector<1x96xf32>,
    %c8_390 = arith.constant 8 : index
    %c640_391 = arith.constant 640 : index
    %416 = vector.load %arg4[%c8_390, %c640_391] : memref<16x1024xf32, #tpu.memory_space<vmem>>, vector<1x256xf32>
    %c160_i32_392 = arith.constant 160 : i32
    %417 = tpu.dynamic_rotate %416 by %c160_i32_392 dim 1 : vector<1x256xf32>, i32 -> vector<1x256xf32>
    %418 = vector.extract_strided_slice %417 {offsets = [0, 0], sizes = [1, 96], strides = [1, 1]} : vector<1x256xf32> to vector<1x96xf32>
    %c93 = arith.constant 93 : index
    %c0_393 = arith.constant 0 : index
    %419 = vector.load %arg5[%c93, %c0_393] : memref<96x96xf32, #tpu.memory_space<vmem>>, vector<1x96xf32>
    tpu.vector_store %arg5[%c93, %c0_393], %418 {strides = array<i32>} : memref<96x96xf32, #tpu.memory_space<vmem>>, vector<1x96xf32>,
    %c8_394 = arith.constant 8 : index
    %c768_395 = arith.constant 768 : index
    %420 = vector.load %arg4[%c8_394, %c768_395] : memref<16x1024xf32, #tpu.memory_space<vmem>>, vector<1x256xf32>
    %c192_i32_396 = arith.constant 192 : i32
    %421 = tpu.dynamic_rotate %420 by %c192_i32_396 dim 1 : vector<1x256xf32>, i32 -> vector<1x256xf32>
    %422 = vector.extract_strided_slice %421 {offsets = [0, 0], sizes = [1, 96], strides = [1, 1]} : vector<1x256xf32> to vector<1x96xf32>
    %c94 = arith.constant 94 : index
    %c0_397 = arith.constant 0 : index
    %423 = vector.load %arg5[%c94, %c0_397] : memref<96x96xf32, #tpu.memory_space<vmem>>, vector<1x96xf32>
    tpu.vector_store %arg5[%c94, %c0_397], %422 {strides = array<i32>} : memref<96x96xf32, #tpu.memory_space<vmem>>, vector<1x96xf32>,
    %c8_398 = arith.constant 8 : index
    %c768_399 = arith.constant 768 : index
    %424 = vector.load %arg4[%c8_398, %c768_399] : memref<16x1024xf32, #tpu.memory_space<vmem>>, vector<1x256xf32>
    %c96_i32_400 = arith.constant 96 : i32
    %425 = tpu.dynamic_rotate %424 by %c96_i32_400 dim 1 : vector<1x256xf32>, i32 -> vector<1x256xf32>
    %426 = vector.extract_strided_slice %425 {offsets = [0, 0], sizes = [1, 96], strides = [1, 1]} : vector<1x256xf32> to vector<1x96xf32>
    %c95 = arith.constant 95 : index
    %c0_401 = arith.constant 0 : index
    %427 = vector.load %arg5[%c95, %c0_401] : memref<96x96xf32, #tpu.memory_space<vmem>>, vector<1x96xf32>
    tpu.vector_store %arg5[%c95, %c0_401], %426 {strides = array<i32>} : memref<96x96xf32, #tpu.memory_space<vmem>>, vector<1x96xf32>,
    %c0_402 = arith.constant 0 : index
    %c0_403 = arith.constant 0 : index
    %428 = vector.load %arg5[%c0_402, %c0_403] : memref<96x96xf32, #tpu.memory_space<vmem>>, vector<32x96xf32>
    %c32_404 = arith.constant 32 : index
    %c0_405 = arith.constant 0 : index
    %429 = vector.load %arg5[%c32_404, %c0_405] : memref<96x96xf32, #tpu.memory_space<vmem>>, vector<32x96xf32>
    %c64_406 = arith.constant 64 : index
    %c0_407 = arith.constant 0 : index
    %430 = vector.load %arg5[%c64_406, %c0_407] : memref<96x96xf32, #tpu.memory_space<vmem>>, vector<32x96xf32>
    %cst_408 = arith.constant dense<0.000000e+00> : vector<32x32xf32>
    %431 = tpu.matmul %428, %429, %cst_408 {dimension_numbers = #tpu.dot_dimension_numbers<[1], [1], [0], [0], [0, 0, 1, 0], [], []>} : vector<32x96xf32>, vector<32x96xf32>, vector<32x32xf32> -> vector<32x32xf32>
    %cst_409 = arith.constant 0.102062076 : f32
    %432 = vector.broadcast %cst_409 : f32 to vector<32x32xf32>
    %433 = arith.mulf %431, %432 : vector<32x32xf32>
    %434 = tpu.iota {dimensions = array<i32: 0>} : vector<32x32xi32>
    %435 = tpu.iota {dimensions = array<i32: 1>} : vector<32x32xi32>
    %436 = arith.cmpi eq, %434, %435 : vector<32x32xi32>
    %cst_410 = arith.constant 1.000000e+04 : f32
    %437 = vector.broadcast %cst_410 : f32 to vector<32x32xf32>
    %438 = arith.subf %433, %437 : vector<32x32xf32>
    %439 = arith.select %436, %438, %433 : vector<32x32xi1>, vector<32x32xf32>
    %cst_411 = arith.constant dense<0xFF800000> : vector<32xf32>
    %440 = vector.multi_reduction <maximumf>, %439, %cst_411 [1] : vector<32x32xf32> to vector<32xf32>
    %441 = vector.shape_cast %440 : vector<32xf32> to vector<32x1xf32>
    %442 = vector.broadcast %441 : vector<32x1xf32> to vector<32x32xf32>
    %443 = arith.subf %439, %442 : vector<32x32xf32>
    %444 = math.exp %443 : vector<32x32xf32>
    %cst_412 = arith.constant dense<0.000000e+00> : vector<32xf32>
    %445 = vector.multi_reduction <add>, %444, %cst_412 [1] : vector<32x32xf32> to vector<32xf32>
    %446 = vector.shape_cast %445 : vector<32xf32> to vector<32x1xf32>
    %447 = tpu.reciprocal %446 {approx = true} : vector<32x1xf32> -> vector<32x1xf32>
    %448 = vector.broadcast %447 : vector<32x1xf32> to vector<32x32xf32>
    %449 = arith.mulf %444, %448 : vector<32x32xf32>
    %cst_413 = arith.constant dense<0.000000e+00> : vector<32x96xf32>
    %450 = tpu.matmul %449, %430, %cst_413 {dimension_numbers = #tpu.dot_dimension_numbers<[1], [0], [0], [1], [0, 0, 1, 1], [], []>} : vector<32x32xf32>, vector<32x96xf32>, vector<32x96xf32> -> vector<32x96xf32>
    %c0_414 = arith.constant 0 : index
    %c0_415 = arith.constant 0 : index
    %451 = vector.load %arg3[%c0_414, %c0_415] : memref<32x96xf32, #tpu.memory_space<vmem>>, vector<32x96xf32>
    tpu.vector_store %arg3[%c0_414, %c0_415], %450 {strides = array<i32>} : memref<32x96xf32, #tpu.memory_space<vmem>>, vector<32x96xf32>,
    return
  }
}

</mosaic_0001>

<llo_original>
// kernel: model_forward.1
$region0: #{model_forward.1}
  #allocation0 [shape = 'u32[]', space=smem, size = 0x4, offset = 0x4, fixed_abs, tag = 'smem constant byte address 0x4 - core index']
  #allocation1 [shape = 'u32[144,128]{1,0:T(1,128)}', space=vmem, size = 0x12000, scoped, tag = 'internal scratch']
  #allocation2 [shape = 'f32[16,1024]{1,0:T(8,128)}', space=vmem, size = 0x10000, scoped, tag = 'scratch operand']
  #allocation3 [shape = 'f32[96,96]{1,0:T(8,128)}', space=vmem, size = 0xc000, scoped, tag = 'scratch operand']
  %s0 = inlined_call_operand.vmem [shape: bf16[16,64], index: 0, kind: input, shape index: {}]
  %s1 = inlined_call_operand.hbm [shape: bf16[64,1024], index: 1, kind: input, shape index: {}]
  %s2 = inlined_call_operand.vmem [shape: f32[1,1024], index: 2, kind: input, shape index: {}]
  %s3 = inlined_call_operand.hbm [shape: f32[32,96], index: 3, kind: output, shape index: {}]
  %s4 = sld [smem:[#allocation0]]
  $region26: #{model_forward.1} parent=0
    _
  %s6 = ssub.s32 1, %s4
  %s7 = scalar_select 0, %s6, %s4
  $region1: #{model_forward.1} parent=0
    #allocation4 [shape = 'u8[131072]{0}', space=vmem, size = 0x20000, scoped, tag = 'input window, operand 1, single buffered']
    #allocation5 [shape = 's32[1]{0}', space=sflag, size = 0x4, scoped, tag = 'scoped memory for model_forward.1']
    #allocation6 [shape = 's32[1]{0}', space=sflag, size = 0x4, scoped, tag = 'scoped memory for model_forward.1']
    #allocation7 [shape = 'u8[16384]{0}', space=vmem, size = 0x4000, scoped, tag = 'output window, operand 0, single buffered']
    %8 = vsyncpa [#allocation5], 0
    %9 = vsyncpa [#allocation6], 0
    // Predicated region
    $region2: #{model_forward.1} parent=1 // pred_check
      _
    $region3: #{model_forward.1} parent=1 // pred_check_branch
      %11 = sbr.rel (0) target = $region5
    $region4: #{model_forward.1} parent=1 // pred_region
      _
    $region5: #{model_forward.1} parent=1 // pred_fallthru
      _
    // Predicated region
    $region6: #{model_forward.1} parent=1 // pred_check
      _
    $region7: #{model_forward.1} parent=1 // pred_check_branch
      %13 = sbr.rel (0) target = $region9
    $region8: #{model_forward.1} parent=1 // pred_region
      %s15 = ssub.s32 4096, 4096
      %16 = vsyncadd [#allocation5], %s15
      %s17 = sshll.u32 [#allocation4], 4
      %s18 = int_to_ptr.vmem [resolvable:$true] %s17
      %23 = dma.hbm_to_vmem [thread:$0]  %s1, 4096, %s18, [#allocation5], 512, 512, 32
    $region9: #{model_forward.1} parent=1 // pred_fallthru
      _
    // Predicated region
    $region10: #{model_forward.1} parent=1 // pred_check
      _
    $region11: #{model_forward.1} parent=1 // pred_check_branch
      %25 = sbr.rel (0) target = $region13
    $region12: #{model_forward.1} parent=1 // pred_region
      _
    $region13: #{model_forward.1} parent=1 // pred_fallthru
      _
    // Predicated region
    $region14: #{model_forward.1} parent=1 // pred_check
      _
    $region15: #{model_forward.1} parent=1 // pred_check_branch
      %27 = sbr.rel (0) target = $region17
    $region16: #{model_forward.1} parent=1 // pred_region
      %28 = dma.done [#allocation5], 4096
    $region17: #{model_forward.1} parent=1 // pred_fallthru
      _
    %v30 = vld [vmem:[%s0] sm:$0xf]
    %v31 = vld [vmem:[%s0 + $0x4] sm:$0xf]
    %v32 = vld [vmem:[#allocation4] sm:$0xff]
    %v33 = vld [vmem:[#allocation4 + $0x8] sm:$0xff]
    %v34 = vld [vmem:[#allocation4 + $0x10] sm:$0xff]
    %v35 = vld [vmem:[#allocation4 + $0x18] sm:$0xff]
    %v36 = vld [vmem:[#allocation4 + $0x20] sm:$0xff]
    %v37 = vld [vmem:[#allocation4 + $0x28] sm:$0xff]
    %v38 = vld [vmem:[#allocation4 + $0x30] sm:$0xff]
    %v39 = vld [vmem:[#allocation4 + $0x38] sm:$0xff]
    %v40 = vld [vmem:[#allocation4 + $0x40] sm:$0xff]
    %v41 = vld [vmem:[#allocation4 + $0x48] sm:$0xff]
    %v42 = vld [vmem:[#allocation4 + $0x50] sm:$0xff]
    %v43 = vld [vmem:[#allocation4 + $0x58] sm:$0xff]
    %v44 = vld [vmem:[#allocation4 + $0x60] sm:$0xff]
    %v45 = vld [vmem:[#allocation4 + $0x68] sm:$0xff]
    %v46 = vld [vmem:[#allocation4 + $0x70] sm:$0xff]
    %v47 = vld [vmem:[#allocation4 + $0x78] sm:$0xff]
    %v48 = vld [vmem:[#allocation4 + $0x80] sm:$0xff]
    %v49 = vld [vmem:[#allocation4 + $0x88] sm:$0xff]
    %v50 = vld [vmem:[#allocation4 + $0x90] sm:$0xff]
    %v51 = vld [vmem:[#allocation4 + $0x98] sm:$0xff]
    %v52 = vld [vmem:[#allocation4 + $0xa0] sm:$0xff]
    %v53 = vld [vmem:[#allocation4 + $0xa8] sm:$0xff]
    %v54 = vld [vmem:[#allocation4 + $0xb0] sm:$0xff]
    %v55 = vld [vmem:[#allocation4 + $0xb8] sm:$0xff]
    %v56 = vld [vmem:[#allocation4 + $0xc0] sm:$0xff]
    %v57 = vld [vmem:[#allocation4 + $0xc8] sm:$0xff]
    %v58 = vld [vmem:[#allocation4 + $0xd0] sm:$0xff]
    %v59 = vld [vmem:[#allocation4 + $0xd8] sm:$0xff]
    %v60 = vld [vmem:[#allocation4 + $0xe0] sm:$0xff]
    %v61 = vld [vmem:[#allocation4 + $0xe8] sm:$0xff]
    %v62 = vld [vmem:[#allocation4 + $0xf0] sm:$0xff]
    %v63 = vld [vmem:[#allocation4 + $0xf8] sm:$0xff]
    %v64 = vld [vmem:[%s2] sm:$0xff]
    %v66 = vlaneseq
    %v67 = vshrl.u32 %v66, 7
    %v68 = vsub.s32 0, %v67
    %v69 = vrot.slane %v64, %v68
    %v70 = vlaneseq
    %v71 = vshrl.u32 %v70, 7
    %v72 = vsub.s32 1, %v71
    %v73 = vrot.slane %v64, %v72
    %v74 = vlaneseq
    %v75 = vshrl.u32 %v74, 7
    %v76 = vsub.s32 2, %v75
    %v77 = vrot.slane %v64, %v76
    %v78 = vlaneseq
    %v79 = vshrl.u32 %v78, 7
    %v80 = vsub.s32 3, %v79
    %v81 = vrot.slane %v64, %v80
    %v82 = vlaneseq
    %v83 = vshrl.u32 %v82, 7
    %v84 = vsub.s32 4, %v83
    %v85 = vrot.slane %v64, %v84
    %v86 = vlaneseq
    %v87 = vshrl.u32 %v86, 7
    %v88 = vsub.s32 5, %v87
    %v89 = vrot.slane %v64, %v88
    %v90 = vlaneseq
    %v91 = vshrl.u32 %v90, 7
    %v92 = vsub.s32 6, %v91
    %v93 = vrot.slane %v64, %v92
    %v94 = vlaneseq
    %v95 = vshrl.u32 %v94, 7
    %v96 = vsub.s32 7, %v95
    %v97 = vrot.slane %v64, %v96
    %v108 = vunpack.c.l.b16 %v30
    %v109 = vunpack.c.l.b16 %v31
    %v110 = vpack.c.b16 %v109, %v108
    %v143 = vunpack.c.l.b16 %v32
    %v144 = vunpack.c.h.b16 %v32
    %v145 = vunpack.c.l.b16 %v33
    %v146 = vunpack.c.h.b16 %v33
    %v147 = vunpack.c.l.b16 %v34
    %v148 = vunpack.c.h.b16 %v34
    %v149 = vunpack.c.l.b16 %v35
    %v150 = vunpack.c.h.b16 %v35
    %v151 = vunpack.c.l.b16 %v36
    %v152 = vunpack.c.h.b16 %v36
    %v153 = vunpack.c.l.b16 %v37
    %v154 = vunpack.c.h.b16 %v37
    %v155 = vunpack.c.l.b16 %v38
    %v156 = vunpack.c.h.b16 %v38
    %v157 = vunpack.c.l.b16 %v39
    %v158 = vunpack.c.h.b16 %v39
    %v159 = vunpack.c.l.b16 %v40
    %v160 = vunpack.c.h.b16 %v40
    %v161 = vunpack.c.l.b16 %v41
    %v162 = vunpack.c.h.b16 %v41
    %v163 = vunpack.c.l.b16 %v42
    %v164 = vunpack.c.h.b16 %v42
    %v165 = vunpack.c.l.b16 %v43
    %v166 = vunpack.c.h.b16 %v43
    %v167 = vunpack.c.l.b16 %v44
    %v168 = vunpack.c.h.b16 %v44
    %v169 = vunpack.c.l.b16 %v45
    %v170 = vunpack.c.h.b16 %v45
    %v171 = vunpack.c.l.b16 %v46
    %v172 = vunpack.c.h.b16 %v46
    %v173 = vunpack.c.l.b16 %v47
    %v174 = vunpack.c.h.b16 %v47
    %v175 = vunpack.c.l.b16 %v48
    %v176 = vunpack.c.h.b16 %v48
    %v177 = vunpack.c.l.b16 %v49
    %v178 = vunpack.c.h.b16 %v49
    %v179 = vunpack.c.l.b16 %v50
    %v180 = vunpack.c.h.b16 %v50
    %v181 = vunpack.c.l.b16 %v51
    %v182 = vunpack.c.h.b16 %v51
    %v183 = vunpack.c.l.b16 %v52
    %v184 = vunpack.c.h.b16 %v52
    %v185 = vunpack.c.l.b16 %v53
    %v186 = vunpack.c.h.b16 %v53
    %v187 = vunpack.c.l.b16 %v54
    %v188 = vunpack.c.h.b16 %v54
    %v189 = vunpack.c.l.b16 %v55
    %v190 = vunpack.c.h.b16 %v55
    %v191 = vunpack.c.l.b16 %v56
    %v192 = vunpack.c.h.b16 %v56
    %v193 = vunpack.c.l.b16 %v57
    %v194 = vunpack.c.h.b16 %v57
    %v195 = vunpack.c.l.b16 %v58
    %v196 = vunpack.c.h.b16 %v58
    %v197 = vunpack.c.l.b16 %v59
    %v198 = vunpack.c.h.b16 %v59
    %v199 = vunpack.c.l.b16 %v60
    %v200 = vunpack.c.h.b16 %v60
    %v201 = vunpack.c.l.b16 %v61
    %v202 = vunpack.c.h.b16 %v61
    %v203 = vunpack.c.l.b16 %v62
    %v204 = vunpack.c.h.b16 %v62
    %v205 = vunpack.c.l.b16 %v63
    %v206 = vunpack.c.h.b16 %v63
    %v207 = vpack.c.b16 %v151, %v143
    %v208 = vpack.c.b16 %v152, %v144
    %v209 = vpack.c.b16 %v153, %v145
    %v210 = vpack.c.b16 %v154, %v146
    %v211 = vpack.c.b16 %v155, %v147
    %v212 = vpack.c.b16 %v156, %v148
    %v213 = vpack.c.b16 %v157, %v149
    %v214 = vpack.c.b16 %v158, %v150
    %v215 = vpack.c.b16 %v167, %v159
    %v216 = vpack.c.b16 %v168, %v160
    %v217 = vpack.c.b16 %v169, %v161
    %v218 = vpack.c.b16 %v170, %v162
    %v219 = vpack.c.b16 %v171, %v163
    %v220 = vpack.c.b16 %v172, %v164
    %v221 = vpack.c.b16 %v173, %v165
    %v222 = vpack.c.b16 %v174, %v166
    %v223 = vpack.c.b16 %v183, %v175
    %v224 = vpack.c.b16 %v184, %v176
    %v225 = vpack.c.b16 %v185, %v177
    %v226 = vpack.c.b16 %v186, %v178
    %v227 = vpack.c.b16 %v187, %v179
    %v228 = vpack.c.b16 %v188, %v180
    %v229 = vpack.c.b16 %v189, %v181
    %v230 = vpack.c.b16 %v190, %v182
    %v231 = vpack.c.b16 %v199, %v191
    %v232 = vpack.c.b16 %v200, %v192
    %v233 = vpack.c.b16 %v201, %v193
    %v234 = vpack.c.b16 %v202, %v194
    %v235 = vpack.c.b16 %v203, %v195
    %v236 = vpack.c.b16 %v204, %v196
    %v237 = vpack.c.b16 %v205, %v197
    %v238 = vpack.c.b16 %v206, %v198
    %vm271 = vcmask 523264
    %v273 = vsel %vm271, %v110, 0
    %275 = vmatprep.subr.bf16.mxu0 %v208
    %276 = vmatpush1.bf16.msra.mxu0 %v207
    %277 = vmatprep.subr.bf16.mxu0 %v216
    %278 = vmatpush1.bf16.msra.mxu0 %v215
    %279 = vmatprep.subr.bf16.mxu0 %v224
    %280 = vmatpush1.bf16.msra.mxu0 %v223
    %281 = vmatprep.subr.bf16.mxu0 %v232
    %282 = vmatpush1.bf16.msra.mxu0 %v231
    %283 = vmatprep.subr.bf16.mxu0 0
    %284 = vmatpush1.bf16.msra.mxu0 0
    %285 = vmatprep.subr.bf16.mxu0 0
    %286 = vmatpush1.bf16.msra.mxu0 0
    %287 = vmatprep.subr.bf16.mxu0 0
    %288 = vmatpush1.bf16.msra.mxu0 0
    %289 = vmatprep.subr.bf16.mxu0 0
    %290 = vmatpush1.bf16.msra.mxu0 0
    %291 = vmatprep.subr.bf16.mxu0 0
    %292 = vmatpush1.bf16.msra.mxu0 0
    %293 = vmatprep.subr.bf16.mxu0 0
    %294 = vmatpush1.bf16.msra.mxu0 0
    %295 = vmatprep.subr.bf16.mxu0 0
    %296 = vmatpush1.bf16.msra.mxu0 0
    %297 = vmatprep.subr.bf16.mxu0 0
    %298 = vmatpush1.bf16.msra.mxu0 0
    %299 = vmatprep.subr.bf16.mxu0 0
    %300 = vmatpush1.bf16.msra.mxu0 0
    %301 = vmatprep.subr.bf16.mxu0 0
    %302 = vmatpush1.bf16.msra.mxu0 0
    %303 = vmatprep.subr.bf16.mxu0 0
    %304 = vmatpush1.bf16.msra.mxu0 0
    %305 = vmatprep.subr.bf16.mxu0 0
    %306 = vmatpush1.bf16.msra.mxu0 0
    %307 = vmatprep.mubr.bf16.mxu0 0
    %308 = vmatmul.mubr.bf16.gmra.mrb[0].mxu0 %v273
    %v309 = vpop.f32.mrb[0].mxu0
    %v310 = vadd.f32 %v69, %v309
    %v311 = vpop.f32.mrb[0].mxu0
    %v312 = vadd.f32 %v73, %v311
    %v313 = vpop.f32.mrb[0].mxu0
    %v314 = vadd.f32 %v69, %v313
    %v315 = vpop.f32.mrb[0].mxu0
    %v316 = vadd.f32 %v73, %v315
    %317 = vdwg.mxu0
    %318 = vmatprep.subr.bf16.mxu0 %v210
    %319 = vmatpush1.bf16.msra.mxu0 %v209
    %320 = vmatprep.subr.bf16.mxu0 %v218
    %321 = vmatpush1.bf16.msra.mxu0 %v217
    %322 = vmatprep.subr.bf16.mxu0 %v226
    %323 = vmatpush1.bf16.msra.mxu0 %v225
    %324 = vmatprep.subr.bf16.mxu0 %v234
    %325 = vmatpush1.bf16.msra.mxu0 %v233
    %326 = vmatprep.subr.bf16.mxu0 0
    %327 = vmatpush1.bf16.msra.mxu0 0
    %328 = vmatprep.subr.bf16.mxu0 0
    %329 = vmatpush1.bf16.msra.mxu0 0
    %330 = vmatprep.subr.bf16.mxu0 0
    %331 = vmatpush1.bf16.msra.mxu0 0
    %332 = vmatprep.subr.bf16.mxu0 0
    %333 = vmatpush1.bf16.msra.mxu0 0
    %334 = vmatprep.subr.bf16.mxu0 0
    %335 = vmatpush1.bf16.msra.mxu0 0
    %336 = vmatprep.subr.bf16.mxu0 0
    %337 = vmatpush1.bf16.msra.mxu0 0
    %338 = vmatprep.subr.bf16.mxu0 0
    %339 = vmatpush1.bf16.msra.mxu0 0
    %340 = vmatprep.subr.bf16.mxu0 0
    %341 = vmatpush1.bf16.msra.mxu0 0
    %342 = vmatprep.subr.bf16.mxu0 0
    %343 = vmatpush1.bf16.msra.mxu0 0
    %344 = vmatprep.subr.bf16.mxu0 0
    %345 = vmatpush1.bf16.msra.mxu0 0
    %346 = vmatprep.subr.bf16.mxu0 0
    %347 = vmatpush1.bf16.msra.mxu0 0
    %348 = vmatprep.subr.bf16.mxu0 0
    %349 = vmatpush1.bf16.msra.mxu0 0
    %350 = vmatprep.mubr.bf16.mxu0 0
    %351 = vmatmul.mubr.bf16.gmra.mrb[0].mxu0 %v273
    %v352 = vpop.f32.mrb[0].mxu0
    %v353 = vadd.f32 %v77, %v352
    %v354 = vpop.f32.mrb[0].mxu0
    %v355 = vadd.f32 %v81, %v354
    %v356 = vpop.f32.mrb[0].mxu0
    %v357 = vadd.f32 %v77, %v356
    %v358 = vpop.f32.mrb[0].mxu0
    %v359 = vadd.f32 %v81, %v358
    %360 = vdwg.mxu0
    %361 = vmatprep.subr.bf16.mxu0 %v212
    %362 = vmatpush1.bf16.msra.mxu0 %v211
    %363 = vmatprep.subr.bf16.mxu0 %v220
    %364 = vmatpush1.bf16.msra.mxu0 %v219
    %365 = vmatprep.subr.bf16.mxu0 %v228
    %366 = vmatpush1.bf16.msra.mxu0 %v227
    %367 = vmatprep.subr.bf16.mxu0 %v236
    %368 = vmatpush1.bf16.msra.mxu0 %v235
    %369 = vmatprep.subr.bf16.mxu0 0
    %370 = vmatpush1.bf16.msra.mxu0 0
    %371 = vmatprep.subr.bf16.mxu0 0
    %372 = vmatpush1.bf16.msra.mxu0 0
    %373 = vmatprep.subr.bf16.mxu0 0
    %374 = vmatpush1.bf16.msra.mxu0 0
    %375 = vmatprep.subr.bf16.mxu0 0
    %376 = vmatpush1.bf16.msra.mxu0 0
    %377 = vmatprep.subr.bf16.mxu0 0
    %378 = vmatpush1.bf16.msra.mxu0 0
    %379 = vmatprep.subr.bf16.mxu0 0
    %380 = vmatpush1.bf16.msra.mxu0 0
    %381 = vmatprep.subr.bf16.mxu0 0
    %382 = vmatpush1.bf16.msra.mxu0 0
    %383 = vmatprep.subr.bf16.mxu0 0
    %384 = vmatpush1.bf16.msra.mxu0 0
    %385 = vmatprep.subr.bf16.mxu0 0
    %386 = vmatpush1.bf16.msra.mxu0 0
    %387 = vmatprep.subr.bf16.mxu0 0
    %388 = vmatpush1.bf16.msra.mxu0 0
    %389 = vmatprep.subr.bf16.mxu0 0
    %390 = vmatpush1.bf16.msra.mxu0 0
    %391 = vmatprep.subr.bf16.mxu0 0
    %392 = vmatpush1.bf16.msra.mxu0 0
    %393 = vmatprep.mubr.bf16.mxu0 0
    %394 = vmatmul.mubr.bf16.gmra.mrb[0].mxu0 %v273
    %v395 = vpop.f32.mrb[0].mxu0
    %v396 = vadd.f32 %v85, %v395
    %v397 = vpop.f32.mrb[0].mxu0
    %v398 = vadd.f32 %v89, %v397
    %v399 = vpop.f32.mrb[0].mxu0
    %v400 = vadd.f32 %v85, %v399
    %v401 = vpop.f32.mrb[0].mxu0
    %v402 = vadd.f32 %v89, %v401
    %403 = vdwg.mxu0
    %404 = vmatprep.subr.bf16.mxu0 %v214
    %405 = vmatpush1.bf16.msra.mxu0 %v213
    %406 = vmatprep.subr.bf16.mxu0 %v222
    %407 = vmatpush1.bf16.msra.mxu0 %v221
    %408 = vmatprep.subr.bf16.mxu0 %v230
    %409 = vmatpush1.bf16.msra.mxu0 %v229
    %410 = vmatprep.subr.bf16.mxu0 %v238
    %411 = vmatpush1.bf16.msra.mxu0 %v237
    %412 = vmatprep.subr.bf16.mxu0 0
    %413 = vmatpush1.bf16.msra.mxu0 0
    %414 = vmatprep.subr.bf16.mxu0 0
    %415 = vmatpush1.bf16.msra.mxu0 0
    %416 = vmatprep.subr.bf16.mxu0 0
    %417 = vmatpush1.bf16.msra.mxu0 0
    %418 = vmatprep.subr.bf16.mxu0 0
    %419 = vmatpush1.bf16.msra.mxu0 0
    %420 = vmatprep.subr.bf16.mxu0 0
    %421 = vmatpush1.bf16.msra.mxu0 0
    %422 = vmatprep.subr.bf16.mxu0 0
    %423 = vmatpush1.bf16.msra.mxu0 0
    %424 = vmatprep.subr.bf16.mxu0 0
    %425 = vmatpush1.bf16.msra.mxu0 0
    %426 = vmatprep.subr.bf16.mxu0 0
    %427 = vmatpush1.bf16.msra.mxu0 0
    %428 = vmatprep.subr.bf16.mxu0 0
    %429 = vmatpush1.bf16.msra.mxu0 0
    %430 = vmatprep.subr.bf16.mxu0 0
    %431 = vmatpush1.bf16.msra.mxu0 0
    %432 = vmatprep.subr.bf16.mxu0 0
    %433 = vmatpush1.bf16.msra.mxu0 0
    %434 = vmatprep.subr.bf16.mxu0 0
    %435 = vmatpush1.bf16.msra.mxu0 0
    %436 = vmatprep.mubr.bf16.mxu0 0
    %437 = vmatmul.mubr.bf16.gmra.mrb[0].mxu0 %v273
    %v438 = vpop.f32.mrb[0].mxu0
    %v439 = vadd.f32 %v93, %v438
    %v440 = vpop.f32.mrb[0].mxu0
    %v441 = vadd.f32 %v97, %v440
    %v442 = vpop.f32.mrb[0].mxu0
    %v443 = vadd.f32 %v93, %v442
    %v444 = vpop.f32.mrb[0].mxu0
    %v445 = vadd.f32 %v97, %v444
    %446 = vdwg.mxu0
    %447 = vst [vmem:[#allocation2] sm:$0xff] %v310
    %448 = vst [vmem:[#allocation2 + $0x8] sm:$0xff] %v312
    %449 = vst [vmem:[#allocation2 + $0x10] sm:$0xff] %v353
    %450 = vst [vmem:[#allocation2 + $0x18] sm:$0xff] %v355
    %451 = vst [vmem:[#allocation2 + $0x20] sm:$0xff] %v396
    %452 = vst [vmem:[#allocation2 + $0x28] sm:$0xff] %v398
    %453 = vst [vmem:[#allocation2 + $0x30] sm:$0xff] %v439
    %454 = vst [vmem:[#allocation2 + $0x38] sm:$0xff] %v441
    %455 = vst [vmem:[#allocation2 + $0x40] sm:$0xff] %v314
    %456 = vst [vmem:[#allocation2 + $0x48] sm:$0xff] %v316
    %457 = vst [vmem:[#allocation2 + $0x50] sm:$0xff] %v357
    %458 = vst [vmem:[#allocation2 + $0x58] sm:$0xff] %v359
    %459 = vst [vmem:[#allocation2 + $0x60] sm:$0xff] %v400
    %460 = vst [vmem:[#allocation2 + $0x68] sm:$0xff] %v402
    %461 = vst [vmem:[#allocation2 + $0x70] sm:$0xff] %v443
    %462 = vst [vmem:[#allocation2 + $0x78] sm:$0xff] %v445
    %v463 = vlaneseq
    %v464 = vand.u32 %v463, 127
    %v465 = vld [vmem:[#allocation2] ss:$8 sm:$0x3]
    %v467 = vlaneseq
    %v468 = vshrl.u32 %v467, 7
    %v469 = vsub.s32 0, %v468
    %v470 = vrot.slane %v465, %v469
    %vm472 = vcmask 778240
    %473 = vst.msk [vmem:[#allocation3] sm:$0x1] %vm472, %v470
    %v474 = vld [vmem:[#allocation2] ss:$8 sm:$0x3]
    %v476 = vlaneseq
    %v477 = vshrl.u32 %v476, 7
    %v478 = vsub.s32 0, %v477
    %v479 = vrot.slane %v474, %v478
    %v480 = vlaneseq
    %v481 = vshrl.u32 %v480, 7
    %v482 = vsub.s32 1, %v481
    %v483 = vrot.slane %v474, %v482
    %486 = vrot.lane.b32.xlu0 %v479, 32
    %v487 = vpop.permute.xlu0 %486
    %488 = vrot.lane.b32.xlu0 %v483, 32
    %v489 = vpop.permute.xlu0 %488
    %vm490 = vcmp.lt.s32.totalorder %v464, 32
    %v491 = vsel %vm490, %v487, %v489
    %492 = vst.msk [vmem:[#allocation3 + $0x1] sm:$0x1] %vm472, %v491
    %s493 = scalar_lea.vmem [#allocation2], 8
    %v494 = vld [vmem:[%s493] ss:$8 sm:$0x3]
    %v496 = vlaneseq
    %v497 = vshrl.u32 %v496, 7
    %v498 = vsub.s32 0, %v497
    %v499 = vrot.slane %v494, %v498
    %v500 = vlaneseq
    %v501 = vshrl.u32 %v500, 7
    %v502 = vsub.s32 1, %v501
    %v503 = vrot.slane %v494, %v502
    %506 = vrot.lane.b32.xlu0 %v499, 64
    %v507 = vpop.permute.xlu0 %506
    %508 = vrot.lane.b32.xlu0 %v503, 64
    %v509 = vpop.permute.xlu0 %508
    %vm510 = vcmp.lt.s32.totalorder %v464, 64
    %v511 = vsel %vm510, %v507, %v509
    %512 = vst.msk [vmem:[#allocation3 + $0x2] sm:$0x1] %vm472, %v511
    %s513 = scalar_lea.vmem [#allocation2], 16
    %v514 = vld [vmem:[%s513] ss:$8 sm:$0x3]
    %v516 = vlaneseq
    %v517 = vshrl.u32 %v516, 7
    %v518 = vsub.s32 0, %v517
    %v519 = vrot.slane %v514, %v518
    %v520 = vlaneseq
    %v521 = vshrl.u32 %v520, 7
    %v522 = vsub.s32 1, %v521
    %v523 = vrot.slane %v514, %v522
    %526 = vrot.lane.b32.xlu0 %v519, 96
    %v527 = vpop.permute.xlu0 %526
    %528 = vrot.lane.b32.xlu0 %v523, 96
    %v529 = vpop.permute.xlu0 %528
    %vm530 = vcmp.lt.s32.totalorder %v464, 96
    %v531 = vsel %vm530, %v527, %v529
    %532 = vst.msk [vmem:[#allocation3 + $0x3] sm:$0x1] %vm472, %v531
    %s533 = scalar_lea.vmem [#allocation2], 24
    %v534 = vld [vmem:[%s533] ss:$8 sm:$0x3]
    %v536 = vlaneseq
    %v537 = vshrl.u32 %v536, 7
    %v538 = vsub.s32 0, %v537
    %v539 = vrot.slane %v534, %v538
    %541 = vst.msk [vmem:[#allocation3 + $0x4] sm:$0x1] %vm472, %v539
    %v542 = vld [vmem:[%s533] ss:$8 sm:$0x3]
    %v544 = vlaneseq
    %v545 = vshrl.u32 %v544, 7
    %v546 = vsub.s32 0, %v545
    %v547 = vrot.slane %v542, %v546
    %v548 = vlaneseq
    %v549 = vshrl.u32 %v548, 7
    %v550 = vsub.s32 1, %v549
    %v551 = vrot.slane %v542, %v550
    %554 = vrot.lane.b32.xlu0 %v547, 32
    %v555 = vpop.permute.xlu0 %554
    %556 = vrot.lane.b32.xlu0 %v551, 32
    %v557 = vpop.permute.xlu0 %556
    %v558 = vsel %vm490, %v555, %v557
    %559 = vst.msk [vmem:[#allocation3 + $0x5] sm:$0x1] %vm472, %v558
    %s560 = scalar_lea.vmem [#allocation2], 32
    %v561 = vld [vmem:[%s560] ss:$8 sm:$0x3]
    %v563 = vlaneseq
    %v564 = vshrl.u32 %v563, 7
    %v565 = vsub.s32 0, %v564
    %v566 = vrot.slane %v561, %v565
    %v567 = vlaneseq
    %v568 = vshrl.u32 %v567, 7
    %v569 = vsub.s32 1, %v568
    %v570 = vrot.slane %v561, %v569
    %573 = vrot.lane.b32.xlu0 %v566, 64
    %v574 = vpop.permute.xlu0 %573
    %575 = vrot.lane.b32.xlu0 %v570, 64
    %v576 = vpop.permute.xlu0 %575
    %v577 = vsel %vm510, %v574, %v576
    %578 = vst.msk [vmem:[#allocation3 + $0x6] sm:$0x1] %vm472, %v577
    %s579 = scalar_lea.vmem [#allocation2], 40
    %v580 = vld [vmem:[%s579] ss:$8 sm:$0x3]
    %v582 = vlaneseq
    %v583 = vshrl.u32 %v582, 7
    %v584 = vsub.s32 0, %v583
    %v585 = vrot.slane %v580, %v584
    %v586 = vlaneseq
    %v587 = vshrl.u32 %v586, 7
    %v588 = vsub.s32 1, %v587
    %v589 = vrot.slane %v580, %v588
    %592 = vrot.lane.b32.xlu0 %v585, 96
    %v593 = vpop.permute.xlu0 %592
    %594 = vrot.lane.b32.xlu0 %v589, 96
    %v595 = vpop.permute.xlu0 %594
    %v596 = vsel %vm530, %v593, %v595
    %597 = vst.msk [vmem:[#allocation3 + $0x7] sm:$0x1] %vm472, %v596
    %s598 = scalar_lea.vmem [#allocation2], 48
    %v599 = vld [vmem:[%s598] ss:$8 sm:$0x3]
    %v601 = vlaneseq
    %v602 = vshrl.u32 %v601, 7
    %v603 = vsub.s32 0, %v602
    %v604 = vrot.slane %v599, %v603
    %606 = vst.msk [vmem:[#allocation3 + $0x8] sm:$0x1] %vm472, %v604
    %v607 = vld [vmem:[%s598] ss:$8 sm:$0x3]
    %v609 = vlaneseq
    %v610 = vshrl.u32 %v609, 7
    %v611 = vsub.s32 0, %v610
    %v612 = vrot.slane %v607, %v611
    %v613 = vlaneseq
    %v614 = vshrl.u32 %v613, 7
    %v615 = vsub.s32 1, %v614
    %v616 = vrot.slane %v607, %v615
    %619 = vrot.lane.b32.xlu0 %v612, 32
    %v620 = vpop.permute.xlu0 %619
    %621 = vrot.lane.b32.xlu0 %v616, 32
    %v622 = vpop.permute.xlu0 %621
    %v623 = vsel %vm490, %v620, %v622
    %624 = vst.msk [vmem:[#allocation3 + $0x9] sm:$0x1] %vm472, %v623
    %v625 = vld [vmem:[%s598] ss:$8 sm:$0x3]
    %v627 = vlaneseq
    %v628 = vshrl.u32 %v627, 7
    %v629 = vsub.s32 0, %v628
    %v630 = vrot.slane %v625, %v629
    %v631 = vlaneseq
    %v632 = vshrl.u32 %v631, 7
    %v633 = vsub.s32 1, %v632
    %v634 = vrot.slane %v625, %v633
    %637 = vrot.lane.b32.xlu0 %v630, 64
    %v638 = vpop.permute.xlu0 %637
    %639 = vrot.lane.b32.xlu0 %v634, 64
    %v640 = vpop.permute.xlu0 %639
    %v641 = vsel %vm510, %v640, %v638
    %s642 = scalar_lea.vmem [#allocation2], 1
    %v643 = vld [vmem:[%s642] ss:$8 sm:$0x3]
    %v645 = vlaneseq
    %v646 = vshrl.u32 %v645, 7
    %v647 = vsub.s32 0, %v646
    %v648 = vrot.slane %v643, %v647
    %v649 = vlaneseq
    %v650 = vshrl.u32 %v649, 7
    %v651 = vsub.s32 1, %v650
    %v652 = vrot.slane %v643, %v651
    %655 = vrot.lane.b32.xlu0 %v648, 64
    %v656 = vpop.permute.xlu0 %655
    %657 = vrot.lane.b32.xlu0 %v652, 64
    %v658 = vpop.permute.xlu0 %657
    %v659 = vsel %vm510, %v658, %v656
    %v660 = vsel %vm510, %v641, %v659
    %661 = vst.msk [vmem:[#allocation3 + $0xa] sm:$0x1] %vm472, %v660
    %v662 = vld [vmem:[%s642] ss:$8 sm:$0x3]
    %v664 = vlaneseq
    %v665 = vshrl.u32 %v664, 7
    %v666 = vsub.s32 0, %v665
    %v667 = vrot.slane %v662, %v666
    %v668 = vlaneseq
    %v669 = vshrl.u32 %v668, 7
    %v670 = vsub.s32 1, %v669
    %v671 = vrot.slane %v662, %v670
    %674 = vrot.lane.b32.xlu0 %v667, 96
    %v675 = vpop.permute.xlu0 %674
    %676 = vrot.lane.b32.xlu0 %v671, 96
    %v677 = vpop.permute.xlu0 %676
    %v678 = vsel %vm530, %v675, %v677
    %679 = vst.msk [vmem:[#allocation3 + $0xb] sm:$0x1] %vm472, %v678
    %s680 = scalar_lea.vmem [#allocation2], 9
    %v681 = vld [vmem:[%s680] ss:$8 sm:$0x3]
    %v683 = vlaneseq
    %v684 = vshrl.u32 %v683, 7
    %v685 = vsub.s32 0, %v684
    %v686 = vrot.slane %v681, %v685
    %688 = vst.msk [vmem:[#allocation3 + $0xc] sm:$0x1] %vm472, %v686
    %v689 = vld [vmem:[%s680] ss:$8 sm:$0x3]
    %v691 = vlaneseq
    %v692 = vshrl.u32 %v691, 7
    %v693 = vsub.s32 0, %v692
    %v694 = vrot.slane %v689, %v693
    %v695 = vlaneseq
    %v696 = vshrl.u32 %v695, 7
    %v697 = vsub.s32 1, %v696
    %v698 = vrot.slane %v689, %v697
    %701 = vrot.lane.b32.xlu0 %v694, 32
    %v702 = vpop.permute.xlu0 %701
    %703 = vrot.lane.b32.xlu0 %v698, 32
    %v704 = vpop.permute.xlu0 %703
    %v705 = vsel %vm490, %v702, %v704
    %706 = vst.msk [vmem:[#allocation3 + $0xd] sm:$0x1] %vm472, %v705
    %s707 = scalar_lea.vmem [#allocation2], 17
    %v708 = vld [vmem:[%s707] ss:$8 sm:$0x3]
    %v710 = vlaneseq
    %v711 = vshrl.u32 %v710, 7
    %v712 = vsub.s32 0, %v711
    %v713 = vrot.slane %v708, %v712
    %v714 = vlaneseq
    %v715 = vshrl.u32 %v714, 7
    %v716 = vsub.s32 1, %v715
    %v717 = vrot.slane %v708, %v716
    %720 = vrot.lane.b32.xlu0 %v713, 64
    %v721 = vpop.permute.xlu0 %720
    %722 = vrot.lane.b32.xlu0 %v717, 64
    %v723 = vpop.permute.xlu0 %722
    %v724 = vsel %vm510, %v721, %v723
    %725 = vst.msk [vmem:[#allocation3 + $0xe] sm:$0x1] %vm472, %v724
    %s726 = scalar_lea.vmem [#allocation2], 25
    %v727 = vld [vmem:[%s726] ss:$8 sm:$0x3]
    %v729 = vlaneseq
    %v730 = vshrl.u32 %v729, 7
    %v731 = vsub.s32 0, %v730
    %v732 = vrot.slane %v727, %v731
    %v733 = vlaneseq
    %v734 = vshrl.u32 %v733, 7
    %v735 = vsub.s32 1, %v734
    %v736 = vrot.slane %v727, %v735
    %739 = vrot.lane.b32.xlu0 %v732, 96
    %v740 = vpop.permute.xlu0 %739
    %741 = vrot.lane.b32.xlu0 %v736, 96
    %v742 = vpop.permute.xlu0 %741
    %v743 = vsel %vm530, %v740, %v742
    %744 = vst.msk [vmem:[#allocation3 + $0xf] sm:$0x1] %vm472, %v743
    %s745 = scalar_lea.vmem [#allocation2], 33
    %v746 = vld [vmem:[%s745] ss:$8 sm:$0x3]
    %v748 = vlaneseq
    %v749 = vshrl.u32 %v748, 7
    %v750 = vsub.s32 0, %v749
    %v751 = vrot.slane %v746, %v750
    %753 = vst.msk [vmem:[#allocation3 + $0x10] sm:$0x1] %vm472, %v751
    %v754 = vld [vmem:[%s745] ss:$8 sm:$0x3]
    %v756 = vlaneseq
    %v757 = vshrl.u32 %v756, 7
    %v758 = vsub.s32 0, %v757
    %v759 = vrot.slane %v754, %v758
    %v760 = vlaneseq
    %v761 = vshrl.u32 %v760, 7
    %v762 = vsub.s32 1, %v761
    %v763 = vrot.slane %v754, %v762
    %766 = vrot.lane.b32.xlu0 %v759, 32
    %v767 = vpop.permute.xlu0 %766
    %768 = vrot.lane.b32.xlu0 %v763, 32
    %v769 = vpop.permute.xlu0 %768
    %v770 = vsel %vm490, %v767, %v769
    %771 = vst.msk [vmem:[#allocation3 + $0x11] sm:$0x1] %vm472, %v770
    %s772 = scalar_lea.vmem [#allocation2], 41
    %v773 = vld [vmem:[%s772] ss:$8 sm:$0x3]
    %v775 = vlaneseq
    %v776 = vshrl.u32 %v775, 7
    %v777 = vsub.s32 0, %v776
    %v778 = vrot.slane %v773, %v777
    %v779 = vlaneseq
    %v780 = vshrl.u32 %v779, 7
    %v781 = vsub.s32 1, %v780
    %v782 = vrot.slane %v773, %v781
    %785 = vrot.lane.b32.xlu0 %v778, 64
    %v786 = vpop.permute.xlu0 %785
    %787 = vrot.lane.b32.xlu0 %v782, 64
    %v788 = vpop.permute.xlu0 %787
    %v789 = vsel %vm510, %v786, %v788
    %790 = vst.msk [vmem:[#allocation3 + $0x12] sm:$0x1] %vm472, %v789
    %s791 = scalar_lea.vmem [#allocation2], 49
    %v792 = vld [vmem:[%s791] ss:$8 sm:$0x3]
    %v794 = vlaneseq
    %v795 = vshrl.u32 %v794, 7
    %v796 = vsub.s32 0, %v795
    %v797 = vrot.slane %v792, %v796
    %v798 = vlaneseq
    %v799 = vshrl.u32 %v798, 7
    %v800 = vsub.s32 1, %v799
    %v801 = vrot.slane %v792, %v800
    %804 = vrot.lane.b32.xlu0 %v797, 96
    %v805 = vpop.permute.xlu0 %804
    %806 = vrot.lane.b32.xlu0 %v801, 96
    %v807 = vpop.permute.xlu0 %806
    %v808 = vsel %vm530, %v805, %v807
    %809 = vst.msk [vmem:[#allocation3 + $0x13] sm:$0x1] %vm472, %v808
    %v810 = vld [vmem:[%s791] ss:$8 sm:$0x3]
    %v812 = vlaneseq
    %v813 = vshrl.u32 %v812, 7
    %v814 = vsub.s32 1, %v813
    %v815 = vrot.slane %v810, %v814
    %817 = vst.msk [vmem:[#allocation3 + $0x14] sm:$0x1] %vm472, %v815
    %v818 = vld [vmem:[%s791] ss:$8 sm:$0x3]
    %v820 = vlaneseq
    %v821 = vshrl.u32 %v820, 7
    %v822 = vsub.s32 0, %v821
    %v823 = vrot.slane %v818, %v822
    %v824 = vlaneseq
    %v825 = vshrl.u32 %v824, 7
    %v826 = vsub.s32 1, %v825
    %v827 = vrot.slane %v818, %v826
    %830 = vrot.lane.b32.xlu0 %v823, 32
    %v831 = vpop.permute.xlu0 %830
    %832 = vrot.lane.b32.xlu0 %v827, 32
    %v833 = vpop.permute.xlu0 %832
    %v834 = vsel %vm490, %v833, %v831
    %s835 = scalar_lea.vmem [#allocation2], 2
    %v836 = vld [vmem:[%s835] ss:$8 sm:$0x3]
    %v838 = vlaneseq
    %v839 = vshrl.u32 %v838, 7
    %v840 = vsub.s32 0, %v839
    %v841 = vrot.slane %v836, %v840
    %v842 = vlaneseq
    %v843 = vshrl.u32 %v842, 7
    %v844 = vsub.s32 1, %v843
    %v845 = vrot.slane %v836, %v844
    %848 = vrot.lane.b32.xlu0 %v841, 32
    %v849 = vpop.permute.xlu0 %848
    %850 = vrot.lane.b32.xlu0 %v845, 32
    %v851 = vpop.permute.xlu0 %850
    %v852 = vsel %vm490, %v851, %v849
    %v853 = vsel %vm490, %v834, %v852
    %854 = vst.msk [vmem:[#allocation3 + $0x15] sm:$0x1] %vm472, %v853
    %v855 = vld [vmem:[%s835] ss:$8 sm:$0x3]
    %v857 = vlaneseq
    %v858 = vshrl.u32 %v857, 7
    %v859 = vsub.s32 0, %v858
    %v860 = vrot.slane %v855, %v859
    %v861 = vlaneseq
    %v862 = vshrl.u32 %v861, 7
    %v863 = vsub.s32 1, %v862
    %v864 = vrot.slane %v855, %v863
    %867 = vrot.lane.b32.xlu0 %v860, 64
    %v868 = vpop.permute.xlu0 %867
    %869 = vrot.lane.b32.xlu0 %v864, 64
    %v870 = vpop.permute.xlu0 %869
    %v871 = vsel %vm510, %v868, %v870
    %872 = vst.msk [vmem:[#allocation3 + $0x16] sm:$0x1] %vm472, %v871
    %s873 = scalar_lea.vmem [#allocation2], 10
    %v874 = vld [vmem:[%s873] ss:$8 sm:$0x3]
    %v876 = vlaneseq
    %v877 = vshrl.u32 %v876, 7
    %v878 = vsub.s32 0, %v877
    %v879 = vrot.slane %v874, %v878
    %v880 = vlaneseq
    %v881 = vshrl.u32 %v880, 7
    %v882 = vsub.s32 1, %v881
    %v883 = vrot.slane %v874, %v882
    %886 = vrot.lane.b32.xlu0 %v879, 96
    %v887 = vpop.permute.xlu0 %886
    %888 = vrot.lane.b32.xlu0 %v883, 96
    %v889 = vpop.permute.xlu0 %888
    %v890 = vsel %vm530, %v887, %v889
    %891 = vst.msk [vmem:[#allocation3 + $0x17] sm:$0x1] %vm472, %v890
    %s892 = scalar_lea.vmem [#allocation2], 18
    %v893 = vld [vmem:[%s892] ss:$8 sm:$0x3]
    %v895 = vlaneseq
    %v896 = vshrl.u32 %v895, 7
    %v897 = vsub.s32 0, %v896
    %v898 = vrot.slane %v893, %v897
    %900 = vst.msk [vmem:[#allocation3 + $0x18] sm:$0x1] %vm472, %v898
    %v901 = vld [vmem:[%s892] ss:$8 sm:$0x3]
    %v903 = vlaneseq
    %v904 = vshrl.u32 %v903, 7
    %v905 = vsub.s32 0, %v904
    %v906 = vrot.slane %v901, %v905
    %v907 = vlaneseq
    %v908 = vshrl.u32 %v907, 7
    %v909 = vsub.s32 1, %v908
    %v910 = vrot.slane %v901, %v909
    %913 = vrot.lane.b32.xlu0 %v906, 32
    %v914 = vpop.permute.xlu0 %913
    %915 = vrot.lane.b32.xlu0 %v910, 32
    %v916 = vpop.permute.xlu0 %915
    %v917 = vsel %vm490, %v914, %v916
    %918 = vst.msk [vmem:[#allocation3 + $0x19] sm:$0x1] %vm472, %v917
    %s919 = scalar_lea.vmem [#allocation2], 26
    %v920 = vld [vmem:[%s919] ss:$8 sm:$0x3]
    %v922 = vlaneseq
    %v923 = vshrl.u32 %v922, 7
    %v924 = vsub.s32 0, %v923
    %v925 = vrot.slane %v920, %v924
    %v926 = vlaneseq
    %v927 = vshrl.u32 %v926, 7
    %v928 = vsub.s32 1, %v927
    %v929 = vrot.slane %v920, %v928
    %932 = vrot.lane.b32.xlu0 %v925, 64
    %v933 = vpop.permute.xlu0 %932
    %934 = vrot.lane.b32.xlu0 %v929, 64
    %v935 = vpop.permute.xlu0 %934
    %v936 = vsel %vm510, %v933, %v935
    %937 = vst.msk [vmem:[#allocation3 + $0x1a] sm:$0x1] %vm472, %v936
    %s938 = scalar_lea.vmem [#allocation2], 34
    %v939 = vld [vmem:[%s938] ss:$8 sm:$0x3]
    %v941 = vlaneseq
    %v942 = vshrl.u32 %v941, 7
    %v943 = vsub.s32 0, %v942
    %v944 = vrot.slane %v939, %v943
    %v945 = vlaneseq
    %v946 = vshrl.u32 %v945, 7
    %v947 = vsub.s32 1, %v946
    %v948 = vrot.slane %v939, %v947
    %951 = vrot.lane.b32.xlu0 %v944, 96
    %v952 = vpop.permute.xlu0 %951
    %953 = vrot.lane.b32.xlu0 %v948, 96
    %v954 = vpop.permute.xlu0 %953
    %v955 = vsel %vm530, %v952, %v954
    %956 = vst.msk [vmem:[#allocation3 + $0x1b] sm:$0x1] %vm472, %v955
    %s957 = scalar_lea.vmem [#allocation2], 42
    %v958 = vld [vmem:[%s957] ss:$8 sm:$0x3]
    %v960 = vlaneseq
    %v961 = vshrl.u32 %v960, 7
    %v962 = vsub.s32 0, %v961
    %v963 = vrot.slane %v958, %v962
    %965 = vst.msk [vmem:[#allocation3 + $0x1c] sm:$0x1] %vm472, %v963
    %v966 = vld [vmem:[%s957] ss:$8 sm:$0x3]
    %v968 = vlaneseq
    %v969 = vshrl.u32 %v968, 7
    %v970 = vsub.s32 0, %v969
    %v971 = vrot.slane %v966, %v970
    %v972 = vlaneseq
    %v973 = vshrl.u32 %v972, 7
    %v974 = vsub.s32 1, %v973
    %v975 = vrot.slane %v966, %v974
    %978 = vrot.lane.b32.xlu0 %v971, 32
    %v979 = vpop.permute.xlu0 %978
    %980 = vrot.lane.b32.xlu0 %v975, 32
    %v981 = vpop.permute.xlu0 %980
    %v982 = vsel %vm490, %v979, %v981
    %983 = vst.msk [vmem:[#allocation3 + $0x1d] sm:$0x1] %vm472, %v982
    %s984 = scalar_lea.vmem [#allocation2], 50
    %v985 = vld [vmem:[%s984] ss:$8 sm:$0x3]
    %v987 = vlaneseq
    %v988 = vshrl.u32 %v987, 7
    %v989 = vsub.s32 0, %v988
    %v990 = vrot.slane %v985, %v989
    %v991 = vlaneseq
    %v992 = vshrl.u32 %v991, 7
    %v993 = vsub.s32 1, %v992
    %v994 = vrot.slane %v985, %v993
    %997 = vrot.lane.b32.xlu0 %v990, 64
    %v998 = vpop.permute.xlu0 %997
    %999 = vrot.lane.b32.xlu0 %v994, 64
    %v1000 = vpop.permute.xlu0 %999
    %v1001 = vsel %vm510, %v998, %v1000
    %1002 = vst.msk [vmem:[#allocation3 + $0x1e] sm:$0x1] %vm472, %v1001
    %v1003 = vld [vmem:[%s984] ss:$8 sm:$0x3]
    %v1005 = vlaneseq
    %v1006 = vshrl.u32 %v1005, 7
    %v1007 = vsub.s32 0, %v1006
    %v1008 = vrot.slane %v1003, %v1007
    %v1009 = vlaneseq
    %v1010 = vshrl.u32 %v1009, 7
    %v1011 = vsub.s32 1, %v1010
    %v1012 = vrot.slane %v1003, %v1011
    %1015 = vrot.lane.b32.xlu0 %v1008, 96
    %v1016 = vpop.permute.xlu0 %1015
    %1017 = vrot.lane.b32.xlu0 %v1012, 96
    %v1018 = vpop.permute.xlu0 %1017
    %v1019 = vsel %vm530, %v1018, %v1016
    %1020 = vst.msk [vmem:[#allocation3 + $0x1f] sm:$0x1] %vm472, %v1019
    %s1021 = scalar_lea.vmem [#allocation2], 3
    %v1022 = vld [vmem:[%s1021] ss:$8 sm:$0x3]
    %v1024 = vlaneseq
    %v1025 = vshrl.u32 %v1024, 7
    %v1026 = vsub.s32 0, %v1025
    %v1027 = vrot.slane %v1022, %v1026
    %1029 = vst.msk [vmem:[#allocation3 + $0x20] sm:$0x1] %vm472, %v1027
    %v1030 = vld [vmem:[%s1021] ss:$8 sm:$0x3]
    %v1032 = vlaneseq
    %v1033 = vshrl.u32 %v1032, 7
    %v1034 = vsub.s32 0, %v1033
    %v1035 = vrot.slane %v1030, %v1034
    %v1036 = vlaneseq
    %v1037 = vshrl.u32 %v1036, 7
    %v1038 = vsub.s32 1, %v1037
    %v1039 = vrot.slane %v1030, %v1038
    %1042 = vrot.lane.b32.xlu0 %v1035, 32
    %v1043 = vpop.permute.xlu0 %1042
    %1044 = vrot.lane.b32.xlu0 %v1039, 32
    %v1045 = vpop.permute.xlu0 %1044
    %v1046 = vsel %vm490, %v1043, %v1045
    %1047 = vst.msk [vmem:[#allocation3 + $0x21] sm:$0x1] %vm472, %v1046
    %s1048 = scalar_lea.vmem [#allocation2], 11
    %v1049 = vld [vmem:[%s1048] ss:$8 sm:$0x3]
    %v1051 = vlaneseq
    %v1052 = vshrl.u32 %v1051, 7
    %v1053 = vsub.s32 0, %v1052
    %v1054 = vrot.slane %v1049, %v1053
    %v1055 = vlaneseq
    %v1056 = vshrl.u32 %v1055, 7
    %v1057 = vsub.s32 1, %v1056
    %v1058 = vrot.slane %v1049, %v1057
    %1061 = vrot.lane.b32.xlu0 %v1054, 64
    %v1062 = vpop.permute.xlu0 %1061
    %1063 = vrot.lane.b32.xlu0 %v1058, 64
    %v1064 = vpop.permute.xlu0 %1063
    %v1065 = vsel %vm510, %v1062, %v1064
    %1066 = vst.msk [vmem:[#allocation3 + $0x22] sm:$0x1] %vm472, %v1065
    %s1067 = scalar_lea.vmem [#allocation2], 19
    %v1068 = vld [vmem:[%s1067] ss:$8 sm:$0x3]
    %v1070 = vlaneseq
    %v1071 = vshrl.u32 %v1070, 7
    %v1072 = vsub.s32 0, %v1071
    %v1073 = vrot.slane %v1068, %v1072
    %v1074 = vlaneseq
    %v1075 = vshrl.u32 %v1074, 7
    %v1076 = vsub.s32 1, %v1075
    %v1077 = vrot.slane %v1068, %v1076
    %1080 = vrot.lane.b32.xlu0 %v1073, 96
    %v1081 = vpop.permute.xlu0 %1080
    %1082 = vrot.lane.b32.xlu0 %v1077, 96
    %v1083 = vpop.permute.xlu0 %1082
    %v1084 = vsel %vm530, %v1081, %v1083
    %1085 = vst.msk [vmem:[#allocation3 + $0x23] sm:$0x1] %vm472, %v1084
    %s1086 = scalar_lea.vmem [#allocation2], 27
    %v1087 = vld [vmem:[%s1086] ss:$8 sm:$0x3]
    %v1089 = vlaneseq
    %v1090 = vshrl.u32 %v1089, 7
    %v1091 = vsub.s32 0, %v1090
    %v1092 = vrot.slane %v1087, %v1091
    %1094 = vst.msk [vmem:[#allocation3 + $0x24] sm:$0x1] %vm472, %v1092
    %v1095 = vld [vmem:[%s1086] ss:$8 sm:$0x3]
    %v1097 = vlaneseq
    %v1098 = vshrl.u32 %v1097, 7
    %v1099 = vsub.s32 0, %v1098
    %v1100 = vrot.slane %v1095, %v1099
    %v1101 = vlaneseq
    %v1102 = vshrl.u32 %v1101, 7
    %v1103 = vsub.s32 1, %v1102
    %v1104 = vrot.slane %v1095, %v1103
    %1107 = vrot.lane.b32.xlu0 %v1100, 32
    %v1108 = vpop.permute.xlu0 %1107
    %1109 = vrot.lane.b32.xlu0 %v1104, 32
    %v1110 = vpop.permute.xlu0 %1109
    %v1111 = vsel %vm490, %v1108, %v1110
    %1112 = vst.msk [vmem:[#allocation3 + $0x25] sm:$0x1] %vm472, %v1111
    %s1113 = scalar_lea.vmem [#allocation2], 35
    %v1114 = vld [vmem:[%s1113] ss:$8 sm:$0x3]
    %v1116 = vlaneseq
    %v1117 = vshrl.u32 %v1116, 7
    %v1118 = vsub.s32 0, %v1117
    %v1119 = vrot.slane %v1114, %v1118
    %v1120 = vlaneseq
    %v1121 = vshrl.u32 %v1120, 7
    %v1122 = vsub.s32 1, %v1121
    %v1123 = vrot.slane %v1114, %v1122
    %1126 = vrot.lane.b32.xlu0 %v1119, 64
    %v1127 = vpop.permute.xlu0 %1126
    %1128 = vrot.lane.b32.xlu0 %v1123, 64
    %v1129 = vpop.permute.xlu0 %1128
    %v1130 = vsel %vm510, %v1127, %v1129
    %1131 = vst.msk [vmem:[#allocation3 + $0x26] sm:$0x1] %vm472, %v1130
    %s1132 = scalar_lea.vmem [#allocation2], 43
    %v1133 = vld [vmem:[%s1132] ss:$8 sm:$0x3]
    %v1135 = vlaneseq
    %v1136 = vshrl.u32 %v1135, 7
    %v1137 = vsub.s32 0, %v1136
    %v1138 = vrot.slane %v1133, %v1137
    %v1139 = vlaneseq
    %v1140 = vshrl.u32 %v1139, 7
    %v1141 = vsub.s32 1, %v1140
    %v1142 = vrot.slane %v1133, %v1141
    %1145 = vrot.lane.b32.xlu0 %v1138, 96
    %v1146 = vpop.permute.xlu0 %1145
    %1147 = vrot.lane.b32.xlu0 %v1142, 96
    %v1148 = vpop.permute.xlu0 %1147
    %v1149 = vsel %vm530, %v1146, %v1148
    %1150 = vst.msk [vmem:[#allocation3 + $0x27] sm:$0x1] %vm472, %v1149
    %s1151 = scalar_lea.vmem [#allocation2], 51
    %v1152 = vld [vmem:[%s1151] ss:$8 sm:$0x3]
    %v1154 = vlaneseq
    %v1155 = vshrl.u32 %v1154, 7
    %v1156 = vsub.s32 0, %v1155
    %v1157 = vrot.slane %v1152, %v1156
    %1159 = vst.msk [vmem:[#allocation3 + $0x28] sm:$0x1] %vm472, %v1157
    %v1160 = vld [vmem:[%s1151] ss:$8 sm:$0x3]
    %v1162 = vlaneseq
    %v1163 = vshrl.u32 %v1162, 7
    %v1164 = vsub.s32 0, %v1163
    %v1165 = vrot.slane %v1160, %v1164
    %v1166 = vlaneseq
    %v1167 = vshrl.u32 %v1166, 7
    %v1168 = vsub.s32 1, %v1167
    %v1169 = vrot.slane %v1160, %v1168
    %1172 = vrot.lane.b32.xlu0 %v1165, 32
    %v1173 = vpop.permute.xlu0 %1172
    %1174 = vrot.lane.b32.xlu0 %v1169, 32
    %v1175 = vpop.permute.xlu0 %1174
    %v1176 = vsel %vm490, %v1173, %v1175
    %1177 = vst.msk [vmem:[#allocation3 + $0x29] sm:$0x1] %vm472, %v1176
    %v1178 = vld [vmem:[%s1151] ss:$8 sm:$0x3]
    %v1180 = vlaneseq
    %v1181 = vshrl.u32 %v1180, 7
    %v1182 = vsub.s32 0, %v1181
    %v1183 = vrot.slane %v1178, %v1182
    %v1184 = vlaneseq
    %v1185 = vshrl.u32 %v1184, 7
    %v1186 = vsub.s32 1, %v1185
    %v1187 = vrot.slane %v1178, %v1186
    %1190 = vrot.lane.b32.xlu0 %v1183, 64
    %v1191 = vpop.permute.xlu0 %1190
    %1192 = vrot.lane.b32.xlu0 %v1187, 64
    %v1193 = vpop.permute.xlu0 %1192
    %v1194 = vsel %vm510, %v1193, %v1191
    %s1195 = scalar_lea.vmem [#allocation2], 4
    %v1196 = vld [vmem:[%s1195] ss:$8 sm:$0x3]
    %v1198 = vlaneseq
    %v1199 = vshrl.u32 %v1198, 7
    %v1200 = vsub.s32 0, %v1199
    %v1201 = vrot.slane %v1196, %v1200
    %v1202 = vlaneseq
    %v1203 = vshrl.u32 %v1202, 7
    %v1204 = vsub.s32 1, %v1203
    %v1205 = vrot.slane %v1196, %v1204
    %1208 = vrot.lane.b32.xlu0 %v1201, 64
    %v1209 = vpop.permute.xlu0 %1208
    %1210 = vrot.lane.b32.xlu0 %v1205, 64
    %v1211 = vpop.permute.xlu0 %1210
    %v1212 = vsel %vm510, %v1211, %v1209
    %v1213 = vsel %vm510, %v1194, %v1212
    %1214 = vst.msk [vmem:[#allocation3 + $0x2a] sm:$0x1] %vm472, %v1213
    %v1215 = vld [vmem:[%s1195] ss:$8 sm:$0x3]
    %v1217 = vlaneseq
    %v1218 = vshrl.u32 %v1217, 7
    %v1219 = vsub.s32 0, %v1218
    %v1220 = vrot.slane %v1215, %v1219
    %v1221 = vlaneseq
    %v1222 = vshrl.u32 %v1221, 7
    %v1223 = vsub.s32 1, %v1222
    %v1224 = vrot.slane %v1215, %v1223
    %1227 = vrot.lane.b32.xlu0 %v1220, 96
    %v1228 = vpop.permute.xlu0 %1227
    %1229 = vrot.lane.b32.xlu0 %v1224, 96
    %v1230 = vpop.permute.xlu0 %1229
    %v1231 = vsel %vm530, %v1228, %v1230
    %1232 = vst.msk [vmem:[#allocation3 + $0x2b] sm:$0x1] %vm472, %v1231
    %s1233 = scalar_lea.vmem [#allocation2], 12
    %v1234 = vld [vmem:[%s1233] ss:$8 sm:$0x3]
    %v1236 = vlaneseq
    %v1237 = vshrl.u32 %v1236, 7
    %v1238 = vsub.s32 0, %v1237
    %v1239 = vrot.slane %v1234, %v1238
    %1241 = vst.msk [vmem:[#allocation3 + $0x2c] sm:$0x1] %vm472, %v1239
    %v1242 = vld [vmem:[%s1233] ss:$8 sm:$0x3]
    %v1244 = vlaneseq
    %v1245 = vshrl.u32 %v1244, 7
    %v1246 = vsub.s32 0, %v1245
    %v1247 = vrot.slane %v1242, %v1246
    %v1248 = vlaneseq
    %v1249 = vshrl.u32 %v1248, 7
    %v1250 = vsub.s32 1, %v1249
    %v1251 = vrot.slane %v1242, %v1250
    %1254 = vrot.lane.b32.xlu0 %v1247, 32
    %v1255 = vpop.permute.xlu0 %1254
    %1256 = vrot.lane.b32.xlu0 %v1251, 32
    %v1257 = vpop.permute.xlu0 %1256
    %v1258 = vsel %vm490, %v1255, %v1257
    %1259 = vst.msk [vmem:[#allocation3 + $0x2d] sm:$0x1] %vm472, %v1258
    %s1260 = scalar_lea.vmem [#allocation2], 20
    %v1261 = vld [vmem:[%s1260] ss:$8 sm:$0x3]
    %v1263 = vlaneseq
    %v1264 = vshrl.u32 %v1263, 7
    %v1265 = vsub.s32 0, %v1264
    %v1266 = vrot.slane %v1261, %v1265
    %v1267 = vlaneseq
    %v1268 = vshrl.u32 %v1267, 7
    %v1269 = vsub.s32 1, %v1268
    %v1270 = vrot.slane %v1261, %v1269
    %1273 = vrot.lane.b32.xlu0 %v1266, 64
    %v1274 = vpop.permute.xlu0 %1273
    %1275 = vrot.lane.b32.xlu0 %v1270, 64
    %v1276 = vpop.permute.xlu0 %1275
    %v1277 = vsel %vm510, %v1274, %v1276
    %1278 = vst.msk [vmem:[#allocation3 + $0x2e] sm:$0x1] %vm472, %v1277
    %s1279 = scalar_lea.vmem [#allocation2], 28
    %v1280 = vld [vmem:[%s1279] ss:$8 sm:$0x3]
    %v1282 = vlaneseq
    %v1283 = vshrl.u32 %v1282, 7
    %v1284 = vsub.s32 0, %v1283
    %v1285 = vrot.slane %v1280, %v1284
    %v1286 = vlaneseq
    %v1287 = vshrl.u32 %v1286, 7
    %v1288 = vsub.s32 1, %v1287
    %v1289 = vrot.slane %v1280, %v1288
    %1292 = vrot.lane.b32.xlu0 %v1285, 96
    %v1293 = vpop.permute.xlu0 %1292
    %1294 = vrot.lane.b32.xlu0 %v1289, 96
    %v1295 = vpop.permute.xlu0 %1294
    %v1296 = vsel %vm530, %v1293, %v1295
    %1297 = vst.msk [vmem:[#allocation3 + $0x2f] sm:$0x1] %vm472, %v1296
    %s1298 = scalar_lea.vmem [#allocation2], 36
    %v1299 = vld [vmem:[%s1298] ss:$8 sm:$0x3]
    %v1301 = vlaneseq
    %v1302 = vshrl.u32 %v1301, 7
    %v1303 = vsub.s32 0, %v1302
    %v1304 = vrot.slane %v1299, %v1303
    %1306 = vst.msk [vmem:[#allocation3 + $0x30] sm:$0x1] %vm472, %v1304
    %v1307 = vld [vmem:[%s1298] ss:$8 sm:$0x3]
    %v1309 = vlaneseq
    %v1310 = vshrl.u32 %v1309, 7
    %v1311 = vsub.s32 0, %v1310
    %v1312 = vrot.slane %v1307, %v1311
    %v1313 = vlaneseq
    %v1314 = vshrl.u32 %v1313, 7
    %v1315 = vsub.s32 1, %v1314
    %v1316 = vrot.slane %v1307, %v1315
    %1319 = vrot.lane.b32.xlu0 %v1312, 32
    %v1320 = vpop.permute.xlu0 %1319
    %1321 = vrot.lane.b32.xlu0 %v1316, 32
    %v1322 = vpop.permute.xlu0 %1321
    %v1323 = vsel %vm490, %v1320, %v1322
    %1324 = vst.msk [vmem:[#allocation3 + $0x31] sm:$0x1] %vm472, %v1323
    %s1325 = scalar_lea.vmem [#allocation2], 44
    %v1326 = vld [vmem:[%s1325] ss:$8 sm:$0x3]
    %v1328 = vlaneseq
    %v1329 = vshrl.u32 %v1328, 7
    %v1330 = vsub.s32 0, %v1329
    %v1331 = vrot.slane %v1326, %v1330
    %v1332 = vlaneseq
    %v1333 = vshrl.u32 %v1332, 7
    %v1334 = vsub.s32 1, %v1333
    %v1335 = vrot.slane %v1326, %v1334
    %1338 = vrot.lane.b32.xlu0 %v1331, 64
    %v1339 = vpop.permute.xlu0 %1338
    %1340 = vrot.lane.b32.xlu0 %v1335, 64
    %v1341 = vpop.permute.xlu0 %1340
    %v1342 = vsel %vm510, %v1339, %v1341
    %1343 = vst.msk [vmem:[#allocation3 + $0x32] sm:$0x1] %vm472, %v1342
    %s1344 = scalar_lea.vmem [#allocation2], 52
    %v1345 = vld [vmem:[%s1344] ss:$8 sm:$0x3]
    %v1347 = vlaneseq
    %v1348 = vshrl.u32 %v1347, 7
    %v1349 = vsub.s32 0, %v1348
    %v1350 = vrot.slane %v1345, %v1349
    %v1351 = vlaneseq
    %v1352 = vshrl.u32 %v1351, 7
    %v1353 = vsub.s32 1, %v1352
    %v1354 = vrot.slane %v1345, %v1353
    %1357 = vrot.lane.b32.xlu0 %v1350, 96
    %v1358 = vpop.permute.xlu0 %1357
    %1359 = vrot.lane.b32.xlu0 %v1354, 96
    %v1360 = vpop.permute.xlu0 %1359
    %v1361 = vsel %vm530, %v1358, %v1360
    %1362 = vst.msk [vmem:[#allocation3 + $0x33] sm:$0x1] %vm472, %v1361
    %v1363 = vld [vmem:[%s1344] ss:$8 sm:$0x3]
    %v1365 = vlaneseq
    %v1366 = vshrl.u32 %v1365, 7
    %v1367 = vsub.s32 1, %v1366
    %v1368 = vrot.slane %v1363, %v1367
    %1370 = vst.msk [vmem:[#allocation3 + $0x34] sm:$0x1] %vm472, %v1368
    %v1371 = vld [vmem:[%s1344] ss:$8 sm:$0x3]
    %v1373 = vlaneseq
    %v1374 = vshrl.u32 %v1373, 7
    %v1375 = vsub.s32 0, %v1374
    %v1376 = vrot.slane %v1371, %v1375
    %v1377 = vlaneseq
    %v1378 = vshrl.u32 %v1377, 7
    %v1379 = vsub.s32 1, %v1378
    %v1380 = vrot.slane %v1371, %v1379
    %1383 = vrot.lane.b32.xlu0 %v1376, 32
    %v1384 = vpop.permute.xlu0 %1383
    %1385 = vrot.lane.b32.xlu0 %v1380, 32
    %v1386 = vpop.permute.xlu0 %1385
    %v1387 = vsel %vm490, %v1386, %v1384
    %s1388 = scalar_lea.vmem [#allocation2], 5
    %v1389 = vld [vmem:[%s1388] ss:$8 sm:$0x3]
    %v1391 = vlaneseq
    %v1392 = vshrl.u32 %v1391, 7
    %v1393 = vsub.s32 0, %v1392
    %v1394 = vrot.slane %v1389, %v1393
    %v1395 = vlaneseq
    %v1396 = vshrl.u32 %v1395, 7
    %v1397 = vsub.s32 1, %v1396
    %v1398 = vrot.slane %v1389, %v1397
    %1401 = vrot.lane.b32.xlu0 %v1394, 32
    %v1402 = vpop.permute.xlu0 %1401
    %1403 = vrot.lane.b32.xlu0 %v1398, 32
    %v1404 = vpop.permute.xlu0 %1403
    %v1405 = vsel %vm490, %v1404, %v1402
    %v1406 = vsel %vm490, %v1387, %v1405
    %1407 = vst.msk [vmem:[#allocation3 + $0x35] sm:$0x1] %vm472, %v1406
    %v1408 = vld [vmem:[%s1388] ss:$8 sm:$0x3]
    %v1410 = vlaneseq
    %v1411 = vshrl.u32 %v1410, 7
    %v1412 = vsub.s32 0, %v1411
    %v1413 = vrot.slane %v1408, %v1412
    %v1414 = vlaneseq
    %v1415 = vshrl.u32 %v1414, 7
    %v1416 = vsub.s32 1, %v1415
    %v1417 = vrot.slane %v1408, %v1416
    %1420 = vrot.lane.b32.xlu0 %v1413, 64
    %v1421 = vpop.permute.xlu0 %1420
    %1422 = vrot.lane.b32.xlu0 %v1417, 64
    %v1423 = vpop.permute.xlu0 %1422
    %v1424 = vsel %vm510, %v1421, %v1423
    %1425 = vst.msk [vmem:[#allocation3 + $0x36] sm:$0x1] %vm472, %v1424
    %s1426 = scalar_lea.vmem [#allocation2], 13
    %v1427 = vld [vmem:[%s1426] ss:$8 sm:$0x3]
    %v1429 = vlaneseq
    %v1430 = vshrl.u32 %v1429, 7
    %v1431 = vsub.s32 0, %v1430
    %v1432 = vrot.slane %v1427, %v1431
    %v1433 = vlaneseq
    %v1434 = vshrl.u32 %v1433, 7
    %v1435 = vsub.s32 1, %v1434
    %v1436 = vrot.slane %v1427, %v1435
    %1439 = vrot.lane.b32.xlu0 %v1432, 96
    %v1440 = vpop.permute.xlu0 %1439
    %1441 = vrot.lane.b32.xlu0 %v1436, 96
    %v1442 = vpop.permute.xlu0 %1441
    %v1443 = vsel %vm530, %v1440, %v1442
    %1444 = vst.msk [vmem:[#allocation3 + $0x37] sm:$0x1] %vm472, %v1443
    %s1445 = scalar_lea.vmem [#allocation2], 21
    %v1446 = vld [vmem:[%s1445] ss:$8 sm:$0x3]
    %v1448 = vlaneseq
    %v1449 = vshrl.u32 %v1448, 7
    %v1450 = vsub.s32 0, %v1449
    %v1451 = vrot.slane %v1446, %v1450
    %1453 = vst.msk [vmem:[#allocation3 + $0x38] sm:$0x1] %vm472, %v1451
    %v1454 = vld [vmem:[%s1445] ss:$8 sm:$0x3]
    %v1456 = vlaneseq
    %v1457 = vshrl.u32 %v1456, 7
    %v1458 = vsub.s32 0, %v1457
    %v1459 = vrot.slane %v1454, %v1458
    %v1460 = vlaneseq
    %v1461 = vshrl.u32 %v1460, 7
    %v1462 = vsub.s32 1, %v1461
    %v1463 = vrot.slane %v1454, %v1462
    %1466 = vrot.lane.b32.xlu0 %v1459, 32
    %v1467 = vpop.permute.xlu0 %1466
    %1468 = vrot.lane.b32.xlu0 %v1463, 32
    %v1469 = vpop.permute.xlu0 %1468
    %v1470 = vsel %vm490, %v1467, %v1469
    %1471 = vst.msk [vmem:[#allocation3 + $0x39] sm:$0x1] %vm472, %v1470
    %s1472 = scalar_lea.vmem [#allocation2], 29
    %v1473 = vld [vmem:[%s1472] ss:$8 sm:$0x3]
    %v1475 = vlaneseq
    %v1476 = vshrl.u32 %v1475, 7
    %v1477 = vsub.s32 0, %v1476
    %v1478 = vrot.slane %v1473, %v1477
    %v1479 = vlaneseq
    %v1480 = vshrl.u32 %v1479, 7
    %v1481 = vsub.s32 1, %v1480
    %v1482 = vrot.slane %v1473, %v1481
    %1485 = vrot.lane.b32.xlu0 %v1478, 64
    %v1486 = vpop.permute.xlu0 %1485
    %1487 = vrot.lane.b32.xlu0 %v1482, 64
    %v1488 = vpop.permute.xlu0 %1487
    %v1489 = vsel %vm510, %v1486, %v1488
    %1490 = vst.msk [vmem:[#allocation3 + $0x3a] sm:$0x1] %vm472, %v1489
    %s1491 = scalar_lea.vmem [#allocation2], 37
    %v1492 = vld [vmem:[%s1491] ss:$8 sm:$0x3]
    %v1494 = vlaneseq
    %v1495 = vshrl.u32 %v1494, 7
    %v1496 = vsub.s32 0, %v1495
    %v1497 = vrot.slane %v1492, %v1496
    %v1498 = vlaneseq
    %v1499 = vshrl.u32 %v1498, 7
    %v1500 = vsub.s32 1, %v1499
    %v1501 = vrot.slane %v1492, %v1500
    %1504 = vrot.lane.b32.xlu0 %v1497, 96
    %v1505 = vpop.permute.xlu0 %1504
    %1506 = vrot.lane.b32.xlu0 %v1501, 96
    %v1507 = vpop.permute.xlu0 %1506
    %v1508 = vsel %vm530, %v1505, %v1507
    %1509 = vst.msk [vmem:[#allocation3 + $0x3b] sm:$0x1] %vm472, %v1508
    %s1510 = scalar_lea.vmem [#allocation2], 45
    %v1511 = vld [vmem:[%s1510] ss:$8 sm:$0x3]
    %v1513 = vlaneseq
    %v1514 = vshrl.u32 %v1513, 7
    %v1515 = vsub.s32 0, %v1514
    %v1516 = vrot.slane %v1511, %v1515
    %1518 = vst.msk [vmem:[#allocation3 + $0x3c] sm:$0x1] %vm472, %v1516
    %v1519 = vld [vmem:[%s1510] ss:$8 sm:$0x3]
    %v1521 = vlaneseq
    %v1522 = vshrl.u32 %v1521, 7
    %v1523 = vsub.s32 0, %v1522
    %v1524 = vrot.slane %v1519, %v1523
    %v1525 = vlaneseq
    %v1526 = vshrl.u32 %v1525, 7
    %v1527 = vsub.s32 1, %v1526
    %v1528 = vrot.slane %v1519, %v1527
    %1531 = vrot.lane.b32.xlu0 %v1524, 32
    %v1532 = vpop.permute.xlu0 %1531
    %1533 = vrot.lane.b32.xlu0 %v1528, 32
    %v1534 = vpop.permute.xlu0 %1533
    %v1535 = vsel %vm490, %v1532, %v1534
    %1536 = vst.msk [vmem:[#allocation3 + $0x3d] sm:$0x1] %vm472, %v1535
    %s1537 = scalar_lea.vmem [#allocation2], 53
    %v1538 = vld [vmem:[%s1537] ss:$8 sm:$0x3]
    %v1540 = vlaneseq
    %v1541 = vshrl.u32 %v1540, 7
    %v1542 = vsub.s32 0, %v1541
    %v1543 = vrot.slane %v1538, %v1542
    %v1544 = vlaneseq
    %v1545 = vshrl.u32 %v1544, 7
    %v1546 = vsub.s32 1, %v1545
    %v1547 = vrot.slane %v1538, %v1546
    %1550 = vrot.lane.b32.xlu0 %v1543, 64
    %v1551 = vpop.permute.xlu0 %1550
    %1552 = vrot.lane.b32.xlu0 %v1547, 64
    %v1553 = vpop.permute.xlu0 %1552
    %v1554 = vsel %vm510, %v1551, %v1553
    %1555 = vst.msk [vmem:[#allocation3 + $0x3e] sm:$0x1] %vm472, %v1554
    %v1556 = vld [vmem:[%s1537] ss:$8 sm:$0x3]
    %v1558 = vlaneseq
    %v1559 = vshrl.u32 %v1558, 7
    %v1560 = vsub.s32 0, %v1559
    %v1561 = vrot.slane %v1556, %v1560
    %v1562 = vlaneseq
    %v1563 = vshrl.u32 %v1562, 7
    %v1564 = vsub.s32 1, %v1563
    %v1565 = vrot.slane %v1556, %v1564
    %1568 = vrot.lane.b32.xlu0 %v1561, 96
    %v1569 = vpop.permute.xlu0 %1568
    %1570 = vrot.lane.b32.xlu0 %v1565, 96
    %v1571 = vpop.permute.xlu0 %1570
    %v1572 = vsel %vm530, %v1571, %v1569
    %1573 = vst.msk [vmem:[#allocation3 + $0x3f] sm:$0x1] %vm472, %v1572
    %s1574 = scalar_lea.vmem [#allocation2], 6
    %v1575 = vld [vmem:[%s1574] ss:$8 sm:$0x3]
    %v1577 = vlaneseq
    %v1578 = vshrl.u32 %v1577, 7
    %v1579 = vsub.s32 0, %v1578
    %v1580 = vrot.slane %v1575, %v1579
    %1582 = vst.msk [vmem:[#allocation3 + $0x40] sm:$0x1] %vm472, %v1580
    %v1583 = vld [vmem:[%s1574] ss:$8 sm:$0x3]
    %v1585 = vlaneseq
    %v1586 = vshrl.u32 %v1585, 7
    %v1587 = vsub.s32 0, %v1586
    %v1588 = vrot.slane %v1583, %v1587
    %v1589 = vlaneseq
    %v1590 = vshrl.u32 %v1589, 7
    %v1591 = vsub.s32 1, %v1590
    %v1592 = vrot.slane %v1583, %v1591
    %1595 = vrot.lane.b32.xlu0 %v1588, 32
    %v1596 = vpop.permute.xlu0 %1595
    %1597 = vrot.lane.b32.xlu0 %v1592, 32
    %v1598 = vpop.permute.xlu0 %1597
    %v1599 = vsel %vm490, %v1596, %v1598
    %1600 = vst.msk [vmem:[#allocation3 + $0x41] sm:$0x1] %vm472, %v1599
    %s1601 = scalar_lea.vmem [#allocation2], 14
    %v1602 = vld [vmem:[%s1601] ss:$8 sm:$0x3]
    %v1604 = vlaneseq
    %v1605 = vshrl.u32 %v1604, 7
    %v1606 = vsub.s32 0, %v1605
    %v1607 = vrot.slane %v1602, %v1606
    %v1608 = vlaneseq
    %v1609 = vshrl.u32 %v1608, 7
    %v1610 = vsub.s32 1, %v1609
    %v1611 = vrot.slane %v1602, %v1610
    %1614 = vrot.lane.b32.xlu0 %v1607, 64
    %v1615 = vpop.permute.xlu0 %1614
    %1616 = vrot.lane.b32.xlu0 %v1611, 64
    %v1617 = vpop.permute.xlu0 %1616
    %v1618 = vsel %vm510, %v1615, %v1617
    %1619 = vst.msk [vmem:[#allocation3 + $0x42] sm:$0x1] %vm472, %v1618
    %s1620 = scalar_lea.vmem [#allocation2], 22
    %v1621 = vld [vmem:[%s1620] ss:$8 sm:$0x3]
    %v1623 = vlaneseq
    %v1624 = vshrl.u32 %v1623, 7
    %v1625 = vsub.s32 0, %v1624
    %v1626 = vrot.slane %v1621, %v1625
    %v1627 = vlaneseq
    %v1628 = vshrl.u32 %v1627, 7
    %v1629 = vsub.s32 1, %v1628
    %v1630 = vrot.slane %v1621, %v1629
    %1633 = vrot.lane.b32.xlu0 %v1626, 96
    %v1634 = vpop.permute.xlu0 %1633
    %1635 = vrot.lane.b32.xlu0 %v1630, 96
    %v1636 = vpop.permute.xlu0 %1635
    %v1637 = vsel %vm530, %v1634, %v1636
    %1638 = vst.msk [vmem:[#allocation3 + $0x43] sm:$0x1] %vm472, %v1637
    %s1639 = scalar_lea.vmem [#allocation2], 30
    %v1640 = vld [vmem:[%s1639] ss:$8 sm:$0x3]
    %v1642 = vlaneseq
    %v1643 = vshrl.u32 %v1642, 7
    %v1644 = vsub.s32 0, %v1643
    %v1645 = vrot.slane %v1640, %v1644
    %1647 = vst.msk [vmem:[#allocation3 + $0x44] sm:$0x1] %vm472, %v1645
    %v1648 = vld [vmem:[%s1639] ss:$8 sm:$0x3]
    %v1650 = vlaneseq
    %v1651 = vshrl.u32 %v1650, 7
    %v1652 = vsub.s32 0, %v1651
    %v1653 = vrot.slane %v1648, %v1652
    %v1654 = vlaneseq
    %v1655 = vshrl.u32 %v1654, 7
    %v1656 = vsub.s32 1, %v1655
    %v1657 = vrot.slane %v1648, %v1656
    %1660 = vrot.lane.b32.xlu0 %v1653, 32
    %v1661 = vpop.permute.xlu0 %1660
    %1662 = vrot.lane.b32.xlu0 %v1657, 32
    %v1663 = vpop.permute.xlu0 %1662
    %v1664 = vsel %vm490, %v1661, %v1663
    %1665 = vst.msk [vmem:[#allocation3 + $0x45] sm:$0x1] %vm472, %v1664
    %s1666 = scalar_lea.vmem [#allocation2], 38
    %v1667 = vld [vmem:[%s1666] ss:$8 sm:$0x3]
    %v1669 = vlaneseq
    %v1670 = vshrl.u32 %v1669, 7
    %v1671 = vsub.s32 0, %v1670
    %v1672 = vrot.slane %v1667, %v1671
    %v1673 = vlaneseq
    %v1674 = vshrl.u32 %v1673, 7
    %v1675 = vsub.s32 1, %v1674
    %v1676 = vrot.slane %v1667, %v1675
    %1679 = vrot.lane.b32.xlu0 %v1672, 64
    %v1680 = vpop.permute.xlu0 %1679
    %1681 = vrot.lane.b32.xlu0 %v1676, 64
    %v1682 = vpop.permute.xlu0 %1681
    %v1683 = vsel %vm510, %v1680, %v1682
    %1684 = vst.msk [vmem:[#allocation3 + $0x46] sm:$0x1] %vm472, %v1683
    %s1685 = scalar_lea.vmem [#allocation2], 46
    %v1686 = vld [vmem:[%s1685] ss:$8 sm:$0x3]
    %v1688 = vlaneseq
    %v1689 = vshrl.u32 %v1688, 7
    %v1690 = vsub.s32 0, %v1689
    %v1691 = vrot.slane %v1686, %v1690
    %v1692 = vlaneseq
    %v1693 = vshrl.u32 %v1692, 7
    %v1694 = vsub.s32 1, %v1693
    %v1695 = vrot.slane %v1686, %v1694
    %1698 = vrot.lane.b32.xlu0 %v1691, 96
    %v1699 = vpop.permute.xlu0 %1698
    %1700 = vrot.lane.b32.xlu0 %v1695, 96
    %v1701 = vpop.permute.xlu0 %1700
    %v1702 = vsel %vm530, %v1699, %v1701
    %1703 = vst.msk [vmem:[#allocation3 + $0x47] sm:$0x1] %vm472, %v1702
    %s1704 = scalar_lea.vmem [#allocation2], 54
    %v1705 = vld [vmem:[%s1704] ss:$8 sm:$0x3]
    %v1707 = vlaneseq
    %v1708 = vshrl.u32 %v1707, 7
    %v1709 = vsub.s32 0, %v1708
    %v1710 = vrot.slane %v1705, %v1709
    %1712 = vst.msk [vmem:[#allocation3 + $0x48] sm:$0x1] %vm472, %v1710
    %v1713 = vld [vmem:[%s1704] ss:$8 sm:$0x3]
    %v1715 = vlaneseq
    %v1716 = vshrl.u32 %v1715, 7
    %v1717 = vsub.s32 0, %v1716
    %v1718 = vrot.slane %v1713, %v1717
    %v1719 = vlaneseq
    %v1720 = vshrl.u32 %v1719, 7
    %v1721 = vsub.s32 1, %v1720
    %v1722 = vrot.slane %v1713, %v1721
    %1725 = vrot.lane.b32.xlu0 %v1718, 32
    %v1726 = vpop.permute.xlu0 %1725
    %1727 = vrot.lane.b32.xlu0 %v1722, 32
    %v1728 = vpop.permute.xlu0 %1727
    %v1729 = vsel %vm490, %v1726, %v1728
    %1730 = vst.msk [vmem:[#allocation3 + $0x49] sm:$0x1] %vm472, %v1729
    %v1731 = vld [vmem:[%s1704] ss:$8 sm:$0x3]
    %v1733 = vlaneseq
    %v1734 = vshrl.u32 %v1733, 7
    %v1735 = vsub.s32 0, %v1734
    %v1736 = vrot.slane %v1731, %v1735
    %v1737 = vlaneseq
    %v1738 = vshrl.u32 %v1737, 7
    %v1739 = vsub.s32 1, %v1738
    %v1740 = vrot.slane %v1731, %v1739
    %1743 = vrot.lane.b32.xlu0 %v1736, 64
    %v1744 = vpop.permute.xlu0 %1743
    %1745 = vrot.lane.b32.xlu0 %v1740, 64
    %v1746 = vpop.permute.xlu0 %1745
    %v1747 = vsel %vm510, %v1746, %v1744
    %s1748 = scalar_lea.vmem [#allocation2], 7
    %v1749 = vld [vmem:[%s1748] ss:$8 sm:$0x3]
    %v1751 = vlaneseq
    %v1752 = vshrl.u32 %v1751, 7
    %v1753 = vsub.s32 0, %v1752
    %v1754 = vrot.slane %v1749, %v1753
    %v1755 = vlaneseq
    %v1756 = vshrl.u32 %v1755, 7
    %v1757 = vsub.s32 1, %v1756
    %v1758 = vrot.slane %v1749, %v1757
    %1761 = vrot.lane.b32.xlu0 %v1754, 64
    %v1762 = vpop.permute.xlu0 %1761
    %1763 = vrot.lane.b32.xlu0 %v1758, 64
    %v1764 = vpop.permute.xlu0 %1763
    %v1765 = vsel %vm510, %v1764, %v1762
    %v1766 = vsel %vm510, %v1747, %v1765
    %1767 = vst.msk [vmem:[#allocation3 + $0x4a] sm:$0x1] %vm472, %v1766
    %v1768 = vld [vmem:[%s1748] ss:$8 sm:$0x3]
    %v1770 = vlaneseq
    %v1771 = vshrl.u32 %v1770, 7
    %v1772 = vsub.s32 0, %v1771
    %v1773 = vrot.slane %v1768, %v1772
    %v1774 = vlaneseq
    %v1775 = vshrl.u32 %v1774, 7
    %v1776 = vsub.s32 1, %v1775
    %v1777 = vrot.slane %v1768, %v1776
    %1780 = vrot.lane.b32.xlu0 %v1773, 96
    %v1781 = vpop.permute.xlu0 %1780
    %1782 = vrot.lane.b32.xlu0 %v1777, 96
    %v1783 = vpop.permute.xlu0 %1782
    %v1784 = vsel %vm530, %v1781, %v1783
    %1785 = vst.msk [vmem:[#allocation3 + $0x4b] sm:$0x1] %vm472, %v1784
    %s1786 = scalar_lea.vmem [#allocation2], 15
    %v1787 = vld [vmem:[%s1786] ss:$8 sm:$0x3]
    %v1789 = vlaneseq
    %v1790 = vshrl.u32 %v1789, 7
    %v1791 = vsub.s32 0, %v1790
    %v1792 = vrot.slane %v1787, %v1791
    %1794 = vst.msk [vmem:[#allocation3 + $0x4c] sm:$0x1] %vm472, %v1792
    %v1795 = vld [vmem:[%s1786] ss:$8 sm:$0x3]
    %v1797 = vlaneseq
    %v1798 = vshrl.u32 %v1797, 7
    %v1799 = vsub.s32 0, %v1798
    %v1800 = vrot.slane %v1795, %v1799
    %v1801 = vlaneseq
    %v1802 = vshrl.u32 %v1801, 7
    %v1803 = vsub.s32 1, %v1802
    %v1804 = vrot.slane %v1795, %v1803
    %1807 = vrot.lane.b32.xlu0 %v1800, 32
    %v1808 = vpop.permute.xlu0 %1807
    %1809 = vrot.lane.b32.xlu0 %v1804, 32
    %v1810 = vpop.permute.xlu0 %1809
    %v1811 = vsel %vm490, %v1808, %v1810
    %1812 = vst.msk [vmem:[#allocation3 + $0x4d] sm:$0x1] %vm472, %v1811
    %s1813 = scalar_lea.vmem [#allocation2], 23
    %v1814 = vld [vmem:[%s1813] ss:$8 sm:$0x3]
    %v1816 = vlaneseq
    %v1817 = vshrl.u32 %v1816, 7
    %v1818 = vsub.s32 0, %v1817
    %v1819 = vrot.slane %v1814, %v1818
    %v1820 = vlaneseq
    %v1821 = vshrl.u32 %v1820, 7
    %v1822 = vsub.s32 1, %v1821
    %v1823 = vrot.slane %v1814, %v1822
    %1826 = vrot.lane.b32.xlu0 %v1819, 64
    %v1827 = vpop.permute.xlu0 %1826
    %1828 = vrot.lane.b32.xlu0 %v1823, 64
    %v1829 = vpop.permute.xlu0 %1828
    %v1830 = vsel %vm510, %v1827, %v1829
    %1831 = vst.msk [vmem:[#allocation3 + $0x4e] sm:$0x1] %vm472, %v1830
    %s1832 = scalar_lea.vmem [#allocation2], 31
    %v1833 = vld [vmem:[%s1832] ss:$8 sm:$0x3]
    %v1835 = vlaneseq
    %v1836 = vshrl.u32 %v1835, 7
    %v1837 = vsub.s32 0, %v1836
    %v1838 = vrot.slane %v1833, %v1837
    %v1839 = vlaneseq
    %v1840 = vshrl.u32 %v1839, 7
    %v1841 = vsub.s32 1, %v1840
    %v1842 = vrot.slane %v1833, %v1841
    %1845 = vrot.lane.b32.xlu0 %v1838, 96
    %v1846 = vpop.permute.xlu0 %1845
    %1847 = vrot.lane.b32.xlu0 %v1842, 96
    %v1848 = vpop.permute.xlu0 %1847
    %v1849 = vsel %vm530, %v1846, %v1848
    %1850 = vst.msk [vmem:[#allocation3 + $0x4f] sm:$0x1] %vm472, %v1849
    %s1851 = scalar_lea.vmem [#allocation2], 39
    %v1852 = vld [vmem:[%s1851] ss:$8 sm:$0x3]
    %v1854 = vlaneseq
    %v1855 = vshrl.u32 %v1854, 7
    %v1856 = vsub.s32 0, %v1855
    %v1857 = vrot.slane %v1852, %v1856
    %1859 = vst.msk [vmem:[#allocation3 + $0x50] sm:$0x1] %vm472, %v1857
    %v1860 = vld [vmem:[%s1851] ss:$8 sm:$0x3]
    %v1862 = vlaneseq
    %v1863 = vshrl.u32 %v1862, 7
    %v1864 = vsub.s32 0, %v1863
    %v1865 = vrot.slane %v1860, %v1864
    %v1866 = vlaneseq
    %v1867 = vshrl.u32 %v1866, 7
    %v1868 = vsub.s32 1, %v1867
    %v1869 = vrot.slane %v1860, %v1868
    %1872 = vrot.lane.b32.xlu0 %v1865, 32
    %v1873 = vpop.permute.xlu0 %1872
    %1874 = vrot.lane.b32.xlu0 %v1869, 32
    %v1875 = vpop.permute.xlu0 %1874
    %v1876 = vsel %vm490, %v1873, %v1875
    %1877 = vst.msk [vmem:[#allocation3 + $0x51] sm:$0x1] %vm472, %v1876
    %s1878 = scalar_lea.vmem [#allocation2], 47
    %v1879 = vld [vmem:[%s1878] ss:$8 sm:$0x3]
    %v1881 = vlaneseq
    %v1882 = vshrl.u32 %v1881, 7
    %v1883 = vsub.s32 0, %v1882
    %v1884 = vrot.slane %v1879, %v1883
    %v1885 = vlaneseq
    %v1886 = vshrl.u32 %v1885, 7
    %v1887 = vsub.s32 1, %v1886
    %v1888 = vrot.slane %v1879, %v1887
    %1891 = vrot.lane.b32.xlu0 %v1884, 64
    %v1892 = vpop.permute.xlu0 %1891
    %1893 = vrot.lane.b32.xlu0 %v1888, 64
    %v1894 = vpop.permute.xlu0 %1893
    %v1895 = vsel %vm510, %v1892, %v1894
    %1896 = vst.msk [vmem:[#allocation3 + $0x52] sm:$0x1] %vm472, %v1895
    %s1897 = scalar_lea.vmem [#allocation2], 55
    %v1898 = vld [vmem:[%s1897] ss:$8 sm:$0x3]
    %v1900 = vlaneseq
    %v1901 = vshrl.u32 %v1900, 7
    %v1902 = vsub.s32 0, %v1901
    %v1903 = vrot.slane %v1898, %v1902
    %v1904 = vlaneseq
    %v1905 = vshrl.u32 %v1904, 7
    %v1906 = vsub.s32 1, %v1905
    %v1907 = vrot.slane %v1898, %v1906
    %1910 = vrot.lane.b32.xlu0 %v1903, 96
    %v1911 = vpop.permute.xlu0 %1910
    %1912 = vrot.lane.b32.xlu0 %v1907, 96
    %v1913 = vpop.permute.xlu0 %1912
    %v1914 = vsel %vm530, %v1911, %v1913
    %1915 = vst.msk [vmem:[#allocation3 + $0x53] sm:$0x1] %vm472, %v1914
    %v1916 = vld [vmem:[%s1897] ss:$8 sm:$0x3]
    %v1918 = vlaneseq
    %v1919 = vshrl.u32 %v1918, 7
    %v1920 = vsub.s32 1, %v1919
    %v1921 = vrot.slane %v1916, %v1920
    %1923 = vst.msk [vmem:[#allocation3 + $0x54] sm:$0x1] %vm472, %v1921
    %v1924 = vld [vmem:[%s1897] ss:$8 sm:$0x3]
    %v1926 = vlaneseq
    %v1927 = vshrl.u32 %v1926, 7
    %v1928 = vsub.s32 0, %v1927
    %v1929 = vrot.slane %v1924, %v1928
    %v1930 = vlaneseq
    %v1931 = vshrl.u32 %v1930, 7
    %v1932 = vsub.s32 1, %v1931
    %v1933 = vrot.slane %v1924, %v1932
    %1936 = vrot.lane.b32.xlu0 %v1929, 32
    %v1937 = vpop.permute.xlu0 %1936
    %1938 = vrot.lane.b32.xlu0 %v1933, 32
    %v1939 = vpop.permute.xlu0 %1938
    %v1940 = vsel %vm490, %v1939, %v1937
    %s1941 = scalar_lea.vmem [#allocation2], 64
    %v1942 = vld [vmem:[%s1941] ss:$8 sm:$0x3]
    %v1944 = vlaneseq
    %v1945 = vshrl.u32 %v1944, 7
    %v1946 = vsub.s32 0, %v1945
    %v1947 = vrot.slane %v1942, %v1946
    %v1948 = vlaneseq
    %v1949 = vshrl.u32 %v1948, 7
    %v1950 = vsub.s32 1, %v1949
    %v1951 = vrot.slane %v1942, %v1950
    %1954 = vrot.lane.b32.xlu0 %v1947, 32
    %v1955 = vpop.permute.xlu0 %1954
    %1956 = vrot.lane.b32.xlu0 %v1951, 32
    %v1957 = vpop.permute.xlu0 %1956
    %v1958 = vsel %vm490, %v1957, %v1955
    %v1959 = vsel %vm490, %v1940, %v1958
    %1960 = vst.msk [vmem:[#allocation3 + $0x55] sm:$0x1] %vm472, %v1959
    %v1961 = vld [vmem:[%s1941] ss:$8 sm:$0x3]
    %v1963 = vlaneseq
    %v1964 = vshrl.u32 %v1963, 7
    %v1965 = vsub.s32 0, %v1964
    %v1966 = vrot.slane %v1961, %v1965
    %v1967 = vlaneseq
    %v1968 = vshrl.u32 %v1967, 7
    %v1969 = vsub.s32 1, %v1968
    %v1970 = vrot.slane %v1961, %v1969
    %1973 = vrot.lane.b32.xlu0 %v1966, 64
    %v1974 = vpop.permute.xlu0 %1973
    %1975 = vrot.lane.b32.xlu0 %v1970, 64
    %v1976 = vpop.permute.xlu0 %1975
    %v1977 = vsel %vm510, %v1974, %v1976
    %1978 = vst.msk [vmem:[#allocation3 + $0x56] sm:$0x1] %vm472, %v1977
    %s1979 = scalar_lea.vmem [#allocation2], 72
    %v1980 = vld [vmem:[%s1979] ss:$8 sm:$0x3]
    %v1982 = vlaneseq
    %v1983 = vshrl.u32 %v1982, 7
    %v1984 = vsub.s32 0, %v1983
    %v1985 = vrot.slane %v1980, %v1984
    %v1986 = vlaneseq
    %v1987 = vshrl.u32 %v1986, 7
    %v1988 = vsub.s32 1, %v1987
    %v1989 = vrot.slane %v1980, %v1988
    %1992 = vrot.lane.b32.xlu0 %v1985, 96
    %v1993 = vpop.permute.xlu0 %1992
    %1994 = vrot.lane.b32.xlu0 %v1989, 96
    %v1995 = vpop.permute.xlu0 %1994
    %v1996 = vsel %vm530, %v1993, %v1995
    %1997 = vst.msk [vmem:[#allocation3 + $0x57] sm:$0x1] %vm472, %v1996
    %s1998 = scalar_lea.vmem [#allocation2], 80
    %v1999 = vld [vmem:[%s1998] ss:$8 sm:$0x3]
    %v2001 = vlaneseq
    %v2002 = vshrl.u32 %v2001, 7
    %v2003 = vsub.s32 0, %v2002
    %v2004 = vrot.slane %v1999, %v2003
    %2006 = vst.msk [vmem:[#allocation3 + $0x58] sm:$0x1] %vm472, %v2004
    %v2007 = vld [vmem:[%s1998] ss:$8 sm:$0x3]
    %v2009 = vlaneseq
    %v2010 = vshrl.u32 %v2009, 7
    %v2011 = vsub.s32 0, %v2010
    %v2012 = vrot.slane %v2007, %v2011
    %v2013 = vlaneseq
    %v2014 = vshrl.u32 %v2013, 7
    %v2015 = vsub.s32 1, %v2014
    %v2016 = vrot.slane %v2007, %v2015
    %2019 = vrot.lane.b32.xlu0 %v2012, 32
    %v2020 = vpop.permute.xlu0 %2019
    %2021 = vrot.lane.b32.xlu0 %v2016, 32
    %v2022 = vpop.permute.xlu0 %2021
    %v2023 = vsel %vm490, %v2020, %v2022
    %2024 = vst.msk [vmem:[#allocation3 + $0x59] sm:$0x1] %vm472, %v2023
    %s2025 = scalar_lea.vmem [#allocation2], 88
    %v2026 = vld [vmem:[%s2025] ss:$8 sm:$0x3]
    %v2028 = vlaneseq
    %v2029 = vshrl.u32 %v2028, 7
    %v2030 = vsub.s32 0, %v2029
    %v2031 = vrot.slane %v2026, %v2030
    %v2032 = vlaneseq
    %v2033 = vshrl.u32 %v2032, 7
    %v2034 = vsub.s32 1, %v2033
    %v2035 = vrot.slane %v2026, %v2034
    %2038 = vrot.lane.b32.xlu0 %v2031, 64
    %v2039 = vpop.permute.xlu0 %2038
    %2040 = vrot.lane.b32.xlu0 %v2035, 64
    %v2041 = vpop.permute.xlu0 %2040
    %v2042 = vsel %vm510, %v2039, %v2041
    %2043 = vst.msk [vmem:[#allocation3 + $0x5a] sm:$0x1] %vm472, %v2042
    %s2044 = scalar_lea.vmem [#allocation2], 96
    %v2045 = vld [vmem:[%s2044] ss:$8 sm:$0x3]
    %v2047 = vlaneseq
    %v2048 = vshrl.u32 %v2047, 7
    %v2049 = vsub.s32 0, %v2048
    %v2050 = vrot.slane %v2045, %v2049
    %v2051 = vlaneseq
    %v2052 = vshrl.u32 %v2051, 7
    %v2053 = vsub.s32 1, %v2052
    %v2054 = vrot.slane %v2045, %v2053
    %2057 = vrot.lane.b32.xlu0 %v2050, 96
    %v2058 = vpop.permute.xlu0 %2057
    %2059 = vrot.lane.b32.xlu0 %v2054, 96
    %v2060 = vpop.permute.xlu0 %2059
    %v2061 = vsel %vm530, %v2058, %v2060
    %2062 = vst.msk [vmem:[#allocation3 + $0x5b] sm:$0x1] %vm472, %v2061
    %s2063 = scalar_lea.vmem [#allocation2], 104
    %v2064 = vld [vmem:[%s2063] ss:$8 sm:$0x3]
    %v2066 = vlaneseq
    %v2067 = vshrl.u32 %v2066, 7
    %v2068 = vsub.s32 0, %v2067
    %v2069 = vrot.slane %v2064, %v2068
    %2071 = vst.msk [vmem:[#allocation3 + $0x5c] sm:$0x1] %vm472, %v2069
    %v2072 = vld [vmem:[%s2063] ss:$8 sm:$0x3]
    %v2074 = vlaneseq
    %v2075 = vshrl.u32 %v2074, 7
    %v2076 = vsub.s32 0, %v2075
    %v2077 = vrot.slane %v2072, %v2076
    %v2078 = vlaneseq
    %v2079 = vshrl.u32 %v2078, 7
    %v2080 = vsub.s32 1, %v2079
    %v2081 = vrot.slane %v2072, %v2080
    %2084 = vrot.lane.b32.xlu0 %v2077, 32
    %v2085 = vpop.permute.xlu0 %2084
    %2086 = vrot.lane.b32.xlu0 %v2081, 32
    %v2087 = vpop.permute.xlu0 %2086
    %v2088 = vsel %vm490, %v2085, %v2087
    %2089 = vst.msk [vmem:[#allocation3 + $0x5d] sm:$0x1] %vm472, %v2088
    %s2090 = scalar_lea.vmem [#allocation2], 112
    %v2091 = vld [vmem:[%s2090] ss:$8 sm:$0x3]
    %v2093 = vlaneseq
    %v2094 = vshrl.u32 %v2093, 7
    %v2095 = vsub.s32 0, %v2094
    %v2096 = vrot.slane %v2091, %v2095
    %v2097 = vlaneseq
    %v2098 = vshrl.u32 %v2097, 7
    %v2099 = vsub.s32 1, %v2098
    %v2100 = vrot.slane %v2091, %v2099
    %2103 = vrot.lane.b32.xlu0 %v2096, 64
    %v2104 = vpop.permute.xlu0 %2103
    %2105 = vrot.lane.b32.xlu0 %v2100, 64
    %v2106 = vpop.permute.xlu0 %2105
    %v2107 = vsel %vm510, %v2104, %v2106
    %2108 = vst.msk [vmem:[#allocation3 + $0x5e] sm:$0x1] %vm472, %v2107
    %v2109 = vld [vmem:[%s2090] ss:$8 sm:$0x3]
    %v2111 = vlaneseq
    %v2112 = vshrl.u32 %v2111, 7
    %v2113 = vsub.s32 0, %v2112
    %v2114 = vrot.slane %v2109, %v2113
    %v2115 = vlaneseq
    %v2116 = vshrl.u32 %v2115, 7
    %v2117 = vsub.s32 1, %v2116
    %v2118 = vrot.slane %v2109, %v2117
    %2121 = vrot.lane.b32.xlu0 %v2114, 96
    %v2122 = vpop.permute.xlu0 %2121
    %2123 = vrot.lane.b32.xlu0 %v2118, 96
    %v2124 = vpop.permute.xlu0 %2123
    %v2125 = vsel %vm530, %v2124, %v2122
    %2126 = vst.msk [vmem:[#allocation3 + $0x5f] sm:$0x1] %vm472, %v2125
    %v2127 = vld [vmem:[#allocation3] sm:$0xff]
    %v2128 = vld [vmem:[#allocation3 + $0x8] sm:$0xff]
    %v2129 = vld [vmem:[#allocation3 + $0x10] sm:$0xff]
    %v2130 = vld [vmem:[#allocation3 + $0x18] sm:$0xff]
    %v2131 = vld [vmem:[#allocation3 + $0x20] sm:$0xff]
    %v2132 = vld [vmem:[#allocation3 + $0x28] sm:$0xff]
    %v2133 = vld [vmem:[#allocation3 + $0x30] sm:$0xff]
    %v2134 = vld [vmem:[#allocation3 + $0x38] sm:$0xff]
    %v2135 = vld [vmem:[#allocation3 + $0x40] sm:$0xff]
    %v2136 = vld [vmem:[#allocation3 + $0x48] sm:$0xff]
    %v2137 = vld [vmem:[#allocation3 + $0x50] sm:$0xff]
    %v2138 = vld [vmem:[#allocation3 + $0x58] sm:$0xff]
    %vm2139 = vcmask 785408
    %v2141 = vsel %vm2139, %v2127, 0
    %v2144 = vsel %vm2139, %v2128, 0
    %v2147 = vsel %vm2139, %v2129, 0
    %v2150 = vsel %vm2139, %v2130, 0
    %v2153 = vsel %vm2139, %v2131, 0
    %v2156 = vsel %vm2139, %v2132, 0
    %v2159 = vsel %vm2139, %v2133, 0
    %v2162 = vsel %vm2139, %v2134, 0
    %2164 = vmatprep.subr.mxu0 0.0
    %2165 = vmatpush1.xpose.msra.mxu0 %v2153
    %2166 = vmatprep.subr.mxu0 0.0
    %2167 = vmatpush1.xpose.msra.mxu0 %v2156
    %2168 = vmatprep.subr.mxu0 0.0
    %2169 = vmatpush1.xpose.msra.mxu0 %v2159
    %2170 = vmatprep.subr.mxu0 0.0
    %2171 = vmatpush1.xpose.msra.mxu0 %v2162
    %2172 = vmatprep.subr.mxu0 0.0
    %2173 = vmatpush1.xpose.msra.mxu0 0.0
    %2174 = vmatprep.subr.mxu0 0.0
    %2175 = vmatpush1.xpose.msra.mxu0 0.0
    %2176 = vmatprep.subr.mxu0 0.0
    %2177 = vmatpush1.xpose.msra.mxu0 0.0
    %2178 = vmatprep.subr.mxu0 0.0
    %2179 = vmatpush1.xpose.msra.mxu0 0.0
    %2180 = vmatprep.subr.mxu0 0.0
    %2181 = vmatpush1.xpose.msra.mxu0 0.0
    %2182 = vmatprep.subr.mxu0 0.0
    %2183 = vmatpush1.xpose.msra.mxu0 0.0
    %2184 = vmatprep.subr.mxu0 0.0
    %2185 = vmatpush1.xpose.msra.mxu0 0.0
    %2186 = vmatprep.subr.mxu0 0.0
    %2187 = vmatpush1.xpose.msra.mxu0 0.0
    %2188 = vmatprep.subr.mxu0 0.0
    %2189 = vmatpush1.xpose.msra.mxu0 0.0
    %2190 = vmatprep.subr.mxu0 0.0
    %2191 = vmatpush1.xpose.msra.mxu0 0.0
    %2192 = vmatprep.subr.mxu0 0.0
    %2193 = vmatpush1.xpose.msra.mxu0 0.0
    %2194 = vmatprep.subr.mxu0 0.0
    %2195 = vmatpush1.xpose.msra.mxu0 0.0
    %2196 = vmatprep.subr.mxu0 0.0
    %2197 = vmatpush1.xpose.msra.mxu0 0.0
    %2198 = vmatprep.subr.mxu0 0.0
    %2199 = vmatpush1.xpose.msra.mxu0 0.0
    %2200 = vmatprep.subr.mxu0 0.0
    %2201 = vmatpush1.xpose.msra.mxu0 0.0
    %2202 = vmatprep.subr.mxu0 0.0
    %2203 = vmatpush1.xpose.msra.mxu0 0.0
    %2204 = vmatprep.subr.mxu0 0.0
    %2205 = vmatpush1.xpose.msra.mxu0 0.0
    %2206 = vmatprep.subr.mxu0 0.0
    %2207 = vmatpush1.xpose.msra.mxu0 0.0
    %2208 = vmatprep.subr.mxu0 0.0
    %2209 = vmatpush1.xpose.msra.mxu0 0.0
    %2210 = vmatprep.subr.mxu0 0.0
    %2211 = vmatpush1.xpose.msra.mxu0 0.0
    %2212 = vmatprep.subr.mxu0 0.0
    %2213 = vmatpush1.xpose.msra.mxu0 0.0
    %2214 = vmatprep.subr.mxu0 0.0
    %2215 = vmatpush1.xpose.msra.mxu0 0.0
    %2216 = vmatprep.subr.mxu0 0.0
    %2217 = vmatpush1.xpose.msra.mxu0 0.0
    %2218 = vmatprep.subr.mxu0 0.0
    %2219 = vmatpush1.xpose.msra.mxu0 0.0
    %2220 = vmatprep.subr.mxu0 0.0
    %2221 = vmatpush1.xpose.msra.mxu0 0.0
    %2222 = vmatprep.subr.mxu0 0.0
    %2223 = vmatpush1.xpose.msra.mxu0 0.0
    %2224 = vmatprep.subr.mxu0 0.0
    %2225 = vmatpush1.xpose.msra.mxu0 0.0
    %2226 = vmatprep.subr.mxu0 0.0
    %2227 = vmatpush1.xpose.msra.mxu0 0.0
    %2228 = vmatprep.mubr.f32.mxu0 0.0
    %2229 = vmatmul.mubr.f32.gmra.mrb[0].mxu0 %v2141
    %v2230 = vpop.f32.mrb[0].mxu0
    %v2231 = vadd.f32 0.0, %v2230
    %v2232 = vpop.f32.mrb[0].mxu0
    %2233 = vmatprep.mubr.f32.mxu0 0.0
    %2234 = vmatmul.mubr.f32.gmra.mrb[0].mxu0 %v2144
    %v2235 = vpop.f32.mrb[0].mxu0
    %v2236 = vadd.f32 0.0, %v2235
    %v2237 = vpop.f32.mrb[0].mxu0
    %2238 = vmatprep.mubr.f32.mxu0 0.0
    %2239 = vmatmul.mubr.f32.gmra.mrb[0].mxu0 %v2147
    %v2240 = vpop.f32.mrb[0].mxu0
    %v2241 = vadd.f32 0.0, %v2240
    %v2242 = vpop.f32.mrb[0].mxu0
    %2243 = vmatprep.mubr.f32.mxu0 0.0
    %2244 = vmatmul.mubr.f32.gmra.mrb[0].mxu0 %v2150
    %v2245 = vpop.f32.mrb[0].mxu0
    %v2246 = vadd.f32 0.0, %v2245
    %v2247 = vpop.f32.mrb[0].mxu0
    %2248 = vdwg.mxu0
    %v2249 = vmul.f32 %v2231, 0.10206208
    %v2250 = vmul.f32 %v2236, 0.10206208
    %v2251 = vmul.f32 %v2241, 0.10206208
    %v2252 = vmul.f32 %v2246, 0.10206208
    %v2253 = vlaneseq
    %v2254 = vshrl.u32 %v2253, 7
    %v2255 = vadd.s32 %v2254, 8
    %v2256 = vadd.s32 %v2254, 16
    %v2257 = vadd.s32 %v2254, 24
    %vm2258 = vcmp.eq.s32.totalorder %v2254, %v464
    %vm2259 = vcmp.eq.s32.totalorder %v2255, %v464
    %vm2260 = vcmp.eq.s32.totalorder %v2256, %v464
    %vm2261 = vcmp.eq.s32.totalorder %v2257, %v464
    %v2262 = vsub.f32 %v2249, 10000.0
    %v2263 = vsub.f32 %v2250, 10000.0
    %v2264 = vsub.f32 %v2251, 10000.0
    %v2265 = vsub.f32 %v2252, 10000.0
    %v2266 = vsel %vm2258, %v2262, %v2249
    %v2267 = vsel %vm2259, %v2263, %v2250
    %v2268 = vsel %vm2260, %v2264, %v2251
    %v2269 = vsel %vm2261, %v2265, %v2252
    %vm2270 = vcmask 261120
    %v2271 = vsel %vm2270, %v2266, -inf
    %2272 = vmax.xlane.f32.xlu0 %v2271
    %v2273 = vpop.xlane.xlu0 %2272
    %v2274 = vsel %vm2270, %v2267, -inf
    %2275 = vmax.xlane.f32.xlu0 %v2274
    %v2276 = vpop.xlane.xlu0 %2275
    %v2277 = vsel %vm2270, %v2268, -inf
    %2278 = vmax.xlane.f32.xlu0 %v2277
    %v2279 = vpop.xlane.xlu0 %2278
    %v2280 = vsel %vm2270, %v2269, -inf
    %2281 = vmax.xlane.f32.xlu0 %v2280
    %v2282 = vpop.xlane.xlu0 %2281
    %v2283 = vsub.f32 %v2266, %v2273
    %v2284 = vsub.f32 %v2267, %v2276
    %v2285 = vsub.f32 %v2268, %v2279
    %v2286 = vsub.f32 %v2269, %v2282
    %v2287 = vmul.f32 %v2283, 1.442695
    %v2288 = vpow.pop %v2287
    %v2289 = vmul.f32 %v2284, 1.442695
    %v2290 = vpow.pop %v2289
    %v2291 = vmul.f32 %v2285, 1.442695
    %v2292 = vpow.pop %v2291
    %v2293 = vmul.f32 %v2286, 1.442695
    %v2294 = vpow.pop %v2293
    %v2295 = vsel %vm2270, %v2288, 0.0
    %2296 = vadd.xlane.f32.xlu0 %v2295
    %v2297 = vpop.xlane.xlu0 %2296
    %v2298 = vsel %vm2270, %v2290, 0.0
    %2299 = vadd.xlane.f32.xlu0 %v2298
    %v2300 = vpop.xlane.xlu0 %2299
    %v2301 = vsel %vm2270, %v2292, 0.0
    %2302 = vadd.xlane.f32.xlu0 %v2301
    %v2303 = vpop.xlane.xlu0 %2302
    %v2304 = vsel %vm2270, %v2294, 0.0
    %2305 = vadd.xlane.f32.xlu0 %v2304
    %v2306 = vpop.xlane.xlu0 %2305
    %v2307 = vrcp.pop %v2297
    %v2308 = vrcp.pop %v2300
    %v2309 = vrcp.pop %v2303
    %v2310 = vrcp.pop %v2306
    %v2311 = vmul.f32 %v2288, %v2307
    %v2312 = vmul.f32 %v2290, %v2308
    %v2313 = vmul.f32 %v2292, %v2309
    %v2314 = vmul.f32 %v2294, %v2310
    %v2316 = vsel %vm2270, %v2311, 0
    %v2319 = vsel %vm2270, %v2312, 0
    %v2322 = vsel %vm2270, %v2313, 0
    %v2325 = vsel %vm2270, %v2314, 0
    %2327 = vmatprep.subr.mxu0 0.0
    %2328 = vmatpush1.msra.mxu0 %v2135
    %2329 = vmatprep.subr.mxu0 0.0
    %2330 = vmatpush1.msra.mxu0 %v2136
    %2331 = vmatprep.subr.mxu0 0.0
    %2332 = vmatpush1.msra.mxu0 %v2137
    %2333 = vmatprep.subr.mxu0 0.0
    %2334 = vmatpush1.msra.mxu0 %v2138
    %2335 = vmatprep.subr.mxu0 0.0
    %2336 = vmatpush1.msra.mxu0 0.0
    %2337 = vmatprep.subr.mxu0 0.0
    %2338 = vmatpush1.msra.mxu0 0.0
    %2339 = vmatprep.subr.mxu0 0.0
    %2340 = vmatpush1.msra.mxu0 0.0
    %2341 = vmatprep.subr.mxu0 0.0
    %2342 = vmatpush1.msra.mxu0 0.0
    %2343 = vmatprep.subr.mxu0 0.0
    %2344 = vmatpush1.msra.mxu0 0.0
    %2345 = vmatprep.subr.mxu0 0.0
    %2346 = vmatpush1.msra.mxu0 0.0
    %2347 = vmatprep.subr.mxu0 0.0
    %2348 = vmatpush1.msra.mxu0 0.0
    %2349 = vmatprep.subr.mxu0 0.0
    %2350 = vmatpush1.msra.mxu0 0.0
    %2351 = vmatprep.subr.mxu0 0.0
    %2352 = vmatpush1.msra.mxu0 0.0
    %2353 = vmatprep.subr.mxu0 0.0
    %2354 = vmatpush1.msra.mxu0 0.0
    %2355 = vmatprep.subr.mxu0 0.0
    %2356 = vmatpush1.msra.mxu0 0.0
    %2357 = vmatprep.subr.mxu0 0.0
    %2358 = vmatpush1.msra.mxu0 0.0
    %2359 = vmatprep.subr.mxu0 0.0
    %2360 = vmatpush1.msra.mxu0 0.0
    %2361 = vmatprep.subr.mxu0 0.0
    %2362 = vmatpush1.msra.mxu0 0.0
    %2363 = vmatprep.subr.mxu0 0.0
    %2364 = vmatpush1.msra.mxu0 0.0
    %2365 = vmatprep.subr.mxu0 0.0
    %2366 = vmatpush1.msra.mxu0 0.0
    %2367 = vmatprep.subr.mxu0 0.0
    %2368 = vmatpush1.msra.mxu0 0.0
    %2369 = vmatprep.subr.mxu0 0.0
    %2370 = vmatpush1.msra.mxu0 0.0
    %2371 = vmatprep.subr.mxu0 0.0
    %2372 = vmatpush1.msra.mxu0 0.0
    %2373 = vmatprep.subr.mxu0 0.0
    %2374 = vmatpush1.msra.mxu0 0.0
    %2375 = vmatprep.subr.mxu0 0.0
    %2376 = vmatpush1.msra.mxu0 0.0
    %2377 = vmatprep.subr.mxu0 0.0
    %2378 = vmatpush1.msra.mxu0 0.0
    %2379 = vmatprep.subr.mxu0 0.0
    %2380 = vmatpush1.msra.mxu0 0.0
    %2381 = vmatprep.subr.mxu0 0.0
    %2382 = vmatpush1.msra.mxu0 0.0
    %2383 = vmatprep.subr.mxu0 0.0
    %2384 = vmatpush1.msra.mxu0 0.0
    %2385 = vmatprep.subr.mxu0 0.0
    %2386 = vmatpush1.msra.mxu0 0.0
    %2387 = vmatprep.subr.mxu0 0.0
    %2388 = vmatpush1.msra.mxu0 0.0
    %2389 = vmatprep.subr.mxu0 0.0
    %2390 = vmatpush1.msra.mxu0 0.0
    %2391 = vmatprep.mubr.f32.mxu0 0.0
    %2392 = vmatmul.mubr.f32.gmra.mrb[0].mxu0 %v2316
    %v2393 = vpop.f32.mrb[0].mxu0
    %v2394 = vadd.f32 0.0, %v2393
    %v2395 = vpop.f32.mrb[0].mxu0
    %2396 = vmatprep.mubr.f32.mxu0 0.0
    %2397 = vmatmul.mubr.f32.gmra.mrb[0].mxu0 %v2319
    %v2398 = vpop.f32.mrb[0].mxu0
    %v2399 = vadd.f32 0.0, %v2398
    %v2400 = vpop.f32.mrb[0].mxu0
    %2401 = vmatprep.mubr.f32.mxu0 0.0
    %2402 = vmatmul.mubr.f32.gmra.mrb[0].mxu0 %v2322
    %v2403 = vpop.f32.mrb[0].mxu0
    %v2404 = vadd.f32 0.0, %v2403
    %v2405 = vpop.f32.mrb[0].mxu0
    %2406 = vmatprep.mubr.f32.mxu0 0.0
    %2407 = vmatmul.mubr.f32.gmra.mrb[0].mxu0 %v2325
    %v2408 = vpop.f32.mrb[0].mxu0
    %v2409 = vadd.f32 0.0, %v2408
    %v2410 = vpop.f32.mrb[0].mxu0
    %2411 = vdwg.mxu0
    %2412 = vst.msk [vmem:[#allocation7] sm:$0xff] %vm2139, %v2394
    %2413 = vst.msk [vmem:[#allocation7 + $0x8] sm:$0xff] %vm2139, %v2399
    %2414 = vst.msk [vmem:[#allocation7 + $0x10] sm:$0xff] %vm2139, %v2404
    %2415 = vst.msk [vmem:[#allocation7 + $0x18] sm:$0xff] %vm2139, %v2409
    // Predicated region
    $region18: #{model_forward.1} parent=1 // pred_check
      _
    $region19: #{model_forward.1} parent=1 // pred_check_branch
      %2417 = sbr.rel (0) target = $region21
    $region20: #{model_forward.1} parent=1 // pred_region
      %s2419 = ssub.s32 512, 512
      %2420 = vsyncadd [#allocation6], %s2419
      %s2421 = sshll.u32 [#allocation7], 4
      %s2422 = int_to_ptr.vmem [resolvable:$true] %s2421
      %2427 = dma.vmem_to_hbm [thread:$0]  %s2422, 512, %s3, [#allocation6], 128, 128, 8
    $region21: #{model_forward.1} parent=1 // pred_fallthru
      _
    // Predicated region
    $region22: #{model_forward.1} parent=1 // pred_check
      _
    $region23: #{model_forward.1} parent=1 // pred_check_branch
      %2429 = sbr.rel (0) target = $region25
    $region24: #{model_forward.1} parent=1 // pred_region
      %2430 = dma.done [#allocation6], 512
    $region25: #{model_forward.1} parent=1 // pred_fallthru
      _
    %2431 = vsyncpa [#allocation5], 1
    %2432 = vsyncpa [#allocation6], 1

</llo_original>
